<compile_context>
chip_gen: v7x
topology: tpu7x:2x2x1
jax: 0.10.0
libtpu: 0.0.40
codegen_flags: <defaults>
</compile_context>

<pallas_src>
import functools
import math

import jax
import jax.numpy as jnp
from jax.experimental import pallas as pl
from jax.experimental.pallas import tpu as pltpu

_BN_EPS = 1e-5


# ----------------------------------------------------------------------------------
# Pallas kernels
# ----------------------------------------------------------------------------------
def _conv_kernel(pat_ref, w_ref, b_ref, *rest, fuse_input_bn_relu):
    """y = W @ pat + b on one lane-dense M-tile, plus per-tile BN stats side output.

    pat_ref : (K, bm)   bf16  im2col tile (K = 27*Cin, lanes = spatial positions)
    w_ref   : (Cout, K) bf16  resident weight
    b_ref   : (Cout, 1) f32   bias
    [scale_ref, shift_ref : (K, 1) f32]  optional fused BN+ReLU on the operand rows
    y_ref   : (Cout, bm) f32
    stats_ref: (Cout, 128) f32  lane 0 = per-channel sum, lane 1 = per-channel sumsq
    """
    if fuse_input_bn_relu:
        scale_ref, shift_ref, y_ref, stats_ref = rest
    else:
        y_ref, stats_ref = rest

    pat = pat_ref[...]
    if fuse_input_bn_relu:
        # BN (previous layer, batch statistics) + ReLU, applied per im2col row.
        p = pat.astype(jnp.float32)
        p = jnp.maximum(p * scale_ref[...] + shift_ref[...], 0.0)
        pat = p.astype(jnp.bfloat16)

    acc = jnp.dot(w_ref[...], pat, preferred_element_type=jnp.float32)  # (Cout, bm)
    acc = acc + b_ref[...]
    y_ref[...] = acc.astype(y_ref.dtype)

    # Per-tile BN statistics (f32, computed on the exact accumulator).
    s1 = jnp.sum(acc, axis=1, keepdims=True)        # (Cout, 1)
    s2 = jnp.sum(acc * acc, axis=1, keepdims=True)  # (Cout, 1)
    lane = jax.lax.broadcasted_iota(jnp.int32, stats_ref.shape, 1)
    stats_ref[...] = jnp.where(lane == 0, s1, jnp.where(lane == 1, s2, 0.0))


def _bn_relu_kernel(y_ref, scale_ref, shift_ref, o_ref):
    o_ref[...] = jnp.maximum(y_ref[...] * scale_ref[...] + shift_ref[...], 0.0)


# ----------------------------------------------------------------------------------
# Kernel wrappers
# ----------------------------------------------------------------------------------
def _pick_block(m, target):
    bm = min(target, m)
    while m % bm:
        bm //= 2
    return max(bm, 1)


def conv_bias_stats(pat, w2d, bias, scale_rows=None, shift_rows=None, block_m=2048):
    """Lane-dense conv matmul: returns (y=(Cout,M) f32, stats=(Cout, nt*128) f32)."""
    k, m = pat.shape
    cout = w2d.shape[0]
    bm = _pick_block(m, block_m)
    nt = m // bm
    fuse = scale_rows is not None

    in_specs = [
        pl.BlockSpec((k, bm), lambda i: (0, i)),      # im2col tile (lane-dense)
        pl.BlockSpec((cout, k), lambda i: (0, 0)),    # weight, VMEM resident
        pl.BlockSpec((cout, 1), lambda i: (0, 0)),    # bias
    ]
    args = [pat, w2d, bias.reshape(cout, 1).astype(jnp.float32)]
    if fuse:
        in_specs += [pl.BlockSpec((k, 1), lambda i: (0, 0)),
                     pl.BlockSpec((k, 1), lambda i: (0, 0))]
        args += [scale_rows.reshape(k, 1).astype(jnp.float32),
                 shift_rows.reshape(k, 1).astype(jnp.float32)]

    y, stats = pl.pallas_call(
        functools.partial(_conv_kernel, fuse_input_bn_relu=fuse),
        out_shape=(jax.ShapeDtypeStruct((cout, m), jnp.float32),
                   jax.ShapeDtypeStruct((cout, nt * 128), jnp.float32)),
        grid_spec=pltpu.PrefetchScalarGridSpec(
            num_scalar_prefetch=0,
            grid=(nt,),
            in_specs=in_specs,
            out_specs=(pl.BlockSpec((cout, bm), lambda i: (0, i)),
                       pl.BlockSpec((cout, 128), lambda i: (0, i))),
        ),
        compiler_params=pltpu.CompilerParams(dimension_semantics=("parallel",)),
    )(*args)
    return y, stats


def bn_relu_apply(y, scale, shift, block_m=2048):
    """Tiled lane-dense BN(affine) + ReLU on a (C, M) slab."""
    c, m = y.shape
    bm = _pick_block(m, block_m)
    nt = m // bm
    return pl.pallas_call(
        _bn_relu_kernel,
        out_shape=jax.ShapeDtypeStruct((c, m), jnp.float32),
        grid_spec=pltpu.PrefetchScalarGridSpec(
            num_scalar_prefetch=0,
            grid=(nt,),
            in_specs=[pl.BlockSpec((c, bm), lambda i: (0, i)),
                      pl.BlockSpec((c, 1), lambda i: (0, 0)),
                      pl.BlockSpec((c, 1), lambda i: (0, 0))],
            out_specs=pl.BlockSpec((c, bm), lambda i: (0, i)),
        ),
        compiler_params=pltpu.CompilerParams(dimension_semantics=("parallel",)),
    )(y, scale.reshape(c, 1).astype(jnp.float32), shift.reshape(c, 1).astype(jnp.float32))


# ----------------------------------------------------------------------------------
# XLA glue: layout, replicate-padded im2col, weight packing, BN affine folding
# ----------------------------------------------------------------------------------
def _im2col_taps(xc):
    """xc: (C, N, D, H, W) -> (27*C, N*D*H*W) bf16, tap-major / channel-minor rows."""
    c, n, d, h, w = xc.shape
    xp = jnp.pad(xc, ((0, 0), (0, 0), (1, 1), (1, 1), (1, 1)), mode="edge")
    taps = [xp[:, :, kd:kd + d, kh:kh + h, kw:kw + w]
            for kd in range(3) for kh in range(3) for kw in range(3)]
    pat = jnp.stack(taps, axis=0)                       # (27, C, N, D, H, W)
    return pat.reshape(27 * c, n * d * h * w).astype(jnp.bfloat16)


def _weight_2d(w):
    """torch (Cout, Cin, 3, 3, 3) -> (Cout, 27*Cin) bf16 with matching row order."""
    cout, cin = w.shape[0], w.shape[1]
    return jnp.transpose(w, (0, 2, 3, 4, 1)).reshape(cout, 27 * cin).astype(jnp.bfloat16)


def _bn_affine(stats, count, gamma, beta, eps=_BN_EPS):
    """Reduce per-tile (sum, sumsq) side outputs -> per-channel (scale, shift)."""
    c = stats.shape[0]
    st = stats.reshape(c, -1, 128)
    s1 = jnp.sum(st[:, :, 0], axis=1)
    s2 = jnp.sum(st[:, :, 1], axis=1)
    mean = s1 / count
    var = jnp.maximum(s2 / count - mean * mean, 0.0)    # biased variance, like torch BN
    scale = gamma * jax.lax.rsqrt(var + eps)
    shift = beta - mean * scale
    return scale, shift


# ----------------------------------------------------------------------------------
# DoubleConv forward
# ----------------------------------------------------------------------------------
def double_conv_forward(params, x, block_m=2048):
    """x: (N, Cin, D, H, W) f32 -> (N, Cout, D, H, W) f32."""
    n, cin, d, h, w = x.shape
    m = n * d * h * w
    cout = params["w1"].shape[0]

    xc = jnp.transpose(x, (1, 0, 2, 3, 4))              # (Cin, N, D, H, W)

    # conv1 (+ per-tile BN1 stats side output)
    pat1 = _im2col_taps(xc)
    y1, stats1 = conv_bias_stats(pat1, _weight_2d(params["w1"]), params["b1"],
                                 block_m=block_m)
    scale1, shift1 = _bn_affine(stats1, float(m), params["gamma"], params["beta"])

    # conv2 with BN1 + ReLU fused into the operand stage of the matmul kernel
    pat2 = _im2col_taps(y1.reshape(cout, n, d, h, w))
    y2, stats2 = conv_bias_stats(pat2, _weight_2d(params["w2"]), params["b2"],
                                 scale_rows=jnp.tile(scale1, 27),
                                 shift_rows=jnp.tile(shift1, 27),
                                 block_m=block_m)
    scale2, shift2 = _bn_affine(stats2, float(m), params["gamma"], params["beta"])

    out = bn_relu_apply(y2, scale2, shift2, block_m=block_m)   # (Cout, M)
    return jnp.transpose(out.reshape(cout, n, d, h, w), (1, 0, 2, 3, 4))


# ----------------------------------------------------------------------------------
# Parameter init (deterministic, torch-like fan-in bounds; shared BN module)
# ----------------------------------------------------------------------------------
def init_params(key, in_channels, out_channels):
    k1, k2, k3, k4, k5, k6 = jax.random.split(key, 6)

    def conv_init(kw, kb, cin, cout):
        bound = 1.0 / math.sqrt(cin * 27)
        w = jax.random.uniform(kw, (cout, cin, 3, 3, 3), jnp.float32, -bound, bound)
        b = jax.random.uniform(kb, (cout,), jnp.float32, -bound, bound)
        return w, b

    w1, b1 = conv_init(k1, k2, in_channels, out_channels)
    w2, b2 = conv_init(k3, k4, out_channels, out_channels)
    gamma = 1.0 + 0.1 * jax.random.uniform(k5, (out_channels,), jnp.float32, -1.0, 1.0)
    beta = 0.1 * jax.random.uniform(k6, (out_channels,), jnp.float32, -1.0, 1.0)
    return dict(w1=w1, b1=b1, w2=w2, b2=b2, gamma=gamma, beta=beta)


# ----------------------------------------------------------------------------------
# Pure-JAX f32 reference (mirrors the PyTorch module exactly)
# ----------------------------------------------------------------------------------
def reference_double_conv(params, x, eps=_BN_EPS):
    def conv(xx, w, b):
        xp = jnp.pad(xx, ((0, 0), (0, 0), (1, 1), (1, 1), (1, 1)), mode="edge")
        y = jax.lax.conv_general_dilated(
            xp, w, (1, 1, 1), "VALID",
            dimension_numbers=("NCDHW", "OIDHW", "NCDHW"),
            precision=jax.lax.Precision.HIGHEST)
        return y + b.reshape(1, -1, 1, 1, 1)

    def bnrelu(xx, g, bt):
        mean = jnp.mean(xx, axis=(0, 2, 3, 4), keepdims=True)
        var = jnp.mean(jnp.square(xx - mean), axis=(0, 2, 3, 4), keepdims=True)
        y = (xx - mean) * jax.lax.rsqrt(var + eps)
        return jnp.maximum(y * g.reshape(1, -1, 1, 1, 1) + bt.reshape(1, -1, 1, 1, 1), 0.0)

    y = conv(x, params["w1"], params["b1"])
    y = bnrelu(y, params["gamma"], params["beta"])
    y = conv(y, params["w2"], params["b2"])
    y = bnrelu(y, params["gamma"], params["beta"])
    return y


if __name__ == "__main__":
    key = jax.random.PRNGKey(0)
    kp, kx = jax.random.split(key)
    in_channels, out_channels = 4, 8
    params = init_params(kp, in_channels, out_channels)
    x = jax.random.normal(kx, (2, in_channels, 16, 16, 16), dtype=jnp.float32)

    fwd = jax.jit(double_conv_forward)
    out = fwd(params, x)
    jax.block_until_ready(out)

    assert out.shape == (2, out_channels, 16, 16, 16)
    assert bool(jnp.all(jnp.isfinite(out)))
    assert bool(jnp.all(out >= 0.0))          # ReLU output

    ref = reference_double_conv(params, x)
    max_err = float(jnp.max(jnp.abs(out - ref)))
    # bf16 matmul operands (f32 accumulation) keep errors << 0.05 on O(1) BN outputs.
    assert max_err < 0.2, f"mismatch vs f32 reference: max abs err = {max_err}"
    print("KERNEL_OK")
</pallas_src>

<mosaic_0001>
module attributes {stable_mosaic.version = 11 : i64} {
  func.func @_conv_kernel(%arg0: i32, %arg1: memref<108x2048xbf16, #tpu.memory_space<vmem>>, %arg2: memref<8x108xbf16, #tpu.memory_space<vmem>>, %arg3: memref<8x1xf32, #tpu.memory_space<vmem>>, %arg4: memref<8x2048xf32, #tpu.memory_space<vmem>>, %arg5: memref<8x128xf32, #tpu.memory_space<vmem>>) attributes {dimension_semantics = [#tpu.dimension_semantics<parallel>], iteration_bounds = array<i64: 4>, scalar_prefetch = 0 : i64, scratch_operands = 0 : i64, tpu.core_type = #tpu.core_type<tc>, window_params = [{transform_indices = @transform_0, window_bounds = array<i64: 108, 2048>}, {pipeline_mode = #tpu.pipeline_mode<synchronous>, transform_indices = @transform_1, window_bounds = array<i64: 8, 108>}, {pipeline_mode = #tpu.pipeline_mode<synchronous>, transform_indices = @transform_2, window_bounds = array<i64: 8, 1>}, {transform_indices = @transform_3, window_bounds = array<i64: 8, 2048>}, {transform_indices = @transform_4, window_bounds = array<i64: 8, 128>}]} {
    %c0 = arith.constant 0 : index
    %c0_0 = arith.constant 0 : index
    %0 = vector.load %arg1[%c0, %c0_0] : memref<108x2048xbf16, #tpu.memory_space<vmem>>, vector<108x2048xbf16>
    %c0_1 = arith.constant 0 : index
    %c0_2 = arith.constant 0 : index
    %1 = vector.load %arg2[%c0_1, %c0_2] : memref<8x108xbf16, #tpu.memory_space<vmem>>, vector<8x108xbf16>
    %cst = arith.constant dense<0.000000e+00> : vector<8x2048xf32>
    %2 = tpu.matmul %1, %0, %cst {dimension_numbers = #tpu.dot_dimension_numbers<[1], [0], [0], [1], [0, 0, 1, 1], [], []>} : vector<8x108xbf16>, vector<108x2048xbf16>, vector<8x2048xf32> -> vector<8x2048xf32>
    %c0_3 = arith.constant 0 : index
    %c0_4 = arith.constant 0 : index
    %3 = vector.load %arg3[%c0_3, %c0_4] : memref<8x1xf32, #tpu.memory_space<vmem>>, vector<8x1xf32>
    %4 = vector.broadcast %3 : vector<8x1xf32> to vector<8x2048xf32>
    %5 = arith.addf %2, %4 : vector<8x2048xf32>
    %c0_5 = arith.constant 0 : index
    %c0_6 = arith.constant 0 : index
    %6 = vector.load %arg4[%c0_5, %c0_6] : memref<8x2048xf32, #tpu.memory_space<vmem>>, vector<8x2048xf32>
    tpu.vector_store %arg4[%c0_5, %c0_6], %5 {strides = array<i32>} : memref<8x2048xf32, #tpu.memory_space<vmem>>, vector<8x2048xf32>,
    %cst_7 = arith.constant dense<0.000000e+00> : vector<8xf32>
    %7 = vector.multi_reduction <add>, %5, %cst_7 [1] : vector<8x2048xf32> to vector<8xf32>
    %8 = vector.shape_cast %7 : vector<8xf32> to vector<8x1xf32>
    %9 = arith.mulf %5, %5 : vector<8x2048xf32>
    %cst_8 = arith.constant dense<0.000000e+00> : vector<8xf32>
    %10 = vector.multi_reduction <add>, %9, %cst_8 [1] : vector<8x2048xf32> to vector<8xf32>
    %11 = vector.shape_cast %10 : vector<8xf32> to vector<8x1xf32>
    %12 = tpu.iota {dimensions = array<i32: 1>} : vector<8x128xi32>
    %c0_i32 = arith.constant 0 : i32
    %13 = vector.broadcast %c0_i32 : i32 to vector<8x128xi32>
    %14 = arith.cmpi eq, %12, %13 : vector<8x128xi32>
    %c1_i32 = arith.constant 1 : i32
    %15 = vector.broadcast %c1_i32 : i32 to vector<8x128xi32>
    %16 = arith.cmpi eq, %12, %15 : vector<8x128xi32>
    %cst_9 = arith.constant 0.000000e+00 : f32
    %17 = vector.shape_cast %11 : vector<8x1xf32> to vector<8x1xf32>
    %18 = vector.broadcast %17 : vector<8x1xf32> to vector<8x128xf32>
    %19 = vector.broadcast %cst_9 : f32 to vector<8x128xf32>
    %20 = arith.select %16, %18, %19 : vector<8x128xi1>, vector<8x128xf32>
    %21 = vector.shape_cast %8 : vector<8x1xf32> to vector<8x1xf32>
    %22 = vector.broadcast %21 : vector<8x1xf32> to vector<8x128xf32>
    %23 = arith.select %14, %22, %20 : vector<8x128xi1>, vector<8x128xf32>
    %c0_10 = arith.constant 0 : index
    %c0_11 = arith.constant 0 : index
    %24 = vector.load %arg5[%c0_10, %c0_11] : memref<8x128xf32, #tpu.memory_space<vmem>>, vector<8x128xf32>
    tpu.vector_store %arg5[%c0_10, %c0_11], %23 {strides = array<i32>} : memref<8x128xf32, #tpu.memory_space<vmem>>, vector<8x128xf32>,
    return
  }
  func.func @transform_0(%arg0: i32) -> (i32, i32) {
    %c0_i32 = arith.constant 0 : i32
    %c0_i32_0 = arith.constant 0 : i32
    return %c0_i32, %arg0 : i32, i32
  }
  func.func @transform_1(%arg0: i32) -> (i32, i32) {
    %c0_i32 = arith.constant 0 : i32
    %c0_i32_0 = arith.constant 0 : i32
    %c0_i32_1 = arith.constant 0 : i32
    return %c0_i32, %c0_i32_0 : i32, i32
  }
  func.func @transform_2(%arg0: i32) -> (i32, i32) {
    %c0_i32 = arith.constant 0 : i32
    %c0_i32_0 = arith.constant 0 : i32
    %c0_i32_1 = arith.constant 0 : i32
    return %c0_i32, %c0_i32_0 : i32, i32
  }
  func.func @transform_3(%arg0: i32) -> (i32, i32) {
    %c0_i32 = arith.constant 0 : i32
    %c0_i32_0 = arith.constant 0 : i32
    return %c0_i32, %arg0 : i32, i32
  }
  func.func @transform_4(%arg0: i32) -> (i32, i32) {
    %c0_i32 = arith.constant 0 : i32
    %c0_i32_0 = arith.constant 0 : i32
    return %c0_i32, %arg0 : i32, i32
  }
}

module attributes {stable_mosaic.version = 11 : i64} {
  func.func @_conv_kernel(%arg0: i32, %arg1: memref<216x2048xbf16, #tpu.memory_space<vmem>>, %arg2: memref<8x216xbf16, #tpu.memory_space<vmem>>, %arg3: memref<8x1xf32, #tpu.memory_space<vmem>>, %arg4: memref<216x1xf32, #tpu.memory_space<vmem>>, %arg5: memref<216x1xf32, #tpu.memory_space<vmem>>, %arg6: memref<8x2048xf32, #tpu.memory_space<vmem>>, %arg7: memref<8x128xf32, #tpu.memory_space<vmem>>) attributes {dimension_semantics = [#tpu.dimension_semantics<parallel>], iteration_bounds = array<i64: 4>, scalar_prefetch = 0 : i64, scratch_operands = 0 : i64, tpu.core_type = #tpu.core_type<tc>, window_params = [{transform_indices = @transform_0, window_bounds = array<i64: 216, 2048>}, {pipeline_mode = #tpu.pipeline_mode<synchronous>, transform_indices = @transform_1, window_bounds = array<i64: 8, 216>}, {pipeline_mode = #tpu.pipeline_mode<synchronous>, transform_indices = @transform_2, window_bounds = array<i64: 8, 1>}, {pipeline_mode = #tpu.pipeline_mode<synchronous>, transform_indices = @transform_3, window_bounds = array<i64: 216, 1>}, {pipeline_mode = #tpu.pipeline_mode<synchronous>, transform_indices = @transform_4, window_bounds = array<i64: 216, 1>}, {transform_indices = @transform_5, window_bounds = array<i64: 8, 2048>}, {transform_indices = @transform_6, window_bounds = array<i64: 8, 128>}]} {
    %c0 = arith.constant 0 : index
    %c0_0 = arith.constant 0 : index
    %0 = vector.load %arg1[%c0, %c0_0] : memref<216x2048xbf16, #tpu.memory_space<vmem>>, vector<216x2048xbf16>
    %1 = arith.extf %0 : vector<216x2048xbf16> to vector<216x2048xf32>
    %c0_1 = arith.constant 0 : index
    %c0_2 = arith.constant 0 : index
    %2 = vector.load %arg4[%c0_1, %c0_2] : memref<216x1xf32, #tpu.memory_space<vmem>>, vector<216x1xf32>
    %3 = vector.broadcast %2 : vector<216x1xf32> to vector<216x2048xf32>
    %4 = arith.mulf %1, %3 : vector<216x2048xf32>
    %c0_3 = arith.constant 0 : index
    %c0_4 = arith.constant 0 : index
    %5 = vector.load %arg5[%c0_3, %c0_4] : memref<216x1xf32, #tpu.memory_space<vmem>>, vector<216x1xf32>
    %6 = vector.broadcast %5 : vector<216x1xf32> to vector<216x2048xf32>
    %7 = arith.addf %4, %6 : vector<216x2048xf32>
    %cst = arith.constant 0.000000e+00 : f32
    %8 = vector.broadcast %cst : f32 to vector<216x2048xf32>
    %9 = arith.maximumf %7, %8 : vector<216x2048xf32>
    %10 = arith.truncf %9 : vector<216x2048xf32> to vector<216x2048xbf16>
    %c0_5 = arith.constant 0 : index
    %c0_6 = arith.constant 0 : index
    %11 = vector.load %arg2[%c0_5, %c0_6] : memref<8x216xbf16, #tpu.memory_space<vmem>>, vector<8x216xbf16>
    %cst_7 = arith.constant dense<0.000000e+00> : vector<8x2048xf32>
    %12 = tpu.matmul %11, %10, %cst_7 {dimension_numbers = #tpu.dot_dimension_numbers<[1], [0], [0], [1], [0, 0, 1, 1], [], []>} : vector<8x216xbf16>, vector<216x2048xbf16>, vector<8x2048xf32> -> vector<8x2048xf32>
    %c0_8 = arith.constant 0 : index
    %c0_9 = arith.constant 0 : index
    %13 = vector.load %arg3[%c0_8, %c0_9] : memref<8x1xf32, #tpu.memory_space<vmem>>, vector<8x1xf32>
    %14 = vector.broadcast %13 : vector<8x1xf32> to vector<8x2048xf32>
    %15 = arith.addf %12, %14 : vector<8x2048xf32>
    %c0_10 = arith.constant 0 : index
    %c0_11 = arith.constant 0 : index
    %16 = vector.load %arg6[%c0_10, %c0_11] : memref<8x2048xf32, #tpu.memory_space<vmem>>, vector<8x2048xf32>
    tpu.vector_store %arg6[%c0_10, %c0_11], %15 {strides = array<i32>} : memref<8x2048xf32, #tpu.memory_space<vmem>>, vector<8x2048xf32>,
    %cst_12 = arith.constant dense<0.000000e+00> : vector<8xf32>
    %17 = vector.multi_reduction <add>, %15, %cst_12 [1] : vector<8x2048xf32> to vector<8xf32>
    %18 = vector.shape_cast %17 : vector<8xf32> to vector<8x1xf32>
    %19 = arith.mulf %15, %15 : vector<8x2048xf32>
    %cst_13 = arith.constant dense<0.000000e+00> : vector<8xf32>
    %20 = vector.multi_reduction <add>, %19, %cst_13 [1] : vector<8x2048xf32> to vector<8xf32>
    %21 = vector.shape_cast %20 : vector<8xf32> to vector<8x1xf32>
    %22 = tpu.iota {dimensions = array<i32: 1>} : vector<8x128xi32>
    %c0_i32 = arith.constant 0 : i32
    %23 = vector.broadcast %c0_i32 : i32 to vector<8x128xi32>
    %24 = arith.cmpi eq, %22, %23 : vector<8x128xi32>
    %c1_i32 = arith.constant 1 : i32
    %25 = vector.broadcast %c1_i32 : i32 to vector<8x128xi32>
    %26 = arith.cmpi eq, %22, %25 : vector<8x128xi32>
    %cst_14 = arith.constant 0.000000e+00 : f32
    %27 = vector.shape_cast %21 : vector<8x1xf32> to vector<8x1xf32>
    %28 = vector.broadcast %27 : vector<8x1xf32> to vector<8x128xf32>
    %29 = vector.broadcast %cst_14 : f32 to vector<8x128xf32>
    %30 = arith.select %26, %28, %29 : vector<8x128xi1>, vector<8x128xf32>
    %31 = vector.shape_cast %18 : vector<8x1xf32> to vector<8x1xf32>
    %32 = vector.broadcast %31 : vector<8x1xf32> to vector<8x128xf32>
    %33 = arith.select %24, %32, %30 : vector<8x128xi1>, vector<8x128xf32>
    %c0_15 = arith.constant 0 : index
    %c0_16 = arith.constant 0 : index
    %34 = vector.load %arg7[%c0_15, %c0_16] : memref<8x128xf32, #tpu.memory_space<vmem>>, vector<8x128xf32>
    tpu.vector_store %arg7[%c0_15, %c0_16], %33 {strides = array<i32>} : memref<8x128xf32, #tpu.memory_space<vmem>>, vector<8x128xf32>,
    return
  }
  func.func @transform_0(%arg0: i32) -> (i32, i32) {
    %c0_i32 = arith.constant 0 : i32
    %c0_i32_0 = arith.constant 0 : i32
    return %c0_i32, %arg0 : i32, i32
  }
  func.func @transform_1(%arg0: i32) -> (i32, i32) {
    %c0_i32 = arith.constant 0 : i32
    %c0_i32_0 = arith.constant 0 : i32
    %c0_i32_1 = arith.constant 0 : i32
    return %c0_i32, %c0_i32_0 : i32, i32
  }
  func.func @transform_2(%arg0: i32) -> (i32, i32) {
    %c0_i32 = arith.constant 0 : i32
    %c0_i32_0 = arith.constant 0 : i32
    %c0_i32_1 = arith.constant 0 : i32
    return %c0_i32, %c0_i32_0 : i32, i32
  }
  func.func @transform_3(%arg0: i32) -> (i32, i32) {
    %c0_i32 = arith.constant 0 : i32
    %c0_i32_0 = arith.constant 0 : i32
    %c0_i32_1 = arith.constant 0 : i32
    return %c0_i32, %c0_i32_0 : i32, i32
  }
  func.func @transform_4(%arg0: i32) -> (i32, i32) {
    %c0_i32 = arith.constant 0 : i32
    %c0_i32_0 = arith.constant 0 : i32
    %c0_i32_1 = arith.constant 0 : i32
    return %c0_i32, %c0_i32_0 : i32, i32
  }
  func.func @transform_5(%arg0: i32) -> (i32, i32) {
    %c0_i32 = arith.constant 0 : i32
    %c0_i32_0 = arith.constant 0 : i32
    return %c0_i32, %arg0 : i32, i32
  }
  func.func @transform_6(%arg0: i32) -> (i32, i32) {
    %c0_i32 = arith.constant 0 : i32
    %c0_i32_0 = arith.constant 0 : i32
    return %c0_i32, %arg0 : i32, i32
  }
}

module attributes {stable_mosaic.version = 11 : i64} {
  func.func @_bn_relu_kernel(%arg0: i32, %arg1: memref<8x2048xf32, #tpu.memory_space<vmem>>, %arg2: memref<8x1xf32, #tpu.memory_space<vmem>>, %arg3: memref<8x1xf32, #tpu.memory_space<vmem>>, %arg4: memref<8x2048xf32, #tpu.memory_space<vmem>>) attributes {dimension_semantics = [#tpu.dimension_semantics<parallel>], iteration_bounds = array<i64: 4>, scalar_prefetch = 0 : i64, scratch_operands = 0 : i64, tpu.core_type = #tpu.core_type<tc>, window_params = [{transform_indices = @transform_0, window_bounds = array<i64: 8, 2048>}, {pipeline_mode = #tpu.pipeline_mode<synchronous>, transform_indices = @transform_1, window_bounds = array<i64: 8, 1>}, {pipeline_mode = #tpu.pipeline_mode<synchronous>, transform_indices = @transform_2, window_bounds = array<i64: 8, 1>}, {transform_indices = @transform_3, window_bounds = array<i64: 8, 2048>}]} {
    %c0 = arith.constant 0 : index
    %c0_0 = arith.constant 0 : index
    %0 = vector.load %arg1[%c0, %c0_0] : memref<8x2048xf32, #tpu.memory_space<vmem>>, vector<8x2048xf32>
    %c0_1 = arith.constant 0 : index
    %c0_2 = arith.constant 0 : index
    %1 = vector.load %arg2[%c0_1, %c0_2] : memref<8x1xf32, #tpu.memory_space<vmem>>, vector<8x1xf32>
    %2 = vector.broadcast %1 : vector<8x1xf32> to vector<8x2048xf32>
    %3 = arith.mulf %0, %2 : vector<8x2048xf32>
    %c0_3 = arith.constant 0 : index
    %c0_4 = arith.constant 0 : index
    %4 = vector.load %arg3[%c0_3, %c0_4] : memref<8x1xf32, #tpu.memory_space<vmem>>, vector<8x1xf32>
    %5 = vector.broadcast %4 : vector<8x1xf32> to vector<8x2048xf32>
    %6 = arith.addf %3, %5 : vector<8x2048xf32>
    %cst = arith.constant 0.000000e+00 : f32
    %7 = vector.broadcast %cst : f32 to vector<8x2048xf32>
    %8 = arith.maximumf %6, %7 : vector<8x2048xf32>
    %c0_5 = arith.constant 0 : index
    %c0_6 = arith.constant 0 : index
    %9 = vector.load %arg4[%c0_5, %c0_6] : memref<8x2048xf32, #tpu.memory_space<vmem>>, vector<8x2048xf32>
    tpu.vector_store %arg4[%c0_5, %c0_6], %8 {strides = array<i32>} : memref<8x2048xf32, #tpu.memory_space<vmem>>, vector<8x2048xf32>,
    return
  }
  func.func @transform_0(%arg0: i32) -> (i32, i32) {
    %c0_i32 = arith.constant 0 : i32
    %c0_i32_0 = arith.constant 0 : i32
    return %c0_i32, %arg0 : i32, i32
  }
  func.func @transform_1(%arg0: i32) -> (i32, i32) {
    %c0_i32 = arith.constant 0 : i32
    %c0_i32_0 = arith.constant 0 : i32
    %c0_i32_1 = arith.constant 0 : i32
    return %c0_i32, %c0_i32_0 : i32, i32
  }
  func.func @transform_2(%arg0: i32) -> (i32, i32) {
    %c0_i32 = arith.constant 0 : i32
    %c0_i32_0 = arith.constant 0 : i32
    %c0_i32_1 = arith.constant 0 : i32
    return %c0_i32, %c0_i32_0 : i32, i32
  }
  func.func @transform_3(%arg0: i32) -> (i32, i32) {
    %c0_i32 = arith.constant 0 : i32
    %c0_i32_0 = arith.constant 0 : i32
    return %c0_i32, %arg0 : i32, i32
  }
}

</mosaic_0001>

<llo_original>
// kernel: double_conv_forward.3
$region0: #{double_conv_forward.3}
  #allocation0 [shape = 'u32[]', space=smem, size = 0x4, offset = 0x4, fixed_abs, tag = 'smem constant byte address 0x4 - core index']
  #allocation1 [shape = 'u32[144,128]{1,0:T(1,128)}', space=vmem, size = 0x12000, scoped, tag = 'internal scratch']
  %s0 = inlined_call_operand.vmem [shape: bf16[108,8192], index: 0, kind: input, shape index: {}]
  %s1 = inlined_call_operand.vmem [shape: bf16[8,108], index: 1, kind: input, shape index: {}]
  %s2 = inlined_call_operand.vmem [shape: f32[8,1], index: 2, kind: input, shape index: {}]
  %s3 = inlined_call_operand.vmem [shape: f32[8,8192], index: 3, kind: output, shape index: {0}]
  %s4 = inlined_call_operand.vmem [shape: f32[8,512], index: 4, kind: output, shape index: {1}]
  %5 = xla_tuple %s3, %s4
  %s6 = sld [smem:[#allocation0]]
  $region76: #{double_conv_forward.3} parent=0
    _
  %s8 = ssub.s32 1, %s6
  %s9 = scalar_select 0, %s8, %s6
  $region1: #{double_conv_forward.3} parent=0
    #allocation2 [shape = 'u8[917504]{0}', space=vmem, size = 0xe0000, scoped, tag = 'input window, operand 0']
    loop: start=0, step=1, limit=6
    $region2: #{double_conv_forward.3} parent=1 // loop_pre_header
      _
    $region3: #{double_conv_forward.3} parent=1 // loop_header
      %s11 = sphi 0, %s15
      %p12 = scmp.ge.s32.totalorder %s11, 6
      %s21 = sphi 0, %s23
      %s24 = sphi 0, %s21
      %s25 = sphi 0, %s24
      %s41 = sphi 0, %s25
      %s45 = sphi 0, %s45
      %s47 = sphi 0, %s45
      %s48 = sphi 0, %s47
      %s62 = sphi 0, %s48
      %s66 = sphi 0, %s66
      %s68 = sphi 0, %s66
      %s69 = sphi 0, %s68
      %s83 = sphi 0, %s69
      %s89 = sphi 0, %s91
      %s92 = sphi 0, %s89
      %s93 = sphi 0, %s92
      %s109 = sphi 0, %s93
      %s115 = sphi 0, %s117
      %s118 = sphi 0, %s115
      %s119 = sphi 0, %s118
      %s135 = sphi 0, %s119
    $region4: #{double_conv_forward.3} parent=1 // loop_header_branch
      %14 = sbr.rel (%p12) target = $region8
    $region5: #{double_conv_forward.3} parent=1 // loop_body
      %s16 = ssub.s32 %s11, 1
      %s17 = ssub.s32 %s11, 2
      %s18 = sadd.s32 %s11, 1
      %s19 = ssub.s32 %s11, %s18
      %p20 = scmp.eq.s32.totalorder %s19, 0
      %s22 = sadd.s32 %s21, 1
      %s23 = scalar_select %p20, %s21, %s22
      %p26 = pneg %p20
      %p27 = scmp.eq.s32.totalorder %s11, 3
      %p28 = por %p26, %p27
      %p29 = scmp.ne.s32.totalorder %s21, %s24
      %p30 = scmp.eq.s32.totalorder %s11, 0
      %p31 = por %p29, %p30
      %p32 = scmp.ne.s32.totalorder %s21, %s24
      %p33 = scmp.eq.s32.totalorder %s16, 3
      %p34 = por %p32, %p33
      %p35 = scmp.ne.s32.totalorder %s24, %s25
      %p36 = scmp.eq.s32.totalorder %s16, 0
      %p37 = por %p35, %p36
      %p38 = scmp.ne.s32.totalorder %s24, %s25
      %p39 = scmp.eq.s32.totalorder %s17, 3
      %p40 = por %p38, %p39
      %p42 = scmp.ne.s32.totalorder %s25, %s41
      %p43 = scmp.eq.s32.totalorder %s17, 0
      %p44 = por %p42, %p43
      %s46 = sadd.s32 %s45, 1
      %p49 = scmp.eq.s32.totalorder %s11, 3
      %p50 = scmp.ne.s32.totalorder %s45, %s47
      %p51 = scmp.eq.s32.totalorder %s11, 0
      %p52 = por %p50, %p51
      %p53 = scmp.ne.s32.totalorder %s45, %s47
      %p54 = scmp.eq.s32.totalorder %s16, 3
      %p55 = por %p53, %p54
      %p56 = scmp.ne.s32.totalorder %s47, %s48
      %p57 = scmp.eq.s32.totalorder %s16, 0
      %p58 = por %p56, %p57
      %p59 = scmp.ne.s32.totalorder %s47, %s48
      %p60 = scmp.eq.s32.totalorder %s17, 3
      %p61 = por %p59, %p60
      %p63 = scmp.ne.s32.totalorder %s48, %s62
      %p64 = scmp.eq.s32.totalorder %s17, 0
      %p65 = por %p63, %p64
      %s67 = sadd.s32 %s66, 1
      %p70 = scmp.eq.s32.totalorder %s11, 3
      %p71 = scmp.ne.s32.totalorder %s66, %s68
      %p72 = scmp.eq.s32.totalorder %s11, 0
      %p73 = por %p71, %p72
      %p74 = scmp.ne.s32.totalorder %s66, %s68
      %p75 = scmp.eq.s32.totalorder %s16, 3
      %p76 = por %p74, %p75
      %p77 = scmp.ne.s32.totalorder %s68, %s69
      %p78 = scmp.eq.s32.totalorder %s16, 0
      %p79 = por %p77, %p78
      %p80 = scmp.ne.s32.totalorder %s68, %s69
      %p81 = scmp.eq.s32.totalorder %s17, 3
      %p82 = por %p80, %p81
      %p84 = scmp.ne.s32.totalorder %s69, %s83
      %p85 = scmp.eq.s32.totalorder %s17, 0
      %p86 = por %p84, %p85
      %s87 = ssub.s32 %s11, %s18
      %p88 = scmp.eq.s32.totalorder %s87, 0
      %s90 = sadd.s32 %s89, 1
      %s91 = scalar_select %p88, %s89, %s90
      %p94 = pneg %p88
      %p95 = scmp.eq.s32.totalorder %s11, 3
      %p96 = por %p94, %p95
      %p97 = scmp.ne.s32.totalorder %s89, %s92
      %p98 = scmp.eq.s32.totalorder %s11, 0
      %p99 = por %p97, %p98
      %p100 = scmp.ne.s32.totalorder %s89, %s92
      %p101 = scmp.eq.s32.totalorder %s16, 3
      %p102 = por %p100, %p101
      %p103 = scmp.ne.s32.totalorder %s92, %s93
      %p104 = scmp.eq.s32.totalorder %s16, 0
      %p105 = por %p103, %p104
      %p106 = scmp.ne.s32.totalorder %s92, %s93
      %p107 = scmp.eq.s32.totalorder %s17, 3
      %p108 = por %p106, %p107
      %p110 = scmp.ne.s32.totalorder %s93, %s109
      %p111 = scmp.eq.s32.totalorder %s17, 0
      %p112 = por %p110, %p111
      %s113 = ssub.s32 %s11, %s18
      %p114 = scmp.eq.s32.totalorder %s113, 0
      %s116 = sadd.s32 %s115, 1
      %s117 = scalar_select %p114, %s115, %s116
      %p120 = pneg %p114
      %p121 = scmp.eq.s32.totalorder %s11, 3
      %p122 = por %p120, %p121
      %p123 = scmp.ne.s32.totalorder %s115, %s118
      %p124 = scmp.eq.s32.totalorder %s11, 0
      %p125 = por %p123, %p124
      %p126 = scmp.ne.s32.totalorder %s115, %s118
      %p127 = scmp.eq.s32.totalorder %s16, 3
      %p128 = por %p126, %p127
      %p129 = scmp.ne.s32.totalorder %s118, %s119
      %p130 = scmp.eq.s32.totalorder %s16, 0
      %p131 = por %p129, %p130
      %p132 = scmp.ne.s32.totalorder %s118, %s119
      %p133 = scmp.eq.s32.totalorder %s17, 3
      %p134 = por %p132, %p133
      %p136 = scmp.ne.s32.totalorder %s119, %s135
      %p137 = scmp.eq.s32.totalorder %s17, 0
      %p138 = por %p136, %p137
      %p139 = scmp.le.s32.totalorder 1, %s11
      %p140 = scmp.lt.s32.totalorder %s11, 5
      %p141 = pnand %p139, %p140
      %p142 = pneg %p141
      // Predicated region
      $region9: #{double_conv_forward.3} parent=5 // pred_check
        _
      $region10: #{double_conv_forward.3} parent=5 // pred_check_branch
        %144 = sbr.rel (%p141) target = $region12
      $region11: #{double_conv_forward.3} parent=5 // pred_region
        %s145 = ssub.s32 %s11, 1
        // Predicated region
        $region13: #{double_conv_forward.3} parent=11 // pred_check
          %p146 = pneg %p58
        $region14: #{double_conv_forward.3} parent=11 // pred_check_branch
          %148 = sbr.rel (%p146) target = $region16
        $region15: #{double_conv_forward.3} parent=11 // pred_region
          _
        $region16: #{double_conv_forward.3} parent=11 // pred_fallthru
          _
        // Predicated region
        $region17: #{double_conv_forward.3} parent=11 // pred_check
          %p149 = pneg %p79
        $region18: #{double_conv_forward.3} parent=11 // pred_check_branch
          %151 = sbr.rel (%p149) target = $region20
        $region19: #{double_conv_forward.3} parent=11 // pred_region
          _
        $region20: #{double_conv_forward.3} parent=11 // pred_fallthru
          _
      $region12: #{double_conv_forward.3} parent=5 // pred_fallthru
        _
      %p152 = scmp.lt.s32.totalorder %s11, 4
      // Predicated region
      $region21: #{double_conv_forward.3} parent=5 // pred_check
        %p153 = pneg %p152
      $region22: #{double_conv_forward.3} parent=5 // pred_check_branch
        %155 = sbr.rel (%p153) target = $region24
      $region23: #{double_conv_forward.3} parent=5 // pred_region
        // Predicated region
        $region25: #{double_conv_forward.3} parent=23 // pred_check
          %p156 = pneg %p31
        $region26: #{double_conv_forward.3} parent=23 // pred_check_branch
          %158 = sbr.rel (%p156) target = $region28
        $region27: #{double_conv_forward.3} parent=23 // pred_region
          %s159 = sand.u32 %s21, 1
          %s160 = sand.u32 %s21, 1
          %s161 = smul.addr %s160, 896
          %s162 = scalar_lea.vmem [#allocation2], %s161
          %s163 = smul.u32 16, %s11
          %s164 = smul.addr %s163, 4
          %s165 = scalar_lea.vmem %s0, %s164
          // Predicated region
          $region29: #{double_conv_forward.3} parent=27 // pred_check
            _
          $region30: #{double_conv_forward.3} parent=27 // pred_check_branch
            %167 = sbr.rel (0) target = $region32
          $region31: #{double_conv_forward.3} parent=27 // pred_region
            // Predicated region
            $region33: #{double_conv_forward.3} parent=31 // pred_check
              _
            $region34: #{double_conv_forward.3} parent=31 // pred_check_branch
              %169 = sbr.rel (0) target = $region36
            $region35: #{double_conv_forward.3} parent=31 // pred_region
              loop: start=0, step=1, limit=1
              $region37: #{double_conv_forward.3} parent=35 // loop_pre_header
                _
              $region38: #{double_conv_forward.3} parent=35 // loop_header
                %s171 = sphi 0, %s175
                %p172 = scmp.ge.s32.totalorder %s171, 1
                %s176 = sphi %s165, %s165
                %s177 = sphi %s162, %s162
              $region39: #{double_conv_forward.3} parent=35 // loop_header_branch
                %174 = sbr.rel (%p172) target = $region43
              $region40: #{double_conv_forward.3} parent=35 // loop_body
                %v178 = vld [vmem:[%s176] sm:$0xff]
                %179 = vst [vmem:[%s177] sm:$0xff] %v178
                %v180 = vld [vmem:[%s176 + $0x8] sm:$0xff]
                %181 = vst [vmem:[%s177 + $0x8] sm:$0xff] %v180
                %v182 = vld [vmem:[%s176 + $0x10] sm:$0xff]
                %183 = vst [vmem:[%s177 + $0x10] sm:$0xff] %v182
                %v184 = vld [vmem:[%s176 + $0x18] sm:$0xff]
                %185 = vst [vmem:[%s177 + $0x18] sm:$0xff] %v184
                %v186 = vld [vmem:[%s176 + $0x20] sm:$0xff]
                %187 = vst [vmem:[%s177 + $0x20] sm:$0xff] %v186
                %v188 = vld [vmem:[%s176 + $0x28] sm:$0xff]
                %189 = vst [vmem:[%s177 + $0x28] sm:$0xff] %v188
                %v190 = vld [vmem:[%s176 + $0x30] sm:$0xff]
                %191 = vst [vmem:[%s177 + $0x30] sm:$0xff] %v190
                %v192 = vld [vmem:[%s176 + $0x38] sm:$0xff]
                %193 = vst [vmem:[%s177 + $0x38] sm:$0xff] %v192
                %v194 = vld [vmem:[%s176 + $0x100] sm:$0xff]
                %195 = vst [vmem:[%s177 + $0x40] sm:$0xff] %v194
                %v196 = vld [vmem:[%s176 + $0x108] sm:$0xff]
                %197 = vst [vmem:[%s177 + $0x48] sm:$0xff] %v196
                %v198 = vld [vmem:[%s176 + $0x110] sm:$0xff]
                %199 = vst [vmem:[%s177 + $0x50] sm:$0xff] %v198
                %v200 = vld [vmem:[%s176 + $0x118] sm:$0xff]
                %201 = vst [vmem:[%s177 + $0x58] sm:$0xff] %v200
                %v202 = vld [vmem:[%s176 + $0x120] sm:$0xff]
                %203 = vst [vmem:[%s177 + $0x60] sm:$0xff] %v202
                %v204 = vld [vmem:[%s176 + $0x128] sm:$0xff]
                %205 = vst [vmem:[%s177 + $0x68] sm:$0xff] %v204
                %v206 = vld [vmem:[%s176 + $0x130] sm:$0xff]
                %207 = vst [vmem:[%s177 + $0x70] sm:$0xff] %v206
                %v208 = vld [vmem:[%s176 + $0x138] sm:$0xff]
                %209 = vst [vmem:[%s177 + $0x78] sm:$0xff] %v208
                %v210 = vld [vmem:[%s176 + $0x200] sm:$0xff]
                %211 = vst [vmem:[%s177 + $0x80] sm:$0xff] %v210
                %v212 = vld [vmem:[%s176 + $0x208] sm:$0xff]
                %213 = vst [vmem:[%s177 + $0x88] sm:$0xff] %v212
                %v214 = vld [vmem:[%s176 + $0x210] sm:$0xff]
                %215 = vst [vmem:[%s177 + $0x90] sm:$0xff] %v214
                %v216 = vld [vmem:[%s176 + $0x218] sm:$0xff]
                %217 = vst [vmem:[%s177 + $0x98] sm:$0xff] %v216
                %v218 = vld [vmem:[%s176 + $0x220] sm:$0xff]
                %219 = vst [vmem:[%s177 + $0xa0] sm:$0xff] %v218
                %v220 = vld [vmem:[%s176 + $0x228] sm:$0xff]
                %221 = vst [vmem:[%s177 + $0xa8] sm:$0xff] %v220
                %v222 = vld [vmem:[%s176 + $0x230] sm:$0xff]
                %223 = vst [vmem:[%s177 + $0xb0] sm:$0xff] %v222
                %v224 = vld [vmem:[%s176 + $0x238] sm:$0xff]
                %225 = vst [vmem:[%s177 + $0xb8] sm:$0xff] %v224
                %v226 = vld [vmem:[%s176 + $0x300] sm:$0xff]
                %227 = vst [vmem:[%s177 + $0xc0] sm:$0xff] %v226
                %v228 = vld [vmem:[%s176 + $0x308] sm:$0xff]
                %229 = vst [vmem:[%s177 + $0xc8] sm:$0xff] %v228
                %v230 = vld [vmem:[%s176 + $0x310] sm:$0xff]
                %231 = vst [vmem:[%s177 + $0xd0] sm:$0xff] %v230
                %v232 = vld [vmem:[%s176 + $0x318] sm:$0xff]
                %233 = vst [vmem:[%s177 + $0xd8] sm:$0xff] %v232
                %v234 = vld [vmem:[%s176 + $0x320] sm:$0xff]
                %235 = vst [vmem:[%s177 + $0xe0] sm:$0xff] %v234
                %v236 = vld [vmem:[%s176 + $0x328] sm:$0xff]
                %237 = vst [vmem:[%s177 + $0xe8] sm:$0xff] %v236
                %v238 = vld [vmem:[%s176 + $0x330] sm:$0xff]
                %239 = vst [vmem:[%s177 + $0xf0] sm:$0xff] %v238
                %v240 = vld [vmem:[%s176 + $0x338] sm:$0xff]
                %241 = vst [vmem:[%s177 + $0xf8] sm:$0xff] %v240
                %v242 = vld [vmem:[%s176 + $0x400] sm:$0xff]
                %243 = vst [vmem:[%s177 + $0x100] sm:$0xff] %v242
                %v244 = vld [vmem:[%s176 + $0x408] sm:$0xff]
                %245 = vst [vmem:[%s177 + $0x108] sm:$0xff] %v244
                %v246 = vld [vmem:[%s176 + $0x410] sm:$0xff]
                %247 = vst [vmem:[%s177 + $0x110] sm:$0xff] %v246
                %v248 = vld [vmem:[%s176 + $0x418] sm:$0xff]
                %249 = vst [vmem:[%s177 + $0x118] sm:$0xff] %v248
                %v250 = vld [vmem:[%s176 + $0x420] sm:$0xff]
                %251 = vst [vmem:[%s177 + $0x120] sm:$0xff] %v250
                %v252 = vld [vmem:[%s176 + $0x428] sm:$0xff]
                %253 = vst [vmem:[%s177 + $0x128] sm:$0xff] %v252
                %v254 = vld [vmem:[%s176 + $0x430] sm:$0xff]
                %255 = vst [vmem:[%s177 + $0x130] sm:$0xff] %v254
                %v256 = vld [vmem:[%s176 + $0x438] sm:$0xff]
                %257 = vst [vmem:[%s177 + $0x138] sm:$0xff] %v256
                %v258 = vld [vmem:[%s176 + $0x500] sm:$0xff]
                %259 = vst [vmem:[%s177 + $0x140] sm:$0xff] %v258
                %v260 = vld [vmem:[%s176 + $0x508] sm:$0xff]
                %261 = vst [vmem:[%s177 + $0x148] sm:$0xff] %v260
                %v262 = vld [vmem:[%s176 + $0x510] sm:$0xff]
                %263 = vst [vmem:[%s177 + $0x150] sm:$0xff] %v262
                %v264 = vld [vmem:[%s176 + $0x518] sm:$0xff]
                %265 = vst [vmem:[%s177 + $0x158] sm:$0xff] %v264
                %v266 = vld [vmem:[%s176 + $0x520] sm:$0xff]
                %267 = vst [vmem:[%s177 + $0x160] sm:$0xff] %v266
                %v268 = vld [vmem:[%s176 + $0x528] sm:$0xff]
                %269 = vst [vmem:[%s177 + $0x168] sm:$0xff] %v268
                %v270 = vld [vmem:[%s176 + $0x530] sm:$0xff]
                %271 = vst [vmem:[%s177 + $0x170] sm:$0xff] %v270
                %v272 = vld [vmem:[%s176 + $0x538] sm:$0xff]
                %273 = vst [vmem:[%s177 + $0x178] sm:$0xff] %v272
                %v274 = vld [vmem:[%s176 + $0x600] sm:$0xff]
                %275 = vst [vmem:[%s177 + $0x180] sm:$0xff] %v274
                %v276 = vld [vmem:[%s176 + $0x608] sm:$0xff]
                %277 = vst [vmem:[%s177 + $0x188] sm:$0xff] %v276
                %v278 = vld [vmem:[%s176 + $0x610] sm:$0xff]
                %279 = vst [vmem:[%s177 + $0x190] sm:$0xff] %v278
                %v280 = vld [vmem:[%s176 + $0x618] sm:$0xff]
                %281 = vst [vmem:[%s177 + $0x198] sm:$0xff] %v280
                %v282 = vld [vmem:[%s176 + $0x620] sm:$0xff]
                %283 = vst [vmem:[%s177 + $0x1a0] sm:$0xff] %v282
                %v284 = vld [vmem:[%s176 + $0x628] sm:$0xff]
                %285 = vst [vmem:[%s177 + $0x1a8] sm:$0xff] %v284
                %v286 = vld [vmem:[%s176 + $0x630] sm:$0xff]
                %287 = vst [vmem:[%s177 + $0x1b0] sm:$0xff] %v286
                %v288 = vld [vmem:[%s176 + $0x638] sm:$0xff]
                %289 = vst [vmem:[%s177 + $0x1b8] sm:$0xff] %v288
                %v290 = vld [vmem:[%s176 + $0x700] sm:$0xff]
                %291 = vst [vmem:[%s177 + $0x1c0] sm:$0xff] %v290
                %v292 = vld [vmem:[%s176 + $0x708] sm:$0xff]
                %293 = vst [vmem:[%s177 + $0x1c8] sm:$0xff] %v292
                %v294 = vld [vmem:[%s176 + $0x710] sm:$0xff]
                %295 = vst [vmem:[%s177 + $0x1d0] sm:$0xff] %v294
                %v296 = vld [vmem:[%s176 + $0x718] sm:$0xff]
                %297 = vst [vmem:[%s177 + $0x1d8] sm:$0xff] %v296
                %v298 = vld [vmem:[%s176 + $0x720] sm:$0xff]
                %299 = vst [vmem:[%s177 + $0x1e0] sm:$0xff] %v298
                %v300 = vld [vmem:[%s176 + $0x728] sm:$0xff]
                %301 = vst [vmem:[%s177 + $0x1e8] sm:$0xff] %v300
                %v302 = vld [vmem:[%s176 + $0x730] sm:$0xff]
                %303 = vst [vmem:[%s177 + $0x1f0] sm:$0xff] %v302
                %v304 = vld [vmem:[%s176 + $0x738] sm:$0xff]
                %305 = vst [vmem:[%s177 + $0x1f8] sm:$0xff] %v304
                %v306 = vld [vmem:[%s176 + $0x800] sm:$0xff]
                %307 = vst [vmem:[%s177 + $0x200] sm:$0xff] %v306
                %v308 = vld [vmem:[%s176 + $0x808] sm:$0xff]
                %309 = vst [vmem:[%s177 + $0x208] sm:$0xff] %v308
                %v310 = vld [vmem:[%s176 + $0x810] sm:$0xff]
                %311 = vst [vmem:[%s177 + $0x210] sm:$0xff] %v310
                %v312 = vld [vmem:[%s176 + $0x818] sm:$0xff]
                %313 = vst [vmem:[%s177 + $0x218] sm:$0xff] %v312
                %v314 = vld [vmem:[%s176 + $0x820] sm:$0xff]
                %315 = vst [vmem:[%s177 + $0x220] sm:$0xff] %v314
                %v316 = vld [vmem:[%s176 + $0x828] sm:$0xff]
                %317 = vst [vmem:[%s177 + $0x228] sm:$0xff] %v316
                %v318 = vld [vmem:[%s176 + $0x830] sm:$0xff]
                %319 = vst [vmem:[%s177 + $0x230] sm:$0xff] %v318
                %v320 = vld [vmem:[%s176 + $0x838] sm:$0xff]
                %321 = vst [vmem:[%s177 + $0x238] sm:$0xff] %v320
                %v322 = vld [vmem:[%s176 + $0x900] sm:$0xff]
                %323 = vst [vmem:[%s177 + $0x240] sm:$0xff] %v322
                %v324 = vld [vmem:[%s176 + $0x908] sm:$0xff]
                %325 = vst [vmem:[%s177 + $0x248] sm:$0xff] %v324
                %v326 = vld [vmem:[%s176 + $0x910] sm:$0xff]
                %327 = vst [vmem:[%s177 + $0x250] sm:$0xff] %v326
                %v328 = vld [vmem:[%s176 + $0x918] sm:$0xff]
                %329 = vst [vmem:[%s177 + $0x258] sm:$0xff] %v328
                %v330 = vld [vmem:[%s176 + $0x920] sm:$0xff]
                %331 = vst [vmem:[%s177 + $0x260] sm:$0xff] %v330
                %v332 = vld [vmem:[%s176 + $0x928] sm:$0xff]
                %333 = vst [vmem:[%s177 + $0x268] sm:$0xff] %v332
                %v334 = vld [vmem:[%s176 + $0x930] sm:$0xff]
                %335 = vst [vmem:[%s177 + $0x270] sm:$0xff] %v334
                %v336 = vld [vmem:[%s176 + $0x938] sm:$0xff]
                %337 = vst [vmem:[%s177 + $0x278] sm:$0xff] %v336
                %v338 = vld [vmem:[%s176 + $0xa00] sm:$0xff]
                %339 = vst [vmem:[%s177 + $0x280] sm:$0xff] %v338
                %v340 = vld [vmem:[%s176 + $0xa08] sm:$0xff]
                %341 = vst [vmem:[%s177 + $0x288] sm:$0xff] %v340
                %v342 = vld [vmem:[%s176 + $0xa10] sm:$0xff]
                %343 = vst [vmem:[%s177 + $0x290] sm:$0xff] %v342
                %v344 = vld [vmem:[%s176 + $0xa18] sm:$0xff]
                %345 = vst [vmem:[%s177 + $0x298] sm:$0xff] %v344
                %v346 = vld [vmem:[%s176 + $0xa20] sm:$0xff]
                %347 = vst [vmem:[%s177 + $0x2a0] sm:$0xff] %v346
                %v348 = vld [vmem:[%s176 + $0xa28] sm:$0xff]
                %349 = vst [vmem:[%s177 + $0x2a8] sm:$0xff] %v348
                %v350 = vld [vmem:[%s176 + $0xa30] sm:$0xff]
                %351 = vst [vmem:[%s177 + $0x2b0] sm:$0xff] %v350
                %v352 = vld [vmem:[%s176 + $0xa38] sm:$0xff]
                %353 = vst [vmem:[%s177 + $0x2b8] sm:$0xff] %v352
                %v354 = vld [vmem:[%s176 + $0xb00] sm:$0xff]
                %355 = vst [vmem:[%s177 + $0x2c0] sm:$0xff] %v354
                %v356 = vld [vmem:[%s176 + $0xb08] sm:$0xff]
                %357 = vst [vmem:[%s177 + $0x2c8] sm:$0xff] %v356
                %v358 = vld [vmem:[%s176 + $0xb10] sm:$0xff]
                %359 = vst [vmem:[%s177 + $0x2d0] sm:$0xff] %v358
                %v360 = vld [vmem:[%s176 + $0xb18] sm:$0xff]
                %361 = vst [vmem:[%s177 + $0x2d8] sm:$0xff] %v360
                %v362 = vld [vmem:[%s176 + $0xb20] sm:$0xff]
                %363 = vst [vmem:[%s177 + $0x2e0] sm:$0xff] %v362
                %v364 = vld [vmem:[%s176 + $0xb28] sm:$0xff]
                %365 = vst [vmem:[%s177 + $0x2e8] sm:$0xff] %v364
                %v366 = vld [vmem:[%s176 + $0xb30] sm:$0xff]
                %367 = vst [vmem:[%s177 + $0x2f0] sm:$0xff] %v366
                %v368 = vld [vmem:[%s176 + $0xb38] sm:$0xff]
                %369 = vst [vmem:[%s177 + $0x2f8] sm:$0xff] %v368
                %v370 = vld [vmem:[%s176 + $0xc00] sm:$0xff]
                %371 = vst [vmem:[%s177 + $0x300] sm:$0xff] %v370
                %v372 = vld [vmem:[%s176 + $0xc08] sm:$0xff]
                %373 = vst [vmem:[%s177 + $0x308] sm:$0xff] %v372
                %v374 = vld [vmem:[%s176 + $0xc10] sm:$0xff]
                %375 = vst [vmem:[%s177 + $0x310] sm:$0xff] %v374
                %v376 = vld [vmem:[%s176 + $0xc18] sm:$0xff]
                %377 = vst [vmem:[%s177 + $0x318] sm:$0xff] %v376
                %v378 = vld [vmem:[%s176 + $0xc20] sm:$0xff]
                %379 = vst [vmem:[%s177 + $0x320] sm:$0xff] %v378
                %v380 = vld [vmem:[%s176 + $0xc28] sm:$0xff]
                %381 = vst [vmem:[%s177 + $0x328] sm:$0xff] %v380
                %v382 = vld [vmem:[%s176 + $0xc30] sm:$0xff]
                %383 = vst [vmem:[%s177 + $0x330] sm:$0xff] %v382
                %v384 = vld [vmem:[%s176 + $0xc38] sm:$0xff]
                %385 = vst [vmem:[%s177 + $0x338] sm:$0xff] %v384
                %v386 = vld [vmem:[%s176 + $0xd00] sm:$0xff]
                %387 = vst [vmem:[%s177 + $0x340] sm:$0xff] %v386
                %v388 = vld [vmem:[%s176 + $0xd08] sm:$0xff]
                %389 = vst [vmem:[%s177 + $0x348] sm:$0xff] %v388
                %v390 = vld [vmem:[%s176 + $0xd10] sm:$0xff]
                %391 = vst [vmem:[%s177 + $0x350] sm:$0xff] %v390
                %v392 = vld [vmem:[%s176 + $0xd18] sm:$0xff]
                %393 = vst [vmem:[%s177 + $0x358] sm:$0xff] %v392
                %v394 = vld [vmem:[%s176 + $0xd20] sm:$0xff]
                %395 = vst [vmem:[%s177 + $0x360] sm:$0xff] %v394
                %v396 = vld [vmem:[%s176 + $0xd28] sm:$0xff]
                %397 = vst [vmem:[%s177 + $0x368] sm:$0xff] %v396
                %v398 = vld [vmem:[%s176 + $0xd30] sm:$0xff]
                %399 = vst [vmem:[%s177 + $0x370] sm:$0xff] %v398
                %v400 = vld [vmem:[%s176 + $0xd38] sm:$0xff]
                %401 = vst [vmem:[%s177 + $0x378] sm:$0xff] %v400
              $region41: #{double_conv_forward.3} parent=35 // loop_footer
                %s175 = sadd.s32 1, %s171
              $region42: #{double_conv_forward.3} parent=35 // loop_footer_branch
                %170 = sbr.rel target = $region38
              $region43: #{double_conv_forward.3} parent=35 // loop_exit
                _
            $region36: #{double_conv_forward.3} parent=31 // pred_fallthru
              _
            // Predicated region
            $region44: #{double_conv_forward.3} parent=31 // pred_check
              _
            $region45: #{double_conv_forward.3} parent=31 // pred_check_branch
              %403 = sbr.rel target = $region47
            $region46: #{double_conv_forward.3} parent=31 // pred_region
              _
            $region47: #{double_conv_forward.3} parent=31 // pred_fallthru
              _
          $region32: #{double_conv_forward.3} parent=27 // pred_fallthru
            _
          %404 = vnop
        $region28: #{double_conv_forward.3} parent=23 // pred_fallthru
          _
      $region24: #{double_conv_forward.3} parent=5 // pred_fallthru
        _
      %p405 = scmp.le.s32.totalorder 1, %s11
      %p406 = scmp.lt.s32.totalorder %s11, 5
      %p407 = pnand %p405, %p406
      %p408 = pneg %p407
      // Predicated region
      $region48: #{double_conv_forward.3} parent=5 // pred_check
        _
      $region49: #{double_conv_forward.3} parent=5 // pred_check_branch
        %410 = sbr.rel (%p407) target = $region51
      $region50: #{double_conv_forward.3} parent=5 // pred_region
        %s411 = ssub.s32 %s11, 1
        %s412 = sand.u32 %s24, 1
        %s413 = sand.u32 %s24, 1
        %s414 = smul.addr %s413, 896
        %s415 = scalar_lea.vmem [#allocation2], %s414
        // Predicated region
        $region52: #{double_conv_forward.3} parent=50 // pred_check
          %p416 = pneg %p37
        $region53: #{double_conv_forward.3} parent=50 // pred_check_branch
          %418 = sbr.rel (%p416) target = $region55
        $region54: #{double_conv_forward.3} parent=50 // pred_region
          _
        $region55: #{double_conv_forward.3} parent=50 // pred_fallthru
          _
        %s419 = sand.u32 %s24, 1
        %s420 = sand.u32 %s24, 1
        %s421 = smul.addr %s420, 896
        %s422 = scalar_lea.vmem [#allocation2], %s421
        %p423 = pneg %p37
        %p424 = pneg %p34
        %p425 = pneg %p58
        %p426 = pneg %p55
        %p427 = pneg %p79
        %p428 = pneg %p76
        %p429 = pneg %p105
        %p430 = pneg %p102
        %s431 = smul.u32 16, %s16
        %p432 = scmp.lt.s32.totalorder %s431, 63
        %s433 = scalar_select %p432, %s431, 63
        %s434 = smul.addr %s433, 8
        %s435 = scalar_lea.vmem %s3, %s434
        %p436 = pneg %p131
        %p437 = pneg %p128
        %p438 = scmp.lt.s32.totalorder %s16, 3
        %s439 = scalar_select %p438, %s16, 3
        %s440 = smul.addr %s439, 8
        %s441 = scalar_lea.vmem %s4, %s440
        %s442 = smul.u32 16, %s16
        %s443 = smul.u32 16, %s16
        %p444 = scmp.lt.s32.totalorder %s443, 63
        %s445 = scalar_select %p444, %s443, 63
        %s446 = smul.addr %s445, 8
        %s447 = scalar_lea.vmem %s3, %s446
        %s448 = smul.u32 16, %s16
        %p449 = scmp.lt.s32.totalorder %s16, 3
        %s450 = scalar_select %p449, %s16, 3
        %s451 = smul.addr %s450, 8
        %s452 = scalar_lea.vmem %s4, %s451
        %v454 = vld [vmem:[%s415] sm:$0xff]
        %v455 = vld [vmem:[%s415 + $0x8] sm:$0xff]
        %v456 = vld [vmem:[%s415 + $0x10] sm:$0xff]
        %v457 = vld [vmem:[%s415 + $0x18] sm:$0xff]
        %v458 = vld [vmem:[%s415 + $0x20] sm:$0xff]
        %v459 = vld [vmem:[%s415 + $0x28] sm:$0xff]
        %v460 = vld [vmem:[%s415 + $0x30] sm:$0xff]
        %v461 = vld [vmem:[%s415 + $0x38] sm:$0xff]
        %v462 = vld [vmem:[%s415 + $0x40] sm:$0xff]
        %v463 = vld [vmem:[%s415 + $0x48] sm:$0xff]
        %v464 = vld [vmem:[%s415 + $0x50] sm:$0xff]
        %v465 = vld [vmem:[%s415 + $0x58] sm:$0xff]
        %v466 = vld [vmem:[%s415 + $0x60] sm:$0xff]
        %v467 = vld [vmem:[%s415 + $0x68] sm:$0xff]
        %v468 = vld [vmem:[%s415 + $0x70] sm:$0xff]
        %v469 = vld [vmem:[%s415 + $0x78] sm:$0xff]
        %v470 = vld [vmem:[%s415 + $0x80] sm:$0xff]
        %v471 = vld [vmem:[%s415 + $0x88] sm:$0xff]
        %v472 = vld [vmem:[%s415 + $0x90] sm:$0xff]
        %v473 = vld [vmem:[%s415 + $0x98] sm:$0xff]
        %v474 = vld [vmem:[%s415 + $0xa0] sm:$0xff]
        %v475 = vld [vmem:[%s415 + $0xa8] sm:$0xff]
        %v476 = vld [vmem:[%s415 + $0xb0] sm:$0xff]
        %v477 = vld [vmem:[%s415 + $0xb8] sm:$0xff]
        %v478 = vld [vmem:[%s415 + $0xc0] sm:$0xff]
        %v479 = vld [vmem:[%s415 + $0xc8] sm:$0xff]
        %v480 = vld [vmem:[%s415 + $0xd0] sm:$0xff]
        %v481 = vld [vmem:[%s415 + $0xd8] sm:$0xff]
        %v482 = vld [vmem:[%s415 + $0xe0] sm:$0xff]
        %v483 = vld [vmem:[%s415 + $0xe8] sm:$0xff]
        %v484 = vld [vmem:[%s415 + $0xf0] sm:$0xff]
        %v485 = vld [vmem:[%s415 + $0xf8] sm:$0xff]
        %v486 = vld [vmem:[%s415 + $0x100] sm:$0xff]
        %v487 = vld [vmem:[%s415 + $0x108] sm:$0xff]
        %v488 = vld [vmem:[%s415 + $0x110] sm:$0xff]
        %v489 = vld [vmem:[%s415 + $0x118] sm:$0xff]
        %v490 = vld [vmem:[%s415 + $0x120] sm:$0xff]
        %v491 = vld [vmem:[%s415 + $0x128] sm:$0xff]
        %v492 = vld [vmem:[%s415 + $0x130] sm:$0xff]
        %v493 = vld [vmem:[%s415 + $0x138] sm:$0xff]
        %v494 = vld [vmem:[%s415 + $0x140] sm:$0xff]
        %v495 = vld [vmem:[%s415 + $0x148] sm:$0xff]
        %v496 = vld [vmem:[%s415 + $0x150] sm:$0xff]
        %v497 = vld [vmem:[%s415 + $0x158] sm:$0xff]
        %v498 = vld [vmem:[%s415 + $0x160] sm:$0xff]
        %v499 = vld [vmem:[%s415 + $0x168] sm:$0xff]
        %v500 = vld [vmem:[%s415 + $0x170] sm:$0xff]
        %v501 = vld [vmem:[%s415 + $0x178] sm:$0xff]
        %v502 = vld [vmem:[%s415 + $0x180] sm:$0xff]
        %v503 = vld [vmem:[%s415 + $0x188] sm:$0xff]
        %v504 = vld [vmem:[%s415 + $0x190] sm:$0xff]
        %v505 = vld [vmem:[%s415 + $0x198] sm:$0xff]
        %v506 = vld [vmem:[%s415 + $0x1a0] sm:$0xff]
        %v507 = vld [vmem:[%s415 + $0x1a8] sm:$0xff]
        %v508 = vld [vmem:[%s415 + $0x1b0] sm:$0xff]
        %v509 = vld [vmem:[%s415 + $0x1b8] sm:$0xff]
        %v510 = vld [vmem:[%s415 + $0x1c0] sm:$0xff]
        %v511 = vld [vmem:[%s415 + $0x1c8] sm:$0xff]
        %v512 = vld [vmem:[%s415 + $0x1d0] sm:$0xff]
        %v513 = vld [vmem:[%s415 + $0x1d8] sm:$0xff]
        %v514 = vld [vmem:[%s415 + $0x1e0] sm:$0xff]
        %v515 = vld [vmem:[%s415 + $0x1e8] sm:$0xff]
        %v516 = vld [vmem:[%s415 + $0x1f0] sm:$0xff]
        %v517 = vld [vmem:[%s415 + $0x1f8] sm:$0xff]
        %v518 = vld [vmem:[%s415 + $0x200] sm:$0xff]
        %v519 = vld [vmem:[%s415 + $0x208] sm:$0xff]
        %v520 = vld [vmem:[%s415 + $0x210] sm:$0xff]
        %v521 = vld [vmem:[%s415 + $0x218] sm:$0xff]
        %v522 = vld [vmem:[%s415 + $0x220] sm:$0xff]
        %v523 = vld [vmem:[%s415 + $0x228] sm:$0xff]
        %v524 = vld [vmem:[%s415 + $0x230] sm:$0xff]
        %v525 = vld [vmem:[%s415 + $0x238] sm:$0xff]
        %v526 = vld [vmem:[%s415 + $0x240] sm:$0xff]
        %v527 = vld [vmem:[%s415 + $0x248] sm:$0xff]
        %v528 = vld [vmem:[%s415 + $0x250] sm:$0xff]
        %v529 = vld [vmem:[%s415 + $0x258] sm:$0xff]
        %v530 = vld [vmem:[%s415 + $0x260] sm:$0xff]
        %v531 = vld [vmem:[%s415 + $0x268] sm:$0xff]
        %v532 = vld [vmem:[%s415 + $0x270] sm:$0xff]
        %v533 = vld [vmem:[%s415 + $0x278] sm:$0xff]
        %v534 = vld [vmem:[%s415 + $0x280] sm:$0xff]
        %v535 = vld [vmem:[%s415 + $0x288] sm:$0xff]
        %v536 = vld [vmem:[%s415 + $0x290] sm:$0xff]
        %v537 = vld [vmem:[%s415 + $0x298] sm:$0xff]
        %v538 = vld [vmem:[%s415 + $0x2a0] sm:$0xff]
        %v539 = vld [vmem:[%s415 + $0x2a8] sm:$0xff]
        %v540 = vld [vmem:[%s415 + $0x2b0] sm:$0xff]
        %v541 = vld [vmem:[%s415 + $0x2b8] sm:$0xff]
        %v542 = vld [vmem:[%s415 + $0x2c0] sm:$0xff]
        %v543 = vld [vmem:[%s415 + $0x2c8] sm:$0xff]
        %v544 = vld [vmem:[%s415 + $0x2d0] sm:$0xff]
        %v545 = vld [vmem:[%s415 + $0x2d8] sm:$0xff]
        %v546 = vld [vmem:[%s415 + $0x2e0] sm:$0xff]
        %v547 = vld [vmem:[%s415 + $0x2e8] sm:$0xff]
        %v548 = vld [vmem:[%s415 + $0x2f0] sm:$0xff]
        %v549 = vld [vmem:[%s415 + $0x2f8] sm:$0xff]
        %v550 = vld [vmem:[%s415 + $0x300] sm:$0xff]
        %v551 = vld [vmem:[%s415 + $0x308] sm:$0xff]
        %v552 = vld [vmem:[%s415 + $0x310] sm:$0xff]
        %v553 = vld [vmem:[%s415 + $0x318] sm:$0xff]
        %v554 = vld [vmem:[%s415 + $0x320] sm:$0xff]
        %v555 = vld [vmem:[%s415 + $0x328] sm:$0xff]
        %v556 = vld [vmem:[%s415 + $0x330] sm:$0xff]
        %v557 = vld [vmem:[%s415 + $0x338] sm:$0xff]
        %v558 = vld [vmem:[%s415 + $0x340] sm:$0x33]
        %v559 = vld [vmem:[%s415 + $0x348] sm:$0x33]
        %v560 = vld [vmem:[%s415 + $0x350] sm:$0x33]
        %v561 = vld [vmem:[%s415 + $0x358] sm:$0x33]
        %v562 = vld [vmem:[%s415 + $0x360] sm:$0x33]
        %v563 = vld [vmem:[%s415 + $0x368] sm:$0x33]
        %v564 = vld [vmem:[%s415 + $0x370] sm:$0x33]
        %v565 = vld [vmem:[%s415 + $0x378] sm:$0x33]
        %v566 = vld [vmem:[%s1] sm:$0xf]
        %v567 = vld [vmem:[%s2] sm:$0xff]
        %569 = vset.pattern.permute.xlu0 0
        %570 = vperm.xlu0 %569, %v567
        %v571 = vpop.permute.xlu0 %570
        %v685 = vunpack.c.l.b16 %v454
        %v686 = vunpack.c.h.b16 %v454
        %v687 = vunpack.c.l.b16 %v455
        %v688 = vunpack.c.h.b16 %v455
        %v689 = vunpack.c.l.b16 %v456
        %v690 = vunpack.c.h.b16 %v456
        %v691 = vunpack.c.l.b16 %v457
        %v692 = vunpack.c.h.b16 %v457
        %v693 = vunpack.c.l.b16 %v458
        %v694 = vunpack.c.h.b16 %v458
        %v695 = vunpack.c.l.b16 %v459
        %v696 = vunpack.c.h.b16 %v459
        %v697 = vunpack.c.l.b16 %v460
        %v698 = vunpack.c.h.b16 %v460
        %v699 = vunpack.c.l.b16 %v461
        %v700 = vunpack.c.h.b16 %v461
        %v701 = vunpack.c.l.b16 %v462
        %v702 = vunpack.c.h.b16 %v462
        %v703 = vunpack.c.l.b16 %v463
        %v704 = vunpack.c.h.b16 %v463
        %v705 = vunpack.c.l.b16 %v464
        %v706 = vunpack.c.h.b16 %v464
        %v707 = vunpack.c.l.b16 %v465
        %v708 = vunpack.c.h.b16 %v465
        %v709 = vunpack.c.l.b16 %v466
        %v710 = vunpack.c.h.b16 %v466
        %v711 = vunpack.c.l.b16 %v467
        %v712 = vunpack.c.h.b16 %v467
        %v713 = vunpack.c.l.b16 %v468
        %v714 = vunpack.c.h.b16 %v468
        %v715 = vunpack.c.l.b16 %v469
        %v716 = vunpack.c.h.b16 %v469
        %v717 = vunpack.c.l.b16 %v470
        %v718 = vunpack.c.h.b16 %v470
        %v719 = vunpack.c.l.b16 %v471
        %v720 = vunpack.c.h.b16 %v471
        %v721 = vunpack.c.l.b16 %v472
        %v722 = vunpack.c.h.b16 %v472
        %v723 = vunpack.c.l.b16 %v473
        %v724 = vunpack.c.h.b16 %v473
        %v725 = vunpack.c.l.b16 %v474
        %v726 = vunpack.c.h.b16 %v474
        %v727 = vunpack.c.l.b16 %v475
        %v728 = vunpack.c.h.b16 %v475
        %v729 = vunpack.c.l.b16 %v476
        %v730 = vunpack.c.h.b16 %v476
        %v731 = vunpack.c.l.b16 %v477
        %v732 = vunpack.c.h.b16 %v477
        %v733 = vunpack.c.l.b16 %v478
        %v734 = vunpack.c.h.b16 %v478
        %v735 = vunpack.c.l.b16 %v479
        %v736 = vunpack.c.h.b16 %v479
        %v737 = vunpack.c.l.b16 %v480
        %v738 = vunpack.c.h.b16 %v480
        %v739 = vunpack.c.l.b16 %v481
        %v740 = vunpack.c.h.b16 %v481
        %v741 = vunpack.c.l.b16 %v482
        %v742 = vunpack.c.h.b16 %v482
        %v743 = vunpack.c.l.b16 %v483
        %v744 = vunpack.c.h.b16 %v483
        %v745 = vunpack.c.l.b16 %v484
        %v746 = vunpack.c.h.b16 %v484
        %v747 = vunpack.c.l.b16 %v485
        %v748 = vunpack.c.h.b16 %v485
        %v749 = vunpack.c.l.b16 %v486
        %v750 = vunpack.c.h.b16 %v486
        %v751 = vunpack.c.l.b16 %v487
        %v752 = vunpack.c.h.b16 %v487
        %v753 = vunpack.c.l.b16 %v488
        %v754 = vunpack.c.h.b16 %v488
        %v755 = vunpack.c.l.b16 %v489
        %v756 = vunpack.c.h.b16 %v489
        %v757 = vunpack.c.l.b16 %v490
        %v758 = vunpack.c.h.b16 %v490
        %v759 = vunpack.c.l.b16 %v491
        %v760 = vunpack.c.h.b16 %v491
        %v761 = vunpack.c.l.b16 %v492
        %v762 = vunpack.c.h.b16 %v492
        %v763 = vunpack.c.l.b16 %v493
        %v764 = vunpack.c.h.b16 %v493
        %v765 = vunpack.c.l.b16 %v494
        %v766 = vunpack.c.h.b16 %v494
        %v767 = vunpack.c.l.b16 %v495
        %v768 = vunpack.c.h.b16 %v495
        %v769 = vunpack.c.l.b16 %v496
        %v770 = vunpack.c.h.b16 %v496
        %v771 = vunpack.c.l.b16 %v497
        %v772 = vunpack.c.h.b16 %v497
        %v773 = vunpack.c.l.b16 %v498
        %v774 = vunpack.c.h.b16 %v498
        %v775 = vunpack.c.l.b16 %v499
        %v776 = vunpack.c.h.b16 %v499
        %v777 = vunpack.c.l.b16 %v500
        %v778 = vunpack.c.h.b16 %v500
        %v779 = vunpack.c.l.b16 %v501
        %v780 = vunpack.c.h.b16 %v501
        %v781 = vunpack.c.l.b16 %v502
        %v782 = vunpack.c.h.b16 %v502
        %v783 = vunpack.c.l.b16 %v503
        %v784 = vunpack.c.h.b16 %v503
        %v785 = vunpack.c.l.b16 %v504
        %v786 = vunpack.c.h.b16 %v504
        %v787 = vunpack.c.l.b16 %v505
        %v788 = vunpack.c.h.b16 %v505
        %v789 = vunpack.c.l.b16 %v506
        %v790 = vunpack.c.h.b16 %v506
        %v791 = vunpack.c.l.b16 %v507
        %v792 = vunpack.c.h.b16 %v507
        %v793 = vunpack.c.l.b16 %v508
        %v794 = vunpack.c.h.b16 %v508
        %v795 = vunpack.c.l.b16 %v509
        %v796 = vunpack.c.h.b16 %v509
        %v797 = vunpack.c.l.b16 %v510
        %v798 = vunpack.c.h.b16 %v510
        %v799 = vunpack.c.l.b16 %v511
        %v800 = vunpack.c.h.b16 %v511
        %v801 = vunpack.c.l.b16 %v512
        %v802 = vunpack.c.h.b16 %v512
        %v803 = vunpack.c.l.b16 %v513
        %v804 = vunpack.c.h.b16 %v513
        %v805 = vunpack.c.l.b16 %v514
        %v806 = vunpack.c.h.b16 %v514
        %v807 = vunpack.c.l.b16 %v515
        %v808 = vunpack.c.h.b16 %v515
        %v809 = vunpack.c.l.b16 %v516
        %v810 = vunpack.c.h.b16 %v516
        %v811 = vunpack.c.l.b16 %v517
        %v812 = vunpack.c.h.b16 %v517
        %v813 = vunpack.c.l.b16 %v518
        %v814 = vunpack.c.h.b16 %v518
        %v815 = vunpack.c.l.b16 %v519
        %v816 = vunpack.c.h.b16 %v519
        %v817 = vunpack.c.l.b16 %v520
        %v818 = vunpack.c.h.b16 %v520
        %v819 = vunpack.c.l.b16 %v521
        %v820 = vunpack.c.h.b16 %v521
        %v821 = vunpack.c.l.b16 %v522
        %v822 = vunpack.c.h.b16 %v522
        %v823 = vunpack.c.l.b16 %v523
        %v824 = vunpack.c.h.b16 %v523
        %v825 = vunpack.c.l.b16 %v524
        %v826 = vunpack.c.h.b16 %v524
        %v827 = vunpack.c.l.b16 %v525
        %v828 = vunpack.c.h.b16 %v525
        %v829 = vunpack.c.l.b16 %v526
        %v830 = vunpack.c.h.b16 %v526
        %v831 = vunpack.c.l.b16 %v527
        %v832 = vunpack.c.h.b16 %v527
        %v833 = vunpack.c.l.b16 %v528
        %v834 = vunpack.c.h.b16 %v528
        %v835 = vunpack.c.l.b16 %v529
        %v836 = vunpack.c.h.b16 %v529
        %v837 = vunpack.c.l.b16 %v530
        %v838 = vunpack.c.h.b16 %v530
        %v839 = vunpack.c.l.b16 %v531
        %v840 = vunpack.c.h.b16 %v531
        %v841 = vunpack.c.l.b16 %v532
        %v842 = vunpack.c.h.b16 %v532
        %v843 = vunpack.c.l.b16 %v533
        %v844 = vunpack.c.h.b16 %v533
        %v845 = vunpack.c.l.b16 %v534
        %v846 = vunpack.c.h.b16 %v534
        %v847 = vunpack.c.l.b16 %v535
        %v848 = vunpack.c.h.b16 %v535
        %v849 = vunpack.c.l.b16 %v536
        %v850 = vunpack.c.h.b16 %v536
        %v851 = vunpack.c.l.b16 %v537
        %v852 = vunpack.c.h.b16 %v537
        %v853 = vunpack.c.l.b16 %v538
        %v854 = vunpack.c.h.b16 %v538
        %v855 = vunpack.c.l.b16 %v539
        %v856 = vunpack.c.h.b16 %v539
        %v857 = vunpack.c.l.b16 %v540
        %v858 = vunpack.c.h.b16 %v540
        %v859 = vunpack.c.l.b16 %v541
        %v860 = vunpack.c.h.b16 %v541
        %v861 = vunpack.c.l.b16 %v542
        %v862 = vunpack.c.h.b16 %v542
        %v863 = vunpack.c.l.b16 %v543
        %v864 = vunpack.c.h.b16 %v543
        %v865 = vunpack.c.l.b16 %v544
        %v866 = vunpack.c.h.b16 %v544
        %v867 = vunpack.c.l.b16 %v545
        %v868 = vunpack.c.h.b16 %v545
        %v869 = vunpack.c.l.b16 %v546
        %v870 = vunpack.c.h.b16 %v546
        %v871 = vunpack.c.l.b16 %v547
        %v872 = vunpack.c.h.b16 %v547
        %v873 = vunpack.c.l.b16 %v548
        %v874 = vunpack.c.h.b16 %v548
        %v875 = vunpack.c.l.b16 %v549
        %v876 = vunpack.c.h.b16 %v549
        %v877 = vunpack.c.l.b16 %v550
        %v878 = vunpack.c.h.b16 %v550
        %v879 = vunpack.c.l.b16 %v551
        %v880 = vunpack.c.h.b16 %v551
        %v881 = vunpack.c.l.b16 %v552
        %v882 = vunpack.c.h.b16 %v552
        %v883 = vunpack.c.l.b16 %v553
        %v884 = vunpack.c.h.b16 %v553
        %v885 = vunpack.c.l.b16 %v554
        %v886 = vunpack.c.h.b16 %v554
        %v887 = vunpack.c.l.b16 %v555
        %v888 = vunpack.c.h.b16 %v555
        %v889 = vunpack.c.l.b16 %v556
        %v890 = vunpack.c.h.b16 %v556
        %v891 = vunpack.c.l.b16 %v557
        %v892 = vunpack.c.h.b16 %v557
        %v893 = vunpack.c.l.b16 %v558
        %v894 = vunpack.c.h.b16 %v558
        %v895 = vunpack.c.l.b16 %v559
        %v896 = vunpack.c.h.b16 %v559
        %v897 = vunpack.c.l.b16 %v560
        %v898 = vunpack.c.h.b16 %v560
        %v899 = vunpack.c.l.b16 %v561
        %v900 = vunpack.c.h.b16 %v561
        %v901 = vunpack.c.l.b16 %v562
        %v902 = vunpack.c.h.b16 %v562
        %v903 = vunpack.c.l.b16 %v563
        %v904 = vunpack.c.h.b16 %v563
        %v905 = vunpack.c.l.b16 %v564
        %v906 = vunpack.c.h.b16 %v564
        %v907 = vunpack.c.l.b16 %v565
        %v908 = vunpack.c.h.b16 %v565
        %v909 = vpack.c.b16 %v701, %v685
        %v910 = vpack.c.b16 %v702, %v686
        %v911 = vpack.c.b16 %v703, %v687
        %v912 = vpack.c.b16 %v704, %v688
        %v913 = vpack.c.b16 %v705, %v689
        %v914 = vpack.c.b16 %v706, %v690
        %v915 = vpack.c.b16 %v707, %v691
        %v916 = vpack.c.b16 %v708, %v692
        %v917 = vpack.c.b16 %v709, %v693
        %v918 = vpack.c.b16 %v710, %v694
        %v919 = vpack.c.b16 %v711, %v695
        %v920 = vpack.c.b16 %v712, %v696
        %v921 = vpack.c.b16 %v713, %v697
        %v922 = vpack.c.b16 %v714, %v698
        %v923 = vpack.c.b16 %v715, %v699
        %v924 = vpack.c.b16 %v716, %v700
        %v925 = vpack.c.b16 %v733, %v717
        %v926 = vpack.c.b16 %v734, %v718
        %v927 = vpack.c.b16 %v735, %v719
        %v928 = vpack.c.b16 %v736, %v720
        %v929 = vpack.c.b16 %v737, %v721
        %v930 = vpack.c.b16 %v738, %v722
        %v931 = vpack.c.b16 %v739, %v723
        %v932 = vpack.c.b16 %v740, %v724
        %v933 = vpack.c.b16 %v741, %v725
        %v934 = vpack.c.b16 %v742, %v726
        %v935 = vpack.c.b16 %v743, %v727
        %v936 = vpack.c.b16 %v744, %v728
        %v937 = vpack.c.b16 %v745, %v729
        %v938 = vpack.c.b16 %v746, %v730
        %v939 = vpack.c.b16 %v747, %v731
        %v940 = vpack.c.b16 %v748, %v732
        %v941 = vpack.c.b16 %v765, %v749
        %v942 = vpack.c.b16 %v766, %v750
        %v943 = vpack.c.b16 %v767, %v751
        %v944 = vpack.c.b16 %v768, %v752
        %v945 = vpack.c.b16 %v769, %v753
        %v946 = vpack.c.b16 %v770, %v754
        %v947 = vpack.c.b16 %v771, %v755
        %v948 = vpack.c.b16 %v772, %v756
        %v949 = vpack.c.b16 %v773, %v757
        %v950 = vpack.c.b16 %v774, %v758
        %v951 = vpack.c.b16 %v775, %v759
        %v952 = vpack.c.b16 %v776, %v760
        %v953 = vpack.c.b16 %v777, %v761
        %v954 = vpack.c.b16 %v778, %v762
        %v955 = vpack.c.b16 %v779, %v763
        %v956 = vpack.c.b16 %v780, %v764
        %v957 = vpack.c.b16 %v797, %v781
        %v958 = vpack.c.b16 %v798, %v782
        %v959 = vpack.c.b16 %v799, %v783
        %v960 = vpack.c.b16 %v800, %v784
        %v961 = vpack.c.b16 %v801, %v785
        %v962 = vpack.c.b16 %v802, %v786
        %v963 = vpack.c.b16 %v803, %v787
        %v964 = vpack.c.b16 %v804, %v788
        %v965 = vpack.c.b16 %v805, %v789
        %v966 = vpack.c.b16 %v806, %v790
        %v967 = vpack.c.b16 %v807, %v791
        %v968 = vpack.c.b16 %v808, %v792
        %v969 = vpack.c.b16 %v809, %v793
        %v970 = vpack.c.b16 %v810, %v794
        %v971 = vpack.c.b16 %v811, %v795
        %v972 = vpack.c.b16 %v812, %v796
        %v973 = vpack.c.b16 %v829, %v813
        %v974 = vpack.c.b16 %v830, %v814
        %v975 = vpack.c.b16 %v831, %v815
        %v976 = vpack.c.b16 %v832, %v816
        %v977 = vpack.c.b16 %v833, %v817
        %v978 = vpack.c.b16 %v834, %v818
        %v979 = vpack.c.b16 %v835, %v819
        %v980 = vpack.c.b16 %v836, %v820
        %v981 = vpack.c.b16 %v837, %v821
        %v982 = vpack.c.b16 %v838, %v822
        %v983 = vpack.c.b16 %v839, %v823
        %v984 = vpack.c.b16 %v840, %v824
        %v985 = vpack.c.b16 %v841, %v825
        %v986 = vpack.c.b16 %v842, %v826
        %v987 = vpack.c.b16 %v843, %v827
        %v988 = vpack.c.b16 %v844, %v828
        %v989 = vpack.c.b16 %v861, %v845
        %v990 = vpack.c.b16 %v862, %v846
        %v991 = vpack.c.b16 %v863, %v847
        %v992 = vpack.c.b16 %v864, %v848
        %v993 = vpack.c.b16 %v865, %v849
        %v994 = vpack.c.b16 %v866, %v850
        %v995 = vpack.c.b16 %v867, %v851
        %v996 = vpack.c.b16 %v868, %v852
        %v997 = vpack.c.b16 %v869, %v853
        %v998 = vpack.c.b16 %v870, %v854
        %v999 = vpack.c.b16 %v871, %v855
        %v1000 = vpack.c.b16 %v872, %v856
        %v1001 = vpack.c.b16 %v873, %v857
        %v1002 = vpack.c.b16 %v874, %v858
        %v1003 = vpack.c.b16 %v875, %v859
        %v1004 = vpack.c.b16 %v876, %v860
        %v1005 = vpack.c.b16 %v893, %v877
        %v1006 = vpack.c.b16 %v894, %v878
        %v1007 = vpack.c.b16 %v895, %v879
        %v1008 = vpack.c.b16 %v896, %v880
        %v1009 = vpack.c.b16 %v897, %v881
        %v1010 = vpack.c.b16 %v898, %v882
        %v1011 = vpack.c.b16 %v899, %v883
        %v1012 = vpack.c.b16 %v900, %v884
        %v1013 = vpack.c.b16 %v901, %v885
        %v1014 = vpack.c.b16 %v902, %v886
        %v1015 = vpack.c.b16 %v903, %v887
        %v1016 = vpack.c.b16 %v904, %v888
        %v1017 = vpack.c.b16 %v905, %v889
        %v1018 = vpack.c.b16 %v906, %v890
        %v1019 = vpack.c.b16 %v907, %v891
        %v1020 = vpack.c.b16 %v908, %v892
        %vm1117 = vcmask 883712
        %v1119 = vsel %vm1117, %v566, 0
        %vm1121 = vcmask 1045504
        %v1123 = vsel %vm1121, %v1005, 0
        %v1126 = vsel %vm1121, %v1006, 0
        %v1129 = vsel %vm1121, %v1007, 0
        %v1132 = vsel %vm1121, %v1008, 0
        %v1135 = vsel %vm1121, %v1009, 0
        %v1138 = vsel %vm1121, %v1010, 0
        %v1141 = vsel %vm1121, %v1011, 0
        %v1144 = vsel %vm1121, %v1012, 0
        %v1147 = vsel %vm1121, %v1013, 0
        %v1150 = vsel %vm1121, %v1014, 0
        %v1153 = vsel %vm1121, %v1015, 0
        %v1156 = vsel %vm1121, %v1016, 0
        %v1159 = vsel %vm1121, %v1017, 0
        %v1162 = vsel %vm1121, %v1018, 0
        %v1165 = vsel %vm1121, %v1019, 0
        %v1168 = vsel %vm1121, %v1020, 0
        %1170 = vmatprep.subr.bf16.mxu0 %v910
        %1171 = vmatpush1.bf16.msra.mxu0 %v909
        %1172 = vmatprep.subr.bf16.mxu0 %v926
        %1173 = vmatpush1.bf16.msra.mxu0 %v925
        %1174 = vmatprep.subr.bf16.mxu0 %v942
        %1175 = vmatpush1.bf16.msra.mxu0 %v941
        %1176 = vmatprep.subr.bf16.mxu0 %v958
        %1177 = vmatpush1.bf16.msra.mxu0 %v957
        %1178 = vmatprep.subr.bf16.mxu0 %v974
        %1179 = vmatpush1.bf16.msra.mxu0 %v973
        %1180 = vmatprep.subr.bf16.mxu0 %v990
        %1181 = vmatpush1.bf16.msra.mxu0 %v989
        %1182 = vmatprep.subr.bf16.mxu0 %v1126
        %1183 = vmatpush1.bf16.msra.mxu0 %v1123
        %1184 = vmatprep.subr.bf16.mxu0 0
        %1185 = vmatpush1.bf16.msra.mxu0 0
        %1186 = vmatprep.subr.bf16.mxu0 0
        %1187 = vmatpush1.bf16.msra.mxu0 0
        %1188 = vmatprep.subr.bf16.mxu0 0
        %1189 = vmatpush1.bf16.msra.mxu0 0
        %1190 = vmatprep.subr.bf16.mxu0 0
        %1191 = vmatpush1.bf16.msra.mxu0 0
        %1192 = vmatprep.subr.bf16.mxu0 0
        %1193 = vmatpush1.bf16.msra.mxu0 0
        %1194 = vmatprep.subr.bf16.mxu0 0
        %1195 = vmatpush1.bf16.msra.mxu0 0
        %1196 = vmatprep.subr.bf16.mxu0 0
        %1197 = vmatpush1.bf16.msra.mxu0 0
        %1198 = vmatprep.subr.bf16.mxu0 0
        %1199 = vmatpush1.bf16.msra.mxu0 0
        %1200 = vmatprep.subr.bf16.mxu0 0
        %1201 = vmatpush1.bf16.msra.mxu0 0
        %1202 = vmatprep.mubr.bf16.mxu0 0
        %1203 = vmatmul.mubr.bf16.gmra.mrb[0].mxu0 %v1119
        %v1204 = vpop.f32.mrb[0].mxu0
        %v1205 = vadd.f32 %v571, %v1204
        %v1206 = vpop.f32.mrb[0].mxu0
        %v1207 = vadd.f32 %v571, %v1206
        %v1208 = vpop.f32.mrb[0].mxu0
        %v1209 = vpop.f32.mrb[0].mxu0
        %1210 = vdwg.mxu0
        %1211 = vmatprep.subr.bf16.mxu0 %v912
        %1212 = vmatpush1.bf16.msra.mxu0 %v911
        %1213 = vmatprep.subr.bf16.mxu0 %v928
        %1214 = vmatpush1.bf16.msra.mxu0 %v927
        %1215 = vmatprep.subr.bf16.mxu0 %v944
        %1216 = vmatpush1.bf16.msra.mxu0 %v943
        %1217 = vmatprep.subr.bf16.mxu0 %v960
        %1218 = vmatpush1.bf16.msra.mxu0 %v959
        %1219 = vmatprep.subr.bf16.mxu0 %v976
        %1220 = vmatpush1.bf16.msra.mxu0 %v975
        %1221 = vmatprep.subr.bf16.mxu0 %v992
        %1222 = vmatpush1.bf16.msra.mxu0 %v991
        %1223 = vmatprep.subr.bf16.mxu0 %v1132
        %1224 = vmatpush1.bf16.msra.mxu0 %v1129
        %1225 = vmatprep.subr.bf16.mxu0 0
        %1226 = vmatpush1.bf16.msra.mxu0 0
        %1227 = vmatprep.subr.bf16.mxu0 0
        %1228 = vmatpush1.bf16.msra.mxu0 0
        %1229 = vmatprep.subr.bf16.mxu0 0
        %1230 = vmatpush1.bf16.msra.mxu0 0
        %1231 = vmatprep.subr.bf16.mxu0 0
        %1232 = vmatpush1.bf16.msra.mxu0 0
        %1233 = vmatprep.subr.bf16.mxu0 0
        %1234 = vmatpush1.bf16.msra.mxu0 0
        %1235 = vmatprep.subr.bf16.mxu0 0
        %1236 = vmatpush1.bf16.msra.mxu0 0
        %1237 = vmatprep.subr.bf16.mxu0 0
        %1238 = vmatpush1.bf16.msra.mxu0 0
        %1239 = vmatprep.subr.bf16.mxu0 0
        %1240 = vmatpush1.bf16.msra.mxu0 0
        %1241 = vmatprep.subr.bf16.mxu0 0
        %1242 = vmatpush1.bf16.msra.mxu0 0
        %1243 = vmatprep.mubr.bf16.mxu0 0
        %1244 = vmatmul.mubr.bf16.gmra.mrb[0].mxu0 %v1119
        %v1245 = vpop.f32.mrb[0].mxu0
        %v1246 = vadd.f32 %v571, %v1245
        %v1247 = vpop.f32.mrb[0].mxu0
        %v1248 = vadd.f32 %v571, %v1247
        %v1249 = vpop.f32.mrb[0].mxu0
        %v1250 = vpop.f32.mrb[0].mxu0
        %1251 = vdwg.mxu0
        %1252 = vmatprep.subr.bf16.mxu0 %v914
        %1253 = vmatpush1.bf16.msra.mxu0 %v913
        %1254 = vmatprep.subr.bf16.mxu0 %v930
        %1255 = vmatpush1.bf16.msra.mxu0 %v929
        %1256 = vmatprep.subr.bf16.mxu0 %v946
        %1257 = vmatpush1.bf16.msra.mxu0 %v945
        %1258 = vmatprep.subr.bf16.mxu0 %v962
        %1259 = vmatpush1.bf16.msra.mxu0 %v961
        %1260 = vmatprep.subr.bf16.mxu0 %v978
        %1261 = vmatpush1.bf16.msra.mxu0 %v977
        %1262 = vmatprep.subr.bf16.mxu0 %v994
        %1263 = vmatpush1.bf16.msra.mxu0 %v993
        %1264 = vmatprep.subr.bf16.mxu0 %v1138
        %1265 = vmatpush1.bf16.msra.mxu0 %v1135
        %1266 = vmatprep.subr.bf16.mxu0 0
        %1267 = vmatpush1.bf16.msra.mxu0 0
        %1268 = vmatprep.subr.bf16.mxu0 0
        %1269 = vmatpush1.bf16.msra.mxu0 0
        %1270 = vmatprep.subr.bf16.mxu0 0
        %1271 = vmatpush1.bf16.msra.mxu0 0
        %1272 = vmatprep.subr.bf16.mxu0 0
        %1273 = vmatpush1.bf16.msra.mxu0 0
        %1274 = vmatprep.subr.bf16.mxu0 0
        %1275 = vmatpush1.bf16.msra.mxu0 0
        %1276 = vmatprep.subr.bf16.mxu0 0
        %1277 = vmatpush1.bf16.msra.mxu0 0
        %1278 = vmatprep.subr.bf16.mxu0 0
        %1279 = vmatpush1.bf16.msra.mxu0 0
        %1280 = vmatprep.subr.bf16.mxu0 0
        %1281 = vmatpush1.bf16.msra.mxu0 0
        %1282 = vmatprep.subr.bf16.mxu0 0
        %1283 = vmatpush1.bf16.msra.mxu0 0
        %1284 = vmatprep.mubr.bf16.mxu0 0
        %1285 = vmatmul.mubr.bf16.gmra.mrb[0].mxu0 %v1119
        %v1286 = vpop.f32.mrb[0].mxu0
        %v1287 = vadd.f32 %v571, %v1286
        %v1288 = vpop.f32.mrb[0].mxu0
        %v1289 = vadd.f32 %v571, %v1288
        %v1290 = vpop.f32.mrb[0].mxu0
        %v1291 = vpop.f32.mrb[0].mxu0
        %1292 = vdwg.mxu0
        %1293 = vmatprep.subr.bf16.mxu0 %v916
        %1294 = vmatpush1.bf16.msra.mxu0 %v915
        %1295 = vmatprep.subr.bf16.mxu0 %v932
        %1296 = vmatpush1.bf16.msra.mxu0 %v931
        %1297 = vmatprep.subr.bf16.mxu0 %v948
        %1298 = vmatpush1.bf16.msra.mxu0 %v947
        %1299 = vmatprep.subr.bf16.mxu0 %v964
        %1300 = vmatpush1.bf16.msra.mxu0 %v963
        %1301 = vmatprep.subr.bf16.mxu0 %v980
        %1302 = vmatpush1.bf16.msra.mxu0 %v979
        %1303 = vmatprep.subr.bf16.mxu0 %v996
        %1304 = vmatpush1.bf16.msra.mxu0 %v995
        %1305 = vmatprep.subr.bf16.mxu0 %v1144
        %1306 = vmatpush1.bf16.msra.mxu0 %v1141
        %1307 = vmatprep.subr.bf16.mxu0 0
        %1308 = vmatpush1.bf16.msra.mxu0 0
        %1309 = vmatprep.subr.bf16.mxu0 0
        %1310 = vmatpush1.bf16.msra.mxu0 0
        %1311 = vmatprep.subr.bf16.mxu0 0
        %1312 = vmatpush1.bf16.msra.mxu0 0
        %1313 = vmatprep.subr.bf16.mxu0 0
        %1314 = vmatpush1.bf16.msra.mxu0 0
        %1315 = vmatprep.subr.bf16.mxu0 0
        %1316 = vmatpush1.bf16.msra.mxu0 0
        %1317 = vmatprep.subr.bf16.mxu0 0
        %1318 = vmatpush1.bf16.msra.mxu0 0
        %1319 = vmatprep.subr.bf16.mxu0 0
        %1320 = vmatpush1.bf16.msra.mxu0 0
        %1321 = vmatprep.subr.bf16.mxu0 0
        %1322 = vmatpush1.bf16.msra.mxu0 0
        %1323 = vmatprep.subr.bf16.mxu0 0
        %1324 = vmatpush1.bf16.msra.mxu0 0
        %1325 = vmatprep.mubr.bf16.mxu0 0
        %1326 = vmatmul.mubr.bf16.gmra.mrb[0].mxu0 %v1119
        %v1327 = vpop.f32.mrb[0].mxu0
        %v1328 = vadd.f32 %v571, %v1327
        %v1329 = vpop.f32.mrb[0].mxu0
        %v1330 = vadd.f32 %v571, %v1329
        %v1331 = vpop.f32.mrb[0].mxu0
        %v1332 = vpop.f32.mrb[0].mxu0
        %1333 = vdwg.mxu0
        %1334 = vmatprep.subr.bf16.mxu0 %v918
        %1335 = vmatpush1.bf16.msra.mxu0 %v917
        %1336 = vmatprep.subr.bf16.mxu0 %v934
        %1337 = vmatpush1.bf16.msra.mxu0 %v933
        %1338 = vmatprep.subr.bf16.mxu0 %v950
        %1339 = vmatpush1.bf16.msra.mxu0 %v949
        %1340 = vmatprep.subr.bf16.mxu0 %v966
        %1341 = vmatpush1.bf16.msra.mxu0 %v965
        %1342 = vmatprep.subr.bf16.mxu0 %v982
        %1343 = vmatpush1.bf16.msra.mxu0 %v981
        %1344 = vmatprep.subr.bf16.mxu0 %v998
        %1345 = vmatpush1.bf16.msra.mxu0 %v997
        %1346 = vmatprep.subr.bf16.mxu0 %v1150
        %1347 = vmatpush1.bf16.msra.mxu0 %v1147
        %1348 = vmatprep.subr.bf16.mxu0 0
        %1349 = vmatpush1.bf16.msra.mxu0 0
        %1350 = vmatprep.subr.bf16.mxu0 0
        %1351 = vmatpush1.bf16.msra.mxu0 0
        %1352 = vmatprep.subr.bf16.mxu0 0
        %1353 = vmatpush1.bf16.msra.mxu0 0
        %1354 = vmatprep.subr.bf16.mxu0 0
        %1355 = vmatpush1.bf16.msra.mxu0 0
        %1356 = vmatprep.subr.bf16.mxu0 0
        %1357 = vmatpush1.bf16.msra.mxu0 0
        %1358 = vmatprep.subr.bf16.mxu0 0
        %1359 = vmatpush1.bf16.msra.mxu0 0
        %1360 = vmatprep.subr.bf16.mxu0 0
        %1361 = vmatpush1.bf16.msra.mxu0 0
        %1362 = vmatprep.subr.bf16.mxu0 0
        %1363 = vmatpush1.bf16.msra.mxu0 0
        %1364 = vmatprep.subr.bf16.mxu0 0
        %1365 = vmatpush1.bf16.msra.mxu0 0
        %1366 = vmatprep.mubr.bf16.mxu0 0
        %1367 = vmatmul.mubr.bf16.gmra.mrb[0].mxu0 %v1119
        %v1368 = vpop.f32.mrb[0].mxu0
        %v1369 = vadd.f32 %v571, %v1368
        %v1370 = vpop.f32.mrb[0].mxu0
        %v1371 = vadd.f32 %v571, %v1370
        %v1372 = vpop.f32.mrb[0].mxu0
        %v1373 = vpop.f32.mrb[0].mxu0
        %1374 = vdwg.mxu0
        %1375 = vmatprep.subr.bf16.mxu0 %v920
        %1376 = vmatpush1.bf16.msra.mxu0 %v919
        %1377 = vmatprep.subr.bf16.mxu0 %v936
        %1378 = vmatpush1.bf16.msra.mxu0 %v935
        %1379 = vmatprep.subr.bf16.mxu0 %v952
        %1380 = vmatpush1.bf16.msra.mxu0 %v951
        %1381 = vmatprep.subr.bf16.mxu0 %v968
        %1382 = vmatpush1.bf16.msra.mxu0 %v967
        %1383 = vmatprep.subr.bf16.mxu0 %v984
        %1384 = vmatpush1.bf16.msra.mxu0 %v983
        %1385 = vmatprep.subr.bf16.mxu0 %v1000
        %1386 = vmatpush1.bf16.msra.mxu0 %v999
        %1387 = vmatprep.subr.bf16.mxu0 %v1156
        %1388 = vmatpush1.bf16.msra.mxu0 %v1153
        %1389 = vmatprep.subr.bf16.mxu0 0
        %1390 = vmatpush1.bf16.msra.mxu0 0
        %1391 = vmatprep.subr.bf16.mxu0 0
        %1392 = vmatpush1.bf16.msra.mxu0 0
        %1393 = vmatprep.subr.bf16.mxu0 0
        %1394 = vmatpush1.bf16.msra.mxu0 0
        %1395 = vmatprep.subr.bf16.mxu0 0
        %1396 = vmatpush1.bf16.msra.mxu0 0
        %1397 = vmatprep.subr.bf16.mxu0 0
        %1398 = vmatpush1.bf16.msra.mxu0 0
        %1399 = vmatprep.subr.bf16.mxu0 0
        %1400 = vmatpush1.bf16.msra.mxu0 0
        %1401 = vmatprep.subr.bf16.mxu0 0
        %1402 = vmatpush1.bf16.msra.mxu0 0
        %1403 = vmatprep.subr.bf16.mxu0 0
        %1404 = vmatpush1.bf16.msra.mxu0 0
        %1405 = vmatprep.subr.bf16.mxu0 0
        %1406 = vmatpush1.bf16.msra.mxu0 0
        %1407 = vmatprep.mubr.bf16.mxu0 0
        %1408 = vmatmul.mubr.bf16.gmra.mrb[0].mxu0 %v1119
        %v1409 = vpop.f32.mrb[0].mxu0
        %v1410 = vadd.f32 %v571, %v1409
        %v1411 = vpop.f32.mrb[0].mxu0
        %v1412 = vadd.f32 %v571, %v1411
        %v1413 = vpop.f32.mrb[0].mxu0
        %v1414 = vpop.f32.mrb[0].mxu0
        %1415 = vdwg.mxu0
        %1416 = vmatprep.subr.bf16.mxu0 %v922
        %1417 = vmatpush1.bf16.msra.mxu0 %v921
        %1418 = vmatprep.subr.bf16.mxu0 %v938
        %1419 = vmatpush1.bf16.msra.mxu0 %v937
        %1420 = vmatprep.subr.bf16.mxu0 %v954
        %1421 = vmatpush1.bf16.msra.mxu0 %v953
        %1422 = vmatprep.subr.bf16.mxu0 %v970
        %1423 = vmatpush1.bf16.msra.mxu0 %v969
        %1424 = vmatprep.subr.bf16.mxu0 %v986
        %1425 = vmatpush1.bf16.msra.mxu0 %v985
        %1426 = vmatprep.subr.bf16.mxu0 %v1002
        %1427 = vmatpush1.bf16.msra.mxu0 %v1001
        %1428 = vmatprep.subr.bf16.mxu0 %v1162
        %1429 = vmatpush1.bf16.msra.mxu0 %v1159
        %1430 = vmatprep.subr.bf16.mxu0 0
        %1431 = vmatpush1.bf16.msra.mxu0 0
        %1432 = vmatprep.subr.bf16.mxu0 0
        %1433 = vmatpush1.bf16.msra.mxu0 0
        %1434 = vmatprep.subr.bf16.mxu0 0
        %1435 = vmatpush1.bf16.msra.mxu0 0
        %1436 = vmatprep.subr.bf16.mxu0 0
        %1437 = vmatpush1.bf16.msra.mxu0 0
        %1438 = vmatprep.subr.bf16.mxu0 0
        %1439 = vmatpush1.bf16.msra.mxu0 0
        %1440 = vmatprep.subr.bf16.mxu0 0
        %1441 = vmatpush1.bf16.msra.mxu0 0
        %1442 = vmatprep.subr.bf16.mxu0 0
        %1443 = vmatpush1.bf16.msra.mxu0 0
        %1444 = vmatprep.subr.bf16.mxu0 0
        %1445 = vmatpush1.bf16.msra.mxu0 0
        %1446 = vmatprep.subr.bf16.mxu0 0
        %1447 = vmatpush1.bf16.msra.mxu0 0
        %1448 = vmatprep.mubr.bf16.mxu0 0
        %1449 = vmatmul.mubr.bf16.gmra.mrb[0].mxu0 %v1119
        %v1450 = vpop.f32.mrb[0].mxu0
        %v1451 = vadd.f32 %v571, %v1450
        %v1452 = vpop.f32.mrb[0].mxu0
        %v1453 = vadd.f32 %v571, %v1452
        %v1454 = vpop.f32.mrb[0].mxu0
        %v1455 = vpop.f32.mrb[0].mxu0
        %1456 = vdwg.mxu0
        %1457 = vmatprep.subr.bf16.mxu0 %v924
        %1458 = vmatpush1.bf16.msra.mxu0 %v923
        %1459 = vmatprep.subr.bf16.mxu0 %v940
        %1460 = vmatpush1.bf16.msra.mxu0 %v939
        %1461 = vmatprep.subr.bf16.mxu0 %v956
        %1462 = vmatpush1.bf16.msra.mxu0 %v955
        %1463 = vmatprep.subr.bf16.mxu0 %v972
        %1464 = vmatpush1.bf16.msra.mxu0 %v971
        %1465 = vmatprep.subr.bf16.mxu0 %v988
        %1466 = vmatpush1.bf16.msra.mxu0 %v987
        %1467 = vmatprep.subr.bf16.mxu0 %v1004
        %1468 = vmatpush1.bf16.msra.mxu0 %v1003
        %1469 = vmatprep.subr.bf16.mxu0 %v1168
        %1470 = vmatpush1.bf16.msra.mxu0 %v1165
        %1471 = vmatprep.subr.bf16.mxu0 0
        %1472 = vmatpush1.bf16.msra.mxu0 0
        %1473 = vmatprep.subr.bf16.mxu0 0
        %1474 = vmatpush1.bf16.msra.mxu0 0
        %1475 = vmatprep.subr.bf16.mxu0 0
        %1476 = vmatpush1.bf16.msra.mxu0 0
        %1477 = vmatprep.subr.bf16.mxu0 0
        %1478 = vmatpush1.bf16.msra.mxu0 0
        %1479 = vmatprep.subr.bf16.mxu0 0
        %1480 = vmatpush1.bf16.msra.mxu0 0
        %1481 = vmatprep.subr.bf16.mxu0 0
        %1482 = vmatpush1.bf16.msra.mxu0 0
        %1483 = vmatprep.subr.bf16.mxu0 0
        %1484 = vmatpush1.bf16.msra.mxu0 0
        %1485 = vmatprep.subr.bf16.mxu0 0
        %1486 = vmatpush1.bf16.msra.mxu0 0
        %1487 = vmatprep.subr.bf16.mxu0 0
        %1488 = vmatpush1.bf16.msra.mxu0 0
        %1489 = vmatprep.mubr.bf16.mxu0 0
        %1490 = vmatmul.mubr.bf16.gmra.mrb[0].mxu0 %v1119
        %v1491 = vpop.f32.mrb[0].mxu0
        %v1492 = vadd.f32 %v571, %v1491
        %v1493 = vpop.f32.mrb[0].mxu0
        %v1494 = vadd.f32 %v571, %v1493
        %v1495 = vpop.f32.mrb[0].mxu0
        %v1496 = vpop.f32.mrb[0].mxu0
        %1497 = vdwg.mxu0
        %1498 = vst [vmem:[%s447] sm:$0xff] %v1205
        %1499 = vst [vmem:[%s447 + $0x8] sm:$0xff] %v1207
        %1500 = vst [vmem:[%s447 + $0x10] sm:$0xff] %v1246
        %1501 = vst [vmem:[%s447 + $0x18] sm:$0xff] %v1248
        %1502 = vst [vmem:[%s447 + $0x20] sm:$0xff] %v1287
        %1503 = vst [vmem:[%s447 + $0x28] sm:$0xff] %v1289
        %1504 = vst [vmem:[%s447 + $0x30] sm:$0xff] %v1328
        %1505 = vst [vmem:[%s447 + $0x38] sm:$0xff] %v1330
        %1506 = vst [vmem:[%s447 + $0x40] sm:$0xff] %v1369
        %1507 = vst [vmem:[%s447 + $0x48] sm:$0xff] %v1371
        %1508 = vst [vmem:[%s447 + $0x50] sm:$0xff] %v1410
        %1509 = vst [vmem:[%s447 + $0x58] sm:$0xff] %v1412
        %1510 = vst [vmem:[%s447 + $0x60] sm:$0xff] %v1451
        %1511 = vst [vmem:[%s447 + $0x68] sm:$0xff] %v1453
        %1512 = vst [vmem:[%s447 + $0x70] sm:$0xff] %v1492
        %1513 = vst [vmem:[%s447 + $0x78] sm:$0xff] %v1494
        %v1514 = vadd.f32 %v1205, %v1207
        %v1515 = vadd.f32 %v1514, %v1246
        %v1516 = vadd.f32 %v1515, %v1248
        %v1517 = vadd.f32 %v1516, %v1287
        %v1518 = vadd.f32 %v1517, %v1289
        %v1519 = vadd.f32 %v1518, %v1328
        %v1520 = vadd.f32 %v1519, %v1330
        %v1521 = vadd.f32 %v1520, %v1369
        %v1522 = vadd.f32 %v1521, %v1371
        %v1523 = vadd.f32 %v1522, %v1410
        %v1524 = vadd.f32 %v1523, %v1412
        %v1525 = vadd.f32 %v1524, %v1451
        %v1526 = vadd.f32 %v1525, %v1453
        %v1527 = vadd.f32 %v1526, %v1492
        %v1528 = vadd.f32 %v1527, %v1494
        %1529 = vadd.xlane.f32.xlu0 %v1528
        %v1530 = vpop.xlane.xlu0 %1529
        %v1531 = vmul.f32 %v1205, %v1205
        %v1532 = vmul.f32 %v1207, %v1207
        %v1533 = vmul.f32 %v1246, %v1246
        %v1534 = vmul.f32 %v1248, %v1248
        %v1535 = vmul.f32 %v1287, %v1287
        %v1536 = vmul.f32 %v1289, %v1289
        %v1537 = vmul.f32 %v1328, %v1328
        %v1538 = vmul.f32 %v1330, %v1330
        %v1539 = vmul.f32 %v1369, %v1369
        %v1540 = vmul.f32 %v1371, %v1371
        %v1541 = vmul.f32 %v1410, %v1410
        %v1542 = vmul.f32 %v1412, %v1412
        %v1543 = vmul.f32 %v1451, %v1451
        %v1544 = vmul.f32 %v1453, %v1453
        %v1545 = vmul.f32 %v1492, %v1492
        %v1546 = vmul.f32 %v1494, %v1494
        %v1547 = vadd.f32 %v1531, %v1532
        %v1548 = vadd.f32 %v1547, %v1533
        %v1549 = vadd.f32 %v1548, %v1534
        %v1550 = vadd.f32 %v1549, %v1535
        %v1551 = vadd.f32 %v1550, %v1536
        %v1552 = vadd.f32 %v1551, %v1537
        %v1553 = vadd.f32 %v1552, %v1538
        %v1554 = vadd.f32 %v1553, %v1539
        %v1555 = vadd.f32 %v1554, %v1540
        %v1556 = vadd.f32 %v1555, %v1541
        %v1557 = vadd.f32 %v1556, %v1542
        %v1558 = vadd.f32 %v1557, %v1543
        %v1559 = vadd.f32 %v1558, %v1544
        %v1560 = vadd.f32 %v1559, %v1545
        %v1561 = vadd.f32 %v1560, %v1546
        %1562 = vadd.xlane.f32.xlu0 %v1561
        %v1563 = vpop.xlane.xlu0 %1562
        %v1564 = vlaneseq
        %v1565 = vand.u32 %v1564, 127
        %vm1566 = vcmp.eq.s32.totalorder %v1565, 0
        %vm1567 = vcmp.eq.s32.totalorder %v1565, 1
        %v1568 = vsel %vm1567, %v1563, 0.0
        %v1569 = vsel %vm1566, %v1530, %v1568
        %1570 = vst [vmem:[%s452] sm:$0xff] %v1569
        %s1571 = smul.u32 16, %s16
        %p1572 = scmp.lt.s32.totalorder %s1571, 63
        %s1573 = scalar_select %p1572, %s1571, 63
        %s1574 = smul.addr %s1573, 8
        %s1575 = scalar_lea.vmem %s3, %s1574
        %p1576 = scmp.lt.s32.totalorder %s16, 3
        %s1577 = scalar_select %p1576, %s16, 3
        %s1578 = smul.addr %s1577, 8
        %s1579 = scalar_lea.vmem %s4, %s1578
        // Predicated region
        $region56: #{double_conv_forward.3} parent=50 // pred_check
          %p1580 = pneg %p102
        $region57: #{double_conv_forward.3} parent=50 // pred_check_branch
          %1582 = sbr.rel (%p1580) target = $region59
        $region58: #{double_conv_forward.3} parent=50 // pred_region
          %s1583 = smul.u32 16, %s16
        $region59: #{double_conv_forward.3} parent=50 // pred_fallthru
          _
        // Predicated region
        $region60: #{double_conv_forward.3} parent=50 // pred_check
          %p1584 = pneg %p128
        $region61: #{double_conv_forward.3} parent=50 // pred_check_branch
          %1586 = sbr.rel (%p1584) target = $region63
        $region62: #{double_conv_forward.3} parent=50 // pred_region
          _
        $region63: #{double_conv_forward.3} parent=50 // pred_fallthru
          _
      $region51: #{double_conv_forward.3} parent=5 // pred_fallthru
        _
      %p1587 = scmp.le.s32.totalorder 2, %s11
      // Predicated region
      $region64: #{double_conv_forward.3} parent=5 // pred_check
        %p1588 = pneg %p1587
      $region65: #{double_conv_forward.3} parent=5 // pred_check_branch
        %1590 = sbr.rel (%p1588) target = $region67
      $region66: #{double_conv_forward.3} parent=5 // pred_region
        %s1591 = ssub.s32 %s11, 2
        // Predicated region
        $region68: #{double_conv_forward.3} parent=66 // pred_check
          %p1592 = pneg %p108
        $region69: #{double_conv_forward.3} parent=66 // pred_check_branch
          %1594 = sbr.rel (%p1592) target = $region71
        $region70: #{double_conv_forward.3} parent=66 // pred_region
          %s1595 = smul.u32 16, %s17
          %p1596 = scmp.lt.s32.totalorder %s1595, 63
          %s1597 = scalar_select %p1596, %s1595, 63
          %s1598 = smul.addr %s1597, 8
          %s1599 = scalar_lea.vmem %s3, %s1598
        $region71: #{double_conv_forward.3} parent=66 // pred_fallthru
          _
        // Predicated region
        $region72: #{double_conv_forward.3} parent=66 // pred_check
          %p1600 = pneg %p134
        $region73: #{double_conv_forward.3} parent=66 // pred_check_branch
          %1602 = sbr.rel (%p1600) target = $region75
        $region74: #{double_conv_forward.3} parent=66 // pred_region
          %p1603 = scmp.lt.s32.totalorder %s17, 3
          %s1604 = scalar_select %p1603, %s17, 3
          %s1605 = smul.addr %s1604, 8
          %s1606 = scalar_lea.vmem %s4, %s1605
        $region75: #{double_conv_forward.3} parent=66 // pred_fallthru
          _
      $region67: #{double_conv_forward.3} parent=5 // pred_fallthru
        _
    $region6: #{double_conv_forward.3} parent=1 // loop_footer
      %s15 = sadd.s32 1, %s11
    $region7: #{double_conv_forward.3} parent=1 // loop_footer_branch
      %10 = sbr.rel target = $region3
    $region8: #{double_conv_forward.3} parent=1 // loop_exit
      _

// kernel: tile.13
$region0: #{tile.13}
  #allocation0 [shape = 's32[1]{0}', space=sflag, size = 0x4, scoped, tag = 'scoped memory for tile.13']
  %s0 = inlined_call_operand.vmem [shape: f32[8], index: 0, kind: input, shape index: {}]
  %s1 = inlined_call_operand.vmem [shape: f32[27,8], index: 1, kind: output, shape index: {}]
  // Predicated region
  $region2: #{tile.13} parent=0 // pred_check
    _
  $region3: #{tile.13} parent=0 // pred_check_branch
    %3 = sbr.rel (0) target = $region5
  $region4: #{tile.13} parent=0 // pred_region
    _
  $region5: #{tile.13} parent=0 // pred_fallthru
    _
  %v4 = vld [vmem:[%s0] ss:$0 sm:$0xff]
  %5 = vst [vmem:[%s1] sm:$0xff] %v4
  %s6 = scalar_lea.vmem %s1, 8
  %7 = vst [vmem:[%s6] sm:$0xff] %v4
  %s8 = scalar_lea.vmem %s1, 16
  %9 = vst [vmem:[%s8] sm:$0xff] %v4
  %s10 = scalar_lea.vmem %s1, 24
  %11 = vst [vmem:[%s10] sm:$0xff] %v4

// kernel: tile.0
$region0: #{tile.0}
  %s0 = inlined_call_operand.vmem [shape: f32[27,8], index: 0, kind: input, shape index: {}]
  %s1 = inlined_call_operand.vmem [shape: f32[216,1], index: 1, kind: output, shape index: {}]
  %v2 = vld [vmem:[%s0] sm:$0xff]
  %vm3 = vcmask 7168
  %4 = vst.msk [vmem:[%s1] ss:$8 sm:$0xf] %vm3, %v2
  %5 = vst.msk [vmem:[%s1] ss:$8 sm:$0xf0] %vm3, %v2
  %s6 = scalar_lea.vmem %s0, 8
  %v7 = vld [vmem:[%s6] sm:$0xff]
  %vm8 = vcmask 7168
  %s9 = scalar_lea.vmem %s1, 64
  %10 = vst.msk [vmem:[%s9] ss:$8 sm:$0xf] %vm8, %v7
  %s11 = scalar_lea.vmem %s1, 64
  %12 = vst.msk [vmem:[%s11] ss:$8 sm:$0xf0] %vm8, %v7
  %s13 = scalar_lea.vmem %s0, 16
  %v14 = vld [vmem:[%s13] sm:$0xff]
  %vm15 = vcmask 7168
  %s16 = scalar_lea.vmem %s1, 128
  %17 = vst.msk [vmem:[%s16] ss:$8 sm:$0xf] %vm15, %v14
  %s18 = scalar_lea.vmem %s1, 128
  %19 = vst.msk [vmem:[%s18] ss:$8 sm:$0xf0] %vm15, %v14
  %s20 = scalar_lea.vmem %s0, 24
  %v21 = vld [vmem:[%s20] sm:$0x7]
  %vm22 = vcmask 7168
  %s23 = scalar_lea.vmem %s1, 192
  %24 = vst.msk [vmem:[%s23] ss:$8 sm:$0x7] %vm22, %v21
  %v25 = vld [vmem:[%s0] sm:$0xff]
  %26 = vrot.lane.b32.xlu0 %v25, 127
  %v27 = vpop.permute.xlu0 %26
  %vm28 = vcmask 7168
  %s29 = scalar_lea.vmem %s1, 1
  %30 = vst.msk [vmem:[%s29] ss:$8 sm:$0xf] %vm28, %v27
  %s31 = scalar_lea.vmem %s1, 1
  %32 = vst.msk [vmem:[%s31] ss:$8 sm:$0xf0] %vm28, %v27
  %s33 = scalar_lea.vmem %s0, 8
  %v34 = vld [vmem:[%s33] sm:$0xff]
  %35 = vrot.lane.b32.xlu0 %v34, 127
  %v36 = vpop.permute.xlu0 %35
  %vm37 = vcmask 7168
  %s38 = scalar_lea.vmem %s1, 65
  %39 = vst.msk [vmem:[%s38] ss:$8 sm:$0xf] %vm37, %v36
  %s40 = scalar_lea.vmem %s1, 65
  %41 = vst.msk [vmem:[%s40] ss:$8 sm:$0xf0] %vm37, %v36
  %s42 = scalar_lea.vmem %s0, 16
  %v43 = vld [vmem:[%s42] sm:$0xff]
  %44 = vrot.lane.b32.xlu0 %v43, 127
  %v45 = vpop.permute.xlu0 %44
  %vm46 = vcmask 7168
  %s47 = scalar_lea.vmem %s1, 129
  %48 = vst.msk [vmem:[%s47] ss:$8 sm:$0xf] %vm46, %v45
  %s49 = scalar_lea.vmem %s1, 129
  %50 = vst.msk [vmem:[%s49] ss:$8 sm:$0xf0] %vm46, %v45
  %s51 = scalar_lea.vmem %s0, 24
  %v52 = vld [vmem:[%s51] sm:$0x7]
  %53 = vrot.lane.b32.xlu0 %v52, 127
  %v54 = vpop.permute.xlu0 %53
  %vm55 = vcmask 7168
  %s56 = scalar_lea.vmem %s1, 193
  %57 = vst.msk [vmem:[%s56] ss:$8 sm:$0x7] %vm55, %v54
  %v58 = vld [vmem:[%s0] sm:$0xff]
  %59 = vrot.lane.b32.xlu0 %v58, 126
  %v60 = vpop.permute.xlu0 %59
  %vm61 = vcmask 7168
  %s62 = scalar_lea.vmem %s1, 2
  %63 = vst.msk [vmem:[%s62] ss:$8 sm:$0xf] %vm61, %v60
  %s64 = scalar_lea.vmem %s1, 2
  %65 = vst.msk [vmem:[%s64] ss:$8 sm:$0xf0] %vm61, %v60
  %s66 = scalar_lea.vmem %s0, 8
  %v67 = vld [vmem:[%s66] sm:$0xff]
  %68 = vrot.lane.b32.xlu0 %v67, 126
  %v69 = vpop.permute.xlu0 %68
  %vm70 = vcmask 7168
  %s71 = scalar_lea.vmem %s1, 66
  %72 = vst.msk [vmem:[%s71] ss:$8 sm:$0xf] %vm70, %v69
  %s73 = scalar_lea.vmem %s1, 66
  %74 = vst.msk [vmem:[%s73] ss:$8 sm:$0xf0] %vm70, %v69
  %s75 = scalar_lea.vmem %s0, 16
  %v76 = vld [vmem:[%s75] sm:$0xff]
  %77 = vrot.lane.b32.xlu0 %v76, 126
  %v78 = vpop.permute.xlu0 %77
  %vm79 = vcmask 7168
  %s80 = scalar_lea.vmem %s1, 130
  %81 = vst.msk [vmem:[%s80] ss:$8 sm:$0xf] %vm79, %v78
  %s82 = scalar_lea.vmem %s1, 130
  %83 = vst.msk [vmem:[%s82] ss:$8 sm:$0xf0] %vm79, %v78
  %s84 = scalar_lea.vmem %s0, 24
  %v85 = vld [vmem:[%s84] sm:$0x7]
  %86 = vrot.lane.b32.xlu0 %v85, 126
  %v87 = vpop.permute.xlu0 %86
  %vm88 = vcmask 7168
  %s89 = scalar_lea.vmem %s1, 194
  %90 = vst.msk [vmem:[%s89] ss:$8 sm:$0x7] %vm88, %v87
  %v91 = vld [vmem:[%s0] sm:$0xff]
  %92 = vrot.lane.b32.xlu0 %v91, 125
  %v93 = vpop.permute.xlu0 %92
  %vm94 = vcmask 7168
  %s95 = scalar_lea.vmem %s1, 3
  %96 = vst.msk [vmem:[%s95] ss:$8 sm:$0xf] %vm94, %v93
  %s97 = scalar_lea.vmem %s1, 3
  %98 = vst.msk [vmem:[%s97] ss:$8 sm:$0xf0] %vm94, %v93
  %s99 = scalar_lea.vmem %s0, 8
  %v100 = vld [vmem:[%s99] sm:$0xff]
  %101 = vrot.lane.b32.xlu0 %v100, 125
  %v102 = vpop.permute.xlu0 %101
  %vm103 = vcmask 7168
  %s104 = scalar_lea.vmem %s1, 67
  %105 = vst.msk [vmem:[%s104] ss:$8 sm:$0xf] %vm103, %v102
  %s106 = scalar_lea.vmem %s1, 67
  %107 = vst.msk [vmem:[%s106] ss:$8 sm:$0xf0] %vm103, %v102
  %s108 = scalar_lea.vmem %s0, 16
  %v109 = vld [vmem:[%s108] sm:$0xff]
  %110 = vrot.lane.b32.xlu0 %v109, 125
  %v111 = vpop.permute.xlu0 %110
  %vm112 = vcmask 7168
  %s113 = scalar_lea.vmem %s1, 131
  %114 = vst.msk [vmem:[%s113] ss:$8 sm:$0xf] %vm112, %v111
  %s115 = scalar_lea.vmem %s1, 131
  %116 = vst.msk [vmem:[%s115] ss:$8 sm:$0xf0] %vm112, %v111
  %s117 = scalar_lea.vmem %s0, 24
  %v118 = vld [vmem:[%s117] sm:$0x7]
  %119 = vrot.lane.b32.xlu0 %v118, 125
  %v120 = vpop.permute.xlu0 %119
  %vm121 = vcmask 7168
  %s122 = scalar_lea.vmem %s1, 195
  %123 = vst.msk [vmem:[%s122] ss:$8 sm:$0x7] %vm121, %v120
  %v124 = vld [vmem:[%s0] sm:$0xff]
  %125 = vrot.lane.b32.xlu0 %v124, 124
  %v126 = vpop.permute.xlu0 %125
  %vm127 = vcmask 7168
  %s128 = scalar_lea.vmem %s1, 4
  %129 = vst.msk [vmem:[%s128] ss:$8 sm:$0xf] %vm127, %v126
  %s130 = scalar_lea.vmem %s1, 4
  %131 = vst.msk [vmem:[%s130] ss:$8 sm:$0xf0] %vm127, %v126
  %s132 = scalar_lea.vmem %s0, 8
  %v133 = vld [vmem:[%s132] sm:$0xff]
  %134 = vrot.lane.b32.xlu0 %v133, 124
  %v135 = vpop.permute.xlu0 %134
  %vm136 = vcmask 7168
  %s137 = scalar_lea.vmem %s1, 68
  %138 = vst.msk [vmem:[%s137] ss:$8 sm:$0xf] %vm136, %v135
  %s139 = scalar_lea.vmem %s1, 68
  %140 = vst.msk [vmem:[%s139] ss:$8 sm:$0xf0] %vm136, %v135
  %s141 = scalar_lea.vmem %s0, 16
  %v142 = vld [vmem:[%s141] sm:$0xff]
  %143 = vrot.lane.b32.xlu0 %v142, 124
  %v144 = vpop.permute.xlu0 %143
  %vm145 = vcmask 7168
  %s146 = scalar_lea.vmem %s1, 132
  %147 = vst.msk [vmem:[%s146] ss:$8 sm:$0xf] %vm145, %v144
  %s148 = scalar_lea.vmem %s1, 132
  %149 = vst.msk [vmem:[%s148] ss:$8 sm:$0xf0] %vm145, %v144
  %s150 = scalar_lea.vmem %s0, 24
  %v151 = vld [vmem:[%s150] sm:$0x7]
  %152 = vrot.lane.b32.xlu0 %v151, 124
  %v153 = vpop.permute.xlu0 %152
  %vm154 = vcmask 7168
  %s155 = scalar_lea.vmem %s1, 196
  %156 = vst.msk [vmem:[%s155] ss:$8 sm:$0x7] %vm154, %v153
  %v157 = vld [vmem:[%s0] sm:$0xff]
  %158 = vrot.lane.b32.xlu0 %v157, 123
  %v159 = vpop.permute.xlu0 %158
  %vm160 = vcmask 7168
  %s161 = scalar_lea.vmem %s1, 5
  %162 = vst.msk [vmem:[%s161] ss:$8 sm:$0xf] %vm160, %v159
  %s163 = scalar_lea.vmem %s1, 5
  %164 = vst.msk [vmem:[%s163] ss:$8 sm:$0xf0] %vm160, %v159
  %s165 = scalar_lea.vmem %s0, 8
  %v166 = vld [vmem:[%s165] sm:$0xff]
  %167 = vrot.lane.b32.xlu0 %v166, 123
  %v168 = vpop.permute.xlu0 %167
  %vm169 = vcmask 7168
  %s170 = scalar_lea.vmem %s1, 69
  %171 = vst.msk [vmem:[%s170] ss:$8 sm:$0xf] %vm169, %v168
  %s172 = scalar_lea.vmem %s1, 69
  %173 = vst.msk [vmem:[%s172] ss:$8 sm:$0xf0] %vm169, %v168
  %s174 = scalar_lea.vmem %s0, 16
  %v175 = vld [vmem:[%s174] sm:$0xff]
  %176 = vrot.lane.b32.xlu0 %v175, 123
  %v177 = vpop.permute.xlu0 %176
  %vm178 = vcmask 7168
  %s179 = scalar_lea.vmem %s1, 133
  %180 = vst.msk [vmem:[%s179] ss:$8 sm:$0xf] %vm178, %v177
  %s181 = scalar_lea.vmem %s1, 133
  %182 = vst.msk [vmem:[%s181] ss:$8 sm:$0xf0] %vm178, %v177
  %s183 = scalar_lea.vmem %s0, 24
  %v184 = vld [vmem:[%s183] sm:$0x7]
  %185 = vrot.lane.b32.xlu0 %v184, 123
  %v186 = vpop.permute.xlu0 %185
  %vm187 = vcmask 7168
  %s188 = scalar_lea.vmem %s1, 197
  %189 = vst.msk [vmem:[%s188] ss:$8 sm:$0x7] %vm187, %v186
  %v190 = vld [vmem:[%s0] sm:$0xff]
  %191 = vrot.lane.b32.xlu0 %v190, 122
  %v192 = vpop.permute.xlu0 %191
  %vm193 = vcmask 7168
  %s194 = scalar_lea.vmem %s1, 6
  %195 = vst.msk [vmem:[%s194] ss:$8 sm:$0xf] %vm193, %v192
  %s196 = scalar_lea.vmem %s1, 6
  %197 = vst.msk [vmem:[%s196] ss:$8 sm:$0xf0] %vm193, %v192
  %s198 = scalar_lea.vmem %s0, 8
  %v199 = vld [vmem:[%s198] sm:$0xff]
  %200 = vrot.lane.b32.xlu0 %v199, 122
  %v201 = vpop.permute.xlu0 %200
  %vm202 = vcmask 7168
  %s203 = scalar_lea.vmem %s1, 70
  %204 = vst.msk [vmem:[%s203] ss:$8 sm:$0xf] %vm202, %v201
  %s205 = scalar_lea.vmem %s1, 70
  %206 = vst.msk [vmem:[%s205] ss:$8 sm:$0xf0] %vm202, %v201
  %s207 = scalar_lea.vmem %s0, 16
  %v208 = vld [vmem:[%s207] sm:$0xff]
  %209 = vrot.lane.b32.xlu0 %v208, 122
  %v210 = vpop.permute.xlu0 %209
  %vm211 = vcmask 7168
  %s212 = scalar_lea.vmem %s1, 134
  %213 = vst.msk [vmem:[%s212] ss:$8 sm:$0xf] %vm211, %v210
  %s214 = scalar_lea.vmem %s1, 134
  %215 = vst.msk [vmem:[%s214] ss:$8 sm:$0xf0] %vm211, %v210
  %s216 = scalar_lea.vmem %s0, 24
  %v217 = vld [vmem:[%s216] sm:$0x7]
  %218 = vrot.lane.b32.xlu0 %v217, 122
  %v219 = vpop.permute.xlu0 %218
  %vm220 = vcmask 7168
  %s221 = scalar_lea.vmem %s1, 198
  %222 = vst.msk [vmem:[%s221] ss:$8 sm:$0x7] %vm220, %v219
  %v223 = vld [vmem:[%s0] sm:$0xff]
  %224 = vrot.lane.b32.xlu0 %v223, 121
  %v225 = vpop.permute.xlu0 %224
  %vm226 = vcmask 7168
  %s227 = scalar_lea.vmem %s1, 7
  %228 = vst.msk [vmem:[%s227] ss:$8 sm:$0xf] %vm226, %v225
  %s229 = scalar_lea.vmem %s1, 7
  %230 = vst.msk [vmem:[%s229] ss:$8 sm:$0xf0] %vm226, %v225
  %s231 = scalar_lea.vmem %s0, 8
  %v232 = vld [vmem:[%s231] sm:$0xff]
  %233 = vrot.lane.b32.xlu0 %v232, 121
  %v234 = vpop.permute.xlu0 %233
  %vm235 = vcmask 7168
  %s236 = scalar_lea.vmem %s1, 71
  %237 = vst.msk [vmem:[%s236] ss:$8 sm:$0xf] %vm235, %v234
  %s238 = scalar_lea.vmem %s1, 71
  %239 = vst.msk [vmem:[%s238] ss:$8 sm:$0xf0] %vm235, %v234
  %s240 = scalar_lea.vmem %s0, 16
  %v241 = vld [vmem:[%s240] sm:$0xff]
  %242 = vrot.lane.b32.xlu0 %v241, 121
  %v243 = vpop.permute.xlu0 %242
  %vm244 = vcmask 7168
  %s245 = scalar_lea.vmem %s1, 135
  %246 = vst.msk [vmem:[%s245] ss:$8 sm:$0xf] %vm244, %v243
  %s247 = scalar_lea.vmem %s1, 135
  %248 = vst.msk [vmem:[%s247] ss:$8 sm:$0xf0] %vm244, %v243
  %s249 = scalar_lea.vmem %s0, 24
  %v250 = vld [vmem:[%s249] sm:$0x7]
  %251 = vrot.lane.b32.xlu0 %v250, 121
  %v252 = vpop.permute.xlu0 %251
  %vm253 = vcmask 7168
  %s254 = scalar_lea.vmem %s1, 199
  %255 = vst.msk [vmem:[%s254] ss:$8 sm:$0x7] %vm253, %v252

// kernel: double_conv_forward.4
$region0: #{double_conv_forward.4}
  #allocation0 [shape = 'u32[]', space=smem, size = 0x4, offset = 0x4, fixed_abs, tag = 'smem constant byte address 0x4 - core index']
  #allocation1 [shape = 'u32[144,128]{1,0:T(1,128)}', space=vmem, size = 0x12000, scoped, tag = 'internal scratch']
  %s0 = inlined_call_operand.vmem [shape: bf16[216,8192], index: 0, kind: input, shape index: {}]
  %s1 = inlined_call_operand.vmem [shape: bf16[8,216], index: 1, kind: input, shape index: {}]
  %s2 = inlined_call_operand.vmem [shape: f32[8,1], index: 2, kind: input, shape index: {}]
  %s3 = inlined_call_operand.vmem [shape: f32[216,1], index: 3, kind: input, shape index: {}]
  %s4 = inlined_call_operand.vmem [shape: f32[216,1], index: 4, kind: input, shape index: {}]
  %s5 = inlined_call_operand.vmem [shape: f32[8,8192], index: 5, kind: output, shape index: {0}]
  %s6 = inlined_call_operand.vmem [shape: f32[8,512], index: 6, kind: output, shape index: {1}]
  %7 = xla_tuple %s5, %s6
  %s8 = sld [smem:[#allocation0]]
  $region84: #{double_conv_forward.4} parent=0
    _
  %s10 = ssub.s32 1, %s8
  %s11 = scalar_select 0, %s10, %s8
  $region1: #{double_conv_forward.4} parent=0
    #allocation2 [shape = 'u8[1769472]{0}', space=vmem, size = 0x1b0000, scoped, tag = 'input window, operand 0']
    loop: start=0, step=1, limit=6
    $region2: #{double_conv_forward.4} parent=1 // loop_pre_header
      _
    $region3: #{double_conv_forward.4} parent=1 // loop_header
      %s13 = sphi 0, %s17
      %p14 = scmp.ge.s32.totalorder %s13, 6
      %s23 = sphi 0, %s25
      %s26 = sphi 0, %s23
      %s27 = sphi 0, %s26
      %s43 = sphi 0, %s27
      %s47 = sphi 0, %s47
      %s49 = sphi 0, %s47
      %s50 = sphi 0, %s49
      %s64 = sphi 0, %s50
      %s68 = sphi 0, %s68
      %s70 = sphi 0, %s68
      %s71 = sphi 0, %s70
      %s85 = sphi 0, %s71
      %s89 = sphi 0, %s89
      %s91 = sphi 0, %s89
      %s92 = sphi 0, %s91
      %s106 = sphi 0, %s92
      %s110 = sphi 0, %s110
      %s112 = sphi 0, %s110
      %s113 = sphi 0, %s112
      %s127 = sphi 0, %s113
      %s133 = sphi 0, %s135
      %s136 = sphi 0, %s133
      %s137 = sphi 0, %s136
      %s153 = sphi 0, %s137
      %s159 = sphi 0, %s161
      %s162 = sphi 0, %s159
      %s163 = sphi 0, %s162
      %s179 = sphi 0, %s163
    $region4: #{double_conv_forward.4} parent=1 // loop_header_branch
      %16 = sbr.rel (%p14) target = $region8
    $region5: #{double_conv_forward.4} parent=1 // loop_body
      %s18 = ssub.s32 %s13, 1
      %s19 = ssub.s32 %s13, 2
      %s20 = sadd.s32 %s13, 1
      %s21 = ssub.s32 %s13, %s20
      %p22 = scmp.eq.s32.totalorder %s21, 0
      %s24 = sadd.s32 %s23, 1
      %s25 = scalar_select %p22, %s23, %s24
      %p28 = pneg %p22
      %p29 = scmp.eq.s32.totalorder %s13, 3
      %p30 = por %p28, %p29
      %p31 = scmp.ne.s32.totalorder %s23, %s26
      %p32 = scmp.eq.s32.totalorder %s13, 0
      %p33 = por %p31, %p32
      %p34 = scmp.ne.s32.totalorder %s23, %s26
      %p35 = scmp.eq.s32.totalorder %s18, 3
      %p36 = por %p34, %p35
      %p37 = scmp.ne.s32.totalorder %s26, %s27
      %p38 = scmp.eq.s32.totalorder %s18, 0
      %p39 = por %p37, %p38
      %p40 = scmp.ne.s32.totalorder %s26, %s27
      %p41 = scmp.eq.s32.totalorder %s19, 3
      %p42 = por %p40, %p41
      %p44 = scmp.ne.s32.totalorder %s27, %s43
      %p45 = scmp.eq.s32.totalorder %s19, 0
      %p46 = por %p44, %p45
      %s48 = sadd.s32 %s47, 1
      %p51 = scmp.eq.s32.totalorder %s13, 3
      %p52 = scmp.ne.s32.totalorder %s47, %s49
      %p53 = scmp.eq.s32.totalorder %s13, 0
      %p54 = por %p52, %p53
      %p55 = scmp.ne.s32.totalorder %s47, %s49
      %p56 = scmp.eq.s32.totalorder %s18, 3
      %p57 = por %p55, %p56
      %p58 = scmp.ne.s32.totalorder %s49, %s50
      %p59 = scmp.eq.s32.totalorder %s18, 0
      %p60 = por %p58, %p59
      %p61 = scmp.ne.s32.totalorder %s49, %s50
      %p62 = scmp.eq.s32.totalorder %s19, 3
      %p63 = por %p61, %p62
      %p65 = scmp.ne.s32.totalorder %s50, %s64
      %p66 = scmp.eq.s32.totalorder %s19, 0
      %p67 = por %p65, %p66
      %s69 = sadd.s32 %s68, 1
      %p72 = scmp.eq.s32.totalorder %s13, 3
      %p73 = scmp.ne.s32.totalorder %s68, %s70
      %p74 = scmp.eq.s32.totalorder %s13, 0
      %p75 = por %p73, %p74
      %p76 = scmp.ne.s32.totalorder %s68, %s70
      %p77 = scmp.eq.s32.totalorder %s18, 3
      %p78 = por %p76, %p77
      %p79 = scmp.ne.s32.totalorder %s70, %s71
      %p80 = scmp.eq.s32.totalorder %s18, 0
      %p81 = por %p79, %p80
      %p82 = scmp.ne.s32.totalorder %s70, %s71
      %p83 = scmp.eq.s32.totalorder %s19, 3
      %p84 = por %p82, %p83
      %p86 = scmp.ne.s32.totalorder %s71, %s85
      %p87 = scmp.eq.s32.totalorder %s19, 0
      %p88 = por %p86, %p87
      %s90 = sadd.s32 %s89, 1
      %p93 = scmp.eq.s32.totalorder %s13, 3
      %p94 = scmp.ne.s32.totalorder %s89, %s91
      %p95 = scmp.eq.s32.totalorder %s13, 0
      %p96 = por %p94, %p95
      %p97 = scmp.ne.s32.totalorder %s89, %s91
      %p98 = scmp.eq.s32.totalorder %s18, 3
      %p99 = por %p97, %p98
      %p100 = scmp.ne.s32.totalorder %s91, %s92
      %p101 = scmp.eq.s32.totalorder %s18, 0
      %p102 = por %p100, %p101
      %p103 = scmp.ne.s32.totalorder %s91, %s92
      %p104 = scmp.eq.s32.totalorder %s19, 3
      %p105 = por %p103, %p104
      %p107 = scmp.ne.s32.totalorder %s92, %s106
      %p108 = scmp.eq.s32.totalorder %s19, 0
      %p109 = por %p107, %p108
      %s111 = sadd.s32 %s110, 1
      %p114 = scmp.eq.s32.totalorder %s13, 3
      %p115 = scmp.ne.s32.totalorder %s110, %s112
      %p116 = scmp.eq.s32.totalorder %s13, 0
      %p117 = por %p115, %p116
      %p118 = scmp.ne.s32.totalorder %s110, %s112
      %p119 = scmp.eq.s32.totalorder %s18, 3
      %p120 = por %p118, %p119
      %p121 = scmp.ne.s32.totalorder %s112, %s113
      %p122 = scmp.eq.s32.totalorder %s18, 0
      %p123 = por %p121, %p122
      %p124 = scmp.ne.s32.totalorder %s112, %s113
      %p125 = scmp.eq.s32.totalorder %s19, 3
      %p126 = por %p124, %p125
      %p128 = scmp.ne.s32.totalorder %s113, %s127
      %p129 = scmp.eq.s32.totalorder %s19, 0
      %p130 = por %p128, %p129
      %s131 = ssub.s32 %s13, %s20
      %p132 = scmp.eq.s32.totalorder %s131, 0
      %s134 = sadd.s32 %s133, 1
      %s135 = scalar_select %p132, %s133, %s134
      %p138 = pneg %p132
      %p139 = scmp.eq.s32.totalorder %s13, 3
      %p140 = por %p138, %p139
      %p141 = scmp.ne.s32.totalorder %s133, %s136
      %p142 = scmp.eq.s32.totalorder %s13, 0
      %p143 = por %p141, %p142
      %p144 = scmp.ne.s32.totalorder %s133, %s136
      %p145 = scmp.eq.s32.totalorder %s18, 3
      %p146 = por %p144, %p145
      %p147 = scmp.ne.s32.totalorder %s136, %s137
      %p148 = scmp.eq.s32.totalorder %s18, 0
      %p149 = por %p147, %p148
      %p150 = scmp.ne.s32.totalorder %s136, %s137
      %p151 = scmp.eq.s32.totalorder %s19, 3
      %p152 = por %p150, %p151
      %p154 = scmp.ne.s32.totalorder %s137, %s153
      %p155 = scmp.eq.s32.totalorder %s19, 0
      %p156 = por %p154, %p155
      %s157 = ssub.s32 %s13, %s20
      %p158 = scmp.eq.s32.totalorder %s157, 0
      %s160 = sadd.s32 %s159, 1
      %s161 = scalar_select %p158, %s159, %s160
      %p164 = pneg %p158
      %p165 = scmp.eq.s32.totalorder %s13, 3
      %p166 = por %p164, %p165
      %p167 = scmp.ne.s32.totalorder %s159, %s162
      %p168 = scmp.eq.s32.totalorder %s13, 0
      %p169 = por %p167, %p168
      %p170 = scmp.ne.s32.totalorder %s159, %s162
      %p171 = scmp.eq.s32.totalorder %s18, 3
      %p172 = por %p170, %p171
      %p173 = scmp.ne.s32.totalorder %s162, %s163
      %p174 = scmp.eq.s32.totalorder %s18, 0
      %p175 = por %p173, %p174
      %p176 = scmp.ne.s32.totalorder %s162, %s163
      %p177 = scmp.eq.s32.totalorder %s19, 3
      %p178 = por %p176, %p177
      %p180 = scmp.ne.s32.totalorder %s163, %s179
      %p181 = scmp.eq.s32.totalorder %s19, 0
      %p182 = por %p180, %p181
      %p183 = scmp.le.s32.totalorder 1, %s13
      %p184 = scmp.lt.s32.totalorder %s13, 5
      %p185 = pnand %p183, %p184
      %p186 = pneg %p185
      // Predicated region
      $region9: #{double_conv_forward.4} parent=5 // pred_check
        _
      $region10: #{double_conv_forward.4} parent=5 // pred_check_branch
        %188 = sbr.rel (%p185) target = $region12
      $region11: #{double_conv_forward.4} parent=5 // pred_region
        %s189 = ssub.s32 %s13, 1
        // Predicated region
        $region13: #{double_conv_forward.4} parent=11 // pred_check
          %p190 = pneg %p60
        $region14: #{double_conv_forward.4} parent=11 // pred_check_branch
          %192 = sbr.rel (%p190) target = $region16
        $region15: #{double_conv_forward.4} parent=11 // pred_region
          _
        $region16: #{double_conv_forward.4} parent=11 // pred_fallthru
          _
        // Predicated region
        $region17: #{double_conv_forward.4} parent=11 // pred_check
          %p193 = pneg %p81
        $region18: #{double_conv_forward.4} parent=11 // pred_check_branch
          %195 = sbr.rel (%p193) target = $region20
        $region19: #{double_conv_forward.4} parent=11 // pred_region
          _
        $region20: #{double_conv_forward.4} parent=11 // pred_fallthru
          _
        // Predicated region
        $region21: #{double_conv_forward.4} parent=11 // pred_check
          %p196 = pneg %p102
        $region22: #{double_conv_forward.4} parent=11 // pred_check_branch
          %198 = sbr.rel (%p196) target = $region24
        $region23: #{double_conv_forward.4} parent=11 // pred_region
          _
        $region24: #{double_conv_forward.4} parent=11 // pred_fallthru
          _
        // Predicated region
        $region25: #{double_conv_forward.4} parent=11 // pred_check
          %p199 = pneg %p123
        $region26: #{double_conv_forward.4} parent=11 // pred_check_branch
          %201 = sbr.rel (%p199) target = $region28
        $region27: #{double_conv_forward.4} parent=11 // pred_region
          _
        $region28: #{double_conv_forward.4} parent=11 // pred_fallthru
          _
      $region12: #{double_conv_forward.4} parent=5 // pred_fallthru
        _
      %p202 = scmp.lt.s32.totalorder %s13, 4
      // Predicated region
      $region29: #{double_conv_forward.4} parent=5 // pred_check
        %p203 = pneg %p202
      $region30: #{double_conv_forward.4} parent=5 // pred_check_branch
        %205 = sbr.rel (%p203) target = $region32
      $region31: #{double_conv_forward.4} parent=5 // pred_region
        // Predicated region
        $region33: #{double_conv_forward.4} parent=31 // pred_check
          %p206 = pneg %p33
        $region34: #{double_conv_forward.4} parent=31 // pred_check_branch
          %208 = sbr.rel (%p206) target = $region36
        $region35: #{double_conv_forward.4} parent=31 // pred_region
          %s209 = sand.u32 %s23, 1
          %s210 = sand.u32 %s23, 1
          %s211 = smul.addr %s210, 1728
          %s212 = scalar_lea.vmem [#allocation2], %s211
          %s213 = smul.u32 16, %s13
          %s214 = smul.addr %s213, 4
          %s215 = scalar_lea.vmem %s0, %s214
          // Predicated region
          $region37: #{double_conv_forward.4} parent=35 // pred_check
            _
          $region38: #{double_conv_forward.4} parent=35 // pred_check_branch
            %217 = sbr.rel (0) target = $region40
          $region39: #{double_conv_forward.4} parent=35 // pred_region
            // Predicated region
            $region41: #{double_conv_forward.4} parent=39 // pred_check
              _
            $region42: #{double_conv_forward.4} parent=39 // pred_check_branch
              %219 = sbr.rel (0) target = $region44
            $region43: #{double_conv_forward.4} parent=39 // pred_region
              loop: start=0, step=1, limit=1
              $region45: #{double_conv_forward.4} parent=43 // loop_pre_header
                _
              $region46: #{double_conv_forward.4} parent=43 // loop_header
                %s221 = sphi 0, %s225
                %p222 = scmp.ge.s32.totalorder %s221, 1
                %s226 = sphi %s215, %s215
                %s227 = sphi %s212, %s212
              $region47: #{double_conv_forward.4} parent=43 // loop_header_branch
                %224 = sbr.rel (%p222) target = $region51
              $region48: #{double_conv_forward.4} parent=43 // loop_body
                %v228 = vld [vmem:[%s226] sm:$0xff]
                %229 = vst [vmem:[%s227] sm:$0xff] %v228
                %v230 = vld [vmem:[%s226 + $0x8] sm:$0xff]
                %231 = vst [vmem:[%s227 + $0x8] sm:$0xff] %v230
                %v232 = vld [vmem:[%s226 + $0x10] sm:$0xff]
                %233 = vst [vmem:[%s227 + $0x10] sm:$0xff] %v232
                %v234 = vld [vmem:[%s226 + $0x18] sm:$0xff]
                %235 = vst [vmem:[%s227 + $0x18] sm:$0xff] %v234
                %v236 = vld [vmem:[%s226 + $0x20] sm:$0xff]
                %237 = vst [vmem:[%s227 + $0x20] sm:$0xff] %v236
                %v238 = vld [vmem:[%s226 + $0x28] sm:$0xff]
                %239 = vst [vmem:[%s227 + $0x28] sm:$0xff] %v238
                %v240 = vld [vmem:[%s226 + $0x30] sm:$0xff]
                %241 = vst [vmem:[%s227 + $0x30] sm:$0xff] %v240
                %v242 = vld [vmem:[%s226 + $0x38] sm:$0xff]
                %243 = vst [vmem:[%s227 + $0x38] sm:$0xff] %v242
                %v244 = vld [vmem:[%s226 + $0x100] sm:$0xff]
                %245 = vst [vmem:[%s227 + $0x40] sm:$0xff] %v244
                %v246 = vld [vmem:[%s226 + $0x108] sm:$0xff]
                %247 = vst [vmem:[%s227 + $0x48] sm:$0xff] %v246
                %v248 = vld [vmem:[%s226 + $0x110] sm:$0xff]
                %249 = vst [vmem:[%s227 + $0x50] sm:$0xff] %v248
                %v250 = vld [vmem:[%s226 + $0x118] sm:$0xff]
                %251 = vst [vmem:[%s227 + $0x58] sm:$0xff] %v250
                %v252 = vld [vmem:[%s226 + $0x120] sm:$0xff]
                %253 = vst [vmem:[%s227 + $0x60] sm:$0xff] %v252
                %v254 = vld [vmem:[%s226 + $0x128] sm:$0xff]
                %255 = vst [vmem:[%s227 + $0x68] sm:$0xff] %v254
                %v256 = vld [vmem:[%s226 + $0x130] sm:$0xff]
                %257 = vst [vmem:[%s227 + $0x70] sm:$0xff] %v256
                %v258 = vld [vmem:[%s226 + $0x138] sm:$0xff]
                %259 = vst [vmem:[%s227 + $0x78] sm:$0xff] %v258
                %v260 = vld [vmem:[%s226 + $0x200] sm:$0xff]
                %261 = vst [vmem:[%s227 + $0x80] sm:$0xff] %v260
                %v262 = vld [vmem:[%s226 + $0x208] sm:$0xff]
                %263 = vst [vmem:[%s227 + $0x88] sm:$0xff] %v262
                %v264 = vld [vmem:[%s226 + $0x210] sm:$0xff]
                %265 = vst [vmem:[%s227 + $0x90] sm:$0xff] %v264
                %v266 = vld [vmem:[%s226 + $0x218] sm:$0xff]
                %267 = vst [vmem:[%s227 + $0x98] sm:$0xff] %v266
                %v268 = vld [vmem:[%s226 + $0x220] sm:$0xff]
                %269 = vst [vmem:[%s227 + $0xa0] sm:$0xff] %v268
                %v270 = vld [vmem:[%s226 + $0x228] sm:$0xff]
                %271 = vst [vmem:[%s227 + $0xa8] sm:$0xff] %v270
                %v272 = vld [vmem:[%s226 + $0x230] sm:$0xff]
                %273 = vst [vmem:[%s227 + $0xb0] sm:$0xff] %v272
                %v274 = vld [vmem:[%s226 + $0x238] sm:$0xff]
                %275 = vst [vmem:[%s227 + $0xb8] sm:$0xff] %v274
                %v276 = vld [vmem:[%s226 + $0x300] sm:$0xff]
                %277 = vst [vmem:[%s227 + $0xc0] sm:$0xff] %v276
                %v278 = vld [vmem:[%s226 + $0x308] sm:$0xff]
                %279 = vst [vmem:[%s227 + $0xc8] sm:$0xff] %v278
                %v280 = vld [vmem:[%s226 + $0x310] sm:$0xff]
                %281 = vst [vmem:[%s227 + $0xd0] sm:$0xff] %v280
                %v282 = vld [vmem:[%s226 + $0x318] sm:$0xff]
                %283 = vst [vmem:[%s227 + $0xd8] sm:$0xff] %v282
                %v284 = vld [vmem:[%s226 + $0x320] sm:$0xff]
                %285 = vst [vmem:[%s227 + $0xe0] sm:$0xff] %v284
                %v286 = vld [vmem:[%s226 + $0x328] sm:$0xff]
                %287 = vst [vmem:[%s227 + $0xe8] sm:$0xff] %v286
                %v288 = vld [vmem:[%s226 + $0x330] sm:$0xff]
                %289 = vst [vmem:[%s227 + $0xf0] sm:$0xff] %v288
                %v290 = vld [vmem:[%s226 + $0x338] sm:$0xff]
                %291 = vst [vmem:[%s227 + $0xf8] sm:$0xff] %v290
                %v292 = vld [vmem:[%s226 + $0x400] sm:$0xff]
                %293 = vst [vmem:[%s227 + $0x100] sm:$0xff] %v292
                %v294 = vld [vmem:[%s226 + $0x408] sm:$0xff]
                %295 = vst [vmem:[%s227 + $0x108] sm:$0xff] %v294
                %v296 = vld [vmem:[%s226 + $0x410] sm:$0xff]
                %297 = vst [vmem:[%s227 + $0x110] sm:$0xff] %v296
                %v298 = vld [vmem:[%s226 + $0x418] sm:$0xff]
                %299 = vst [vmem:[%s227 + $0x118] sm:$0xff] %v298
                %v300 = vld [vmem:[%s226 + $0x420] sm:$0xff]
                %301 = vst [vmem:[%s227 + $0x120] sm:$0xff] %v300
                %v302 = vld [vmem:[%s226 + $0x428] sm:$0xff]
                %303 = vst [vmem:[%s227 + $0x128] sm:$0xff] %v302
                %v304 = vld [vmem:[%s226 + $0x430] sm:$0xff]
                %305 = vst [vmem:[%s227 + $0x130] sm:$0xff] %v304
                %v306 = vld [vmem:[%s226 + $0x438] sm:$0xff]
                %307 = vst [vmem:[%s227 + $0x138] sm:$0xff] %v306
                %v308 = vld [vmem:[%s226 + $0x500] sm:$0xff]
                %309 = vst [vmem:[%s227 + $0x140] sm:$0xff] %v308
                %v310 = vld [vmem:[%s226 + $0x508] sm:$0xff]
                %311 = vst [vmem:[%s227 + $0x148] sm:$0xff] %v310
                %v312 = vld [vmem:[%s226 + $0x510] sm:$0xff]
                %313 = vst [vmem:[%s227 + $0x150] sm:$0xff] %v312
                %v314 = vld [vmem:[%s226 + $0x518] sm:$0xff]
                %315 = vst [vmem:[%s227 + $0x158] sm:$0xff] %v314
                %v316 = vld [vmem:[%s226 + $0x520] sm:$0xff]
                %317 = vst [vmem:[%s227 + $0x160] sm:$0xff] %v316
                %v318 = vld [vmem:[%s226 + $0x528] sm:$0xff]
                %319 = vst [vmem:[%s227 + $0x168] sm:$0xff] %v318
                %v320 = vld [vmem:[%s226 + $0x530] sm:$0xff]
                %321 = vst [vmem:[%s227 + $0x170] sm:$0xff] %v320
                %v322 = vld [vmem:[%s226 + $0x538] sm:$0xff]
                %323 = vst [vmem:[%s227 + $0x178] sm:$0xff] %v322
                %v324 = vld [vmem:[%s226 + $0x600] sm:$0xff]
                %325 = vst [vmem:[%s227 + $0x180] sm:$0xff] %v324
                %v326 = vld [vmem:[%s226 + $0x608] sm:$0xff]
                %327 = vst [vmem:[%s227 + $0x188] sm:$0xff] %v326
                %v328 = vld [vmem:[%s226 + $0x610] sm:$0xff]
                %329 = vst [vmem:[%s227 + $0x190] sm:$0xff] %v328
                %v330 = vld [vmem:[%s226 + $0x618] sm:$0xff]
                %331 = vst [vmem:[%s227 + $0x198] sm:$0xff] %v330
                %v332 = vld [vmem:[%s226 + $0x620] sm:$0xff]
                %333 = vst [vmem:[%s227 + $0x1a0] sm:$0xff] %v332
                %v334 = vld [vmem:[%s226 + $0x628] sm:$0xff]
                %335 = vst [vmem:[%s227 + $0x1a8] sm:$0xff] %v334
                %v336 = vld [vmem:[%s226 + $0x630] sm:$0xff]
                %337 = vst [vmem:[%s227 + $0x1b0] sm:$0xff] %v336
                %v338 = vld [vmem:[%s226 + $0x638] sm:$0xff]
                %339 = vst [vmem:[%s227 + $0x1b8] sm:$0xff] %v338
                %v340 = vld [vmem:[%s226 + $0x700] sm:$0xff]
                %341 = vst [vmem:[%s227 + $0x1c0] sm:$0xff] %v340
                %v342 = vld [vmem:[%s226 + $0x708] sm:$0xff]
                %343 = vst [vmem:[%s227 + $0x1c8] sm:$0xff] %v342
                %v344 = vld [vmem:[%s226 + $0x710] sm:$0xff]
                %345 = vst [vmem:[%s227 + $0x1d0] sm:$0xff] %v344
                %v346 = vld [vmem:[%s226 + $0x718] sm:$0xff]
                %347 = vst [vmem:[%s227 + $0x1d8] sm:$0xff] %v346
                %v348 = vld [vmem:[%s226 + $0x720] sm:$0xff]
                %349 = vst [vmem:[%s227 + $0x1e0] sm:$0xff] %v348
                %v350 = vld [vmem:[%s226 + $0x728] sm:$0xff]
                %351 = vst [vmem:[%s227 + $0x1e8] sm:$0xff] %v350
                %v352 = vld [vmem:[%s226 + $0x730] sm:$0xff]
                %353 = vst [vmem:[%s227 + $0x1f0] sm:$0xff] %v352
                %v354 = vld [vmem:[%s226 + $0x738] sm:$0xff]
                %355 = vst [vmem:[%s227 + $0x1f8] sm:$0xff] %v354
                %v356 = vld [vmem:[%s226 + $0x800] sm:$0xff]
                %357 = vst [vmem:[%s227 + $0x200] sm:$0xff] %v356
                %v358 = vld [vmem:[%s226 + $0x808] sm:$0xff]
                %359 = vst [vmem:[%s227 + $0x208] sm:$0xff] %v358
                %v360 = vld [vmem:[%s226 + $0x810] sm:$0xff]
                %361 = vst [vmem:[%s227 + $0x210] sm:$0xff] %v360
                %v362 = vld [vmem:[%s226 + $0x818] sm:$0xff]
                %363 = vst [vmem:[%s227 + $0x218] sm:$0xff] %v362
                %v364 = vld [vmem:[%s226 + $0x820] sm:$0xff]
                %365 = vst [vmem:[%s227 + $0x220] sm:$0xff] %v364
                %v366 = vld [vmem:[%s226 + $0x828] sm:$0xff]
                %367 = vst [vmem:[%s227 + $0x228] sm:$0xff] %v366
                %v368 = vld [vmem:[%s226 + $0x830] sm:$0xff]
                %369 = vst [vmem:[%s227 + $0x230] sm:$0xff] %v368
                %v370 = vld [vmem:[%s226 + $0x838] sm:$0xff]
                %371 = vst [vmem:[%s227 + $0x238] sm:$0xff] %v370
                %v372 = vld [vmem:[%s226 + $0x900] sm:$0xff]
                %373 = vst [vmem:[%s227 + $0x240] sm:$0xff] %v372
                %v374 = vld [vmem:[%s226 + $0x908] sm:$0xff]
                %375 = vst [vmem:[%s227 + $0x248] sm:$0xff] %v374
                %v376 = vld [vmem:[%s226 + $0x910] sm:$0xff]
                %377 = vst [vmem:[%s227 + $0x250] sm:$0xff] %v376
                %v378 = vld [vmem:[%s226 + $0x918] sm:$0xff]
                %379 = vst [vmem:[%s227 + $0x258] sm:$0xff] %v378
                %v380 = vld [vmem:[%s226 + $0x920] sm:$0xff]
                %381 = vst [vmem:[%s227 + $0x260] sm:$0xff] %v380
                %v382 = vld [vmem:[%s226 + $0x928] sm:$0xff]
                %383 = vst [vmem:[%s227 + $0x268] sm:$0xff] %v382
                %v384 = vld [vmem:[%s226 + $0x930] sm:$0xff]
                %385 = vst [vmem:[%s227 + $0x270] sm:$0xff] %v384
                %v386 = vld [vmem:[%s226 + $0x938] sm:$0xff]
                %387 = vst [vmem:[%s227 + $0x278] sm:$0xff] %v386
                %v388 = vld [vmem:[%s226 + $0xa00] sm:$0xff]
                %389 = vst [vmem:[%s227 + $0x280] sm:$0xff] %v388
                %v390 = vld [vmem:[%s226 + $0xa08] sm:$0xff]
                %391 = vst [vmem:[%s227 + $0x288] sm:$0xff] %v390
                %v392 = vld [vmem:[%s226 + $0xa10] sm:$0xff]
                %393 = vst [vmem:[%s227 + $0x290] sm:$0xff] %v392
                %v394 = vld [vmem:[%s226 + $0xa18] sm:$0xff]
                %395 = vst [vmem:[%s227 + $0x298] sm:$0xff] %v394
                %v396 = vld [vmem:[%s226 + $0xa20] sm:$0xff]
                %397 = vst [vmem:[%s227 + $0x2a0] sm:$0xff] %v396
                %v398 = vld [vmem:[%s226 + $0xa28] sm:$0xff]
                %399 = vst [vmem:[%s227 + $0x2a8] sm:$0xff] %v398
                %v400 = vld [vmem:[%s226 + $0xa30] sm:$0xff]
                %401 = vst [vmem:[%s227 + $0x2b0] sm:$0xff] %v400
                %v402 = vld [vmem:[%s226 + $0xa38] sm:$0xff]
                %403 = vst [vmem:[%s227 + $0x2b8] sm:$0xff] %v402
                %v404 = vld [vmem:[%s226 + $0xb00] sm:$0xff]
                %405 = vst [vmem:[%s227 + $0x2c0] sm:$0xff] %v404
                %v406 = vld [vmem:[%s226 + $0xb08] sm:$0xff]
                %407 = vst [vmem:[%s227 + $0x2c8] sm:$0xff] %v406
                %v408 = vld [vmem:[%s226 + $0xb10] sm:$0xff]
                %409 = vst [vmem:[%s227 + $0x2d0] sm:$0xff] %v408
                %v410 = vld [vmem:[%s226 + $0xb18] sm:$0xff]
                %411 = vst [vmem:[%s227 + $0x2d8] sm:$0xff] %v410
                %v412 = vld [vmem:[%s226 + $0xb20] sm:$0xff]
                %413 = vst [vmem:[%s227 + $0x2e0] sm:$0xff] %v412
                %v414 = vld [vmem:[%s226 + $0xb28] sm:$0xff]
                %415 = vst [vmem:[%s227 + $0x2e8] sm:$0xff] %v414
                %v416 = vld [vmem:[%s226 + $0xb30] sm:$0xff]
                %417 = vst [vmem:[%s227 + $0x2f0] sm:$0xff] %v416
                %v418 = vld [vmem:[%s226 + $0xb38] sm:$0xff]
                %419 = vst [vmem:[%s227 + $0x2f8] sm:$0xff] %v418
                %v420 = vld [vmem:[%s226 + $0xc00] sm:$0xff]
                %421 = vst [vmem:[%s227 + $0x300] sm:$0xff] %v420
                %v422 = vld [vmem:[%s226 + $0xc08] sm:$0xff]
                %423 = vst [vmem:[%s227 + $0x308] sm:$0xff] %v422
                %v424 = vld [vmem:[%s226 + $0xc10] sm:$0xff]
                %425 = vst [vmem:[%s227 + $0x310] sm:$0xff] %v424
                %v426 = vld [vmem:[%s226 + $0xc18] sm:$0xff]
                %427 = vst [vmem:[%s227 + $0x318] sm:$0xff] %v426
                %v428 = vld [vmem:[%s226 + $0xc20] sm:$0xff]
                %429 = vst [vmem:[%s227 + $0x320] sm:$0xff] %v428
                %v430 = vld [vmem:[%s226 + $0xc28] sm:$0xff]
                %431 = vst [vmem:[%s227 + $0x328] sm:$0xff] %v430
                %v432 = vld [vmem:[%s226 + $0xc30] sm:$0xff]
                %433 = vst [vmem:[%s227 + $0x330] sm:$0xff] %v432
                %v434 = vld [vmem:[%s226 + $0xc38] sm:$0xff]
                %435 = vst [vmem:[%s227 + $0x338] sm:$0xff] %v434
                %v436 = vld [vmem:[%s226 + $0xd00] sm:$0xff]
                %437 = vst [vmem:[%s227 + $0x340] sm:$0xff] %v436
                %v438 = vld [vmem:[%s226 + $0xd08] sm:$0xff]
                %439 = vst [vmem:[%s227 + $0x348] sm:$0xff] %v438
                %v440 = vld [vmem:[%s226 + $0xd10] sm:$0xff]
                %441 = vst [vmem:[%s227 + $0x350] sm:$0xff] %v440
                %v442 = vld [vmem:[%s226 + $0xd18] sm:$0xff]
                %443 = vst [vmem:[%s227 + $0x358] sm:$0xff] %v442
                %v444 = vld [vmem:[%s226 + $0xd20] sm:$0xff]
                %445 = vst [vmem:[%s227 + $0x360] sm:$0xff] %v444
                %v446 = vld [vmem:[%s226 + $0xd28] sm:$0xff]
                %447 = vst [vmem:[%s227 + $0x368] sm:$0xff] %v446
                %v448 = vld [vmem:[%s226 + $0xd30] sm:$0xff]
                %449 = vst [vmem:[%s227 + $0x370] sm:$0xff] %v448
                %v450 = vld [vmem:[%s226 + $0xd38] sm:$0xff]
                %451 = vst [vmem:[%s227 + $0x378] sm:$0xff] %v450
                %v452 = vld [vmem:[%s226 + $0xe00] sm:$0xff]
                %453 = vst [vmem:[%s227 + $0x380] sm:$0xff] %v452
                %v454 = vld [vmem:[%s226 + $0xe08] sm:$0xff]
                %455 = vst [vmem:[%s227 + $0x388] sm:$0xff] %v454
                %v456 = vld [vmem:[%s226 + $0xe10] sm:$0xff]
                %457 = vst [vmem:[%s227 + $0x390] sm:$0xff] %v456
                %v458 = vld [vmem:[%s226 + $0xe18] sm:$0xff]
                %459 = vst [vmem:[%s227 + $0x398] sm:$0xff] %v458
                %v460 = vld [vmem:[%s226 + $0xe20] sm:$0xff]
                %461 = vst [vmem:[%s227 + $0x3a0] sm:$0xff] %v460
                %v462 = vld [vmem:[%s226 + $0xe28] sm:$0xff]
                %463 = vst [vmem:[%s227 + $0x3a8] sm:$0xff] %v462
                %v464 = vld [vmem:[%s226 + $0xe30] sm:$0xff]
                %465 = vst [vmem:[%s227 + $0x3b0] sm:$0xff] %v464
                %v466 = vld [vmem:[%s226 + $0xe38] sm:$0xff]
                %467 = vst [vmem:[%s227 + $0x3b8] sm:$0xff] %v466
                %v468 = vld [vmem:[%s226 + $0xf00] sm:$0xff]
                %469 = vst [vmem:[%s227 + $0x3c0] sm:$0xff] %v468
                %v470 = vld [vmem:[%s226 + $0xf08] sm:$0xff]
                %471 = vst [vmem:[%s227 + $0x3c8] sm:$0xff] %v470
                %v472 = vld [vmem:[%s226 + $0xf10] sm:$0xff]
                %473 = vst [vmem:[%s227 + $0x3d0] sm:$0xff] %v472
                %v474 = vld [vmem:[%s226 + $0xf18] sm:$0xff]
                %475 = vst [vmem:[%s227 + $0x3d8] sm:$0xff] %v474
                %v476 = vld [vmem:[%s226 + $0xf20] sm:$0xff]
                %477 = vst [vmem:[%s227 + $0x3e0] sm:$0xff] %v476
                %v478 = vld [vmem:[%s226 + $0xf28] sm:$0xff]
                %479 = vst [vmem:[%s227 + $0x3e8] sm:$0xff] %v478
                %v480 = vld [vmem:[%s226 + $0xf30] sm:$0xff]
                %481 = vst [vmem:[%s227 + $0x3f0] sm:$0xff] %v480
                %v482 = vld [vmem:[%s226 + $0xf38] sm:$0xff]
                %483 = vst [vmem:[%s227 + $0x3f8] sm:$0xff] %v482
                %v484 = vld [vmem:[%s226 + $0x1000] sm:$0xff]
                %485 = vst [vmem:[%s227 + $0x400] sm:$0xff] %v484
                %v486 = vld [vmem:[%s226 + $0x1008] sm:$0xff]
                %487 = vst [vmem:[%s227 + $0x408] sm:$0xff] %v486
                %v488 = vld [vmem:[%s226 + $0x1010] sm:$0xff]
                %489 = vst [vmem:[%s227 + $0x410] sm:$0xff] %v488
                %v490 = vld [vmem:[%s226 + $0x1018] sm:$0xff]
                %491 = vst [vmem:[%s227 + $0x418] sm:$0xff] %v490
                %v492 = vld [vmem:[%s226 + $0x1020] sm:$0xff]
                %493 = vst [vmem:[%s227 + $0x420] sm:$0xff] %v492
                %v494 = vld [vmem:[%s226 + $0x1028] sm:$0xff]
                %495 = vst [vmem:[%s227 + $0x428] sm:$0xff] %v494
                %v496 = vld [vmem:[%s226 + $0x1030] sm:$0xff]
                %497 = vst [vmem:[%s227 + $0x430] sm:$0xff] %v496
                %v498 = vld [vmem:[%s226 + $0x1038] sm:$0xff]
                %499 = vst [vmem:[%s227 + $0x438] sm:$0xff] %v498
                %v500 = vld [vmem:[%s226 + $0x1100] sm:$0xff]
                %501 = vst [vmem:[%s227 + $0x440] sm:$0xff] %v500
                %v502 = vld [vmem:[%s226 + $0x1108] sm:$0xff]
                %503 = vst [vmem:[%s227 + $0x448] sm:$0xff] %v502
                %v504 = vld [vmem:[%s226 + $0x1110] sm:$0xff]
                %505 = vst [vmem:[%s227 + $0x450] sm:$0xff] %v504
                %v506 = vld [vmem:[%s226 + $0x1118] sm:$0xff]
                %507 = vst [vmem:[%s227 + $0x458] sm:$0xff] %v506
                %v508 = vld [vmem:[%s226 + $0x1120] sm:$0xff]
                %509 = vst [vmem:[%s227 + $0x460] sm:$0xff] %v508
                %v510 = vld [vmem:[%s226 + $0x1128] sm:$0xff]
                %511 = vst [vmem:[%s227 + $0x468] sm:$0xff] %v510
                %v512 = vld [vmem:[%s226 + $0x1130] sm:$0xff]
                %513 = vst [vmem:[%s227 + $0x470] sm:$0xff] %v512
                %v514 = vld [vmem:[%s226 + $0x1138] sm:$0xff]
                %515 = vst [vmem:[%s227 + $0x478] sm:$0xff] %v514
                %v516 = vld [vmem:[%s226 + $0x1200] sm:$0xff]
                %517 = vst [vmem:[%s227 + $0x480] sm:$0xff] %v516
                %v518 = vld [vmem:[%s226 + $0x1208] sm:$0xff]
                %519 = vst [vmem:[%s227 + $0x488] sm:$0xff] %v518
                %v520 = vld [vmem:[%s226 + $0x1210] sm:$0xff]
                %521 = vst [vmem:[%s227 + $0x490] sm:$0xff] %v520
                %v522 = vld [vmem:[%s226 + $0x1218] sm:$0xff]
                %523 = vst [vmem:[%s227 + $0x498] sm:$0xff] %v522
                %v524 = vld [vmem:[%s226 + $0x1220] sm:$0xff]
                %525 = vst [vmem:[%s227 + $0x4a0] sm:$0xff] %v524
                %v526 = vld [vmem:[%s226 + $0x1228] sm:$0xff]
                %527 = vst [vmem:[%s227 + $0x4a8] sm:$0xff] %v526
                %v528 = vld [vmem:[%s226 + $0x1230] sm:$0xff]
                %529 = vst [vmem:[%s227 + $0x4b0] sm:$0xff] %v528
                %v530 = vld [vmem:[%s226 + $0x1238] sm:$0xff]
                %531 = vst [vmem:[%s227 + $0x4b8] sm:$0xff] %v530
                %v532 = vld [vmem:[%s226 + $0x1300] sm:$0xff]
                %533 = vst [vmem:[%s227 + $0x4c0] sm:$0xff] %v532
                %v534 = vld [vmem:[%s226 + $0x1308] sm:$0xff]
                %535 = vst [vmem:[%s227 + $0x4c8] sm:$0xff] %v534
                %v536 = vld [vmem:[%s226 + $0x1310] sm:$0xff]
                %537 = vst [vmem:[%s227 + $0x4d0] sm:$0xff] %v536
                %v538 = vld [vmem:[%s226 + $0x1318] sm:$0xff]
                %539 = vst [vmem:[%s227 + $0x4d8] sm:$0xff] %v538
                %v540 = vld [vmem:[%s226 + $0x1320] sm:$0xff]
                %541 = vst [vmem:[%s227 + $0x4e0] sm:$0xff] %v540
                %v542 = vld [vmem:[%s226 + $0x1328] sm:$0xff]
                %543 = vst [vmem:[%s227 + $0x4e8] sm:$0xff] %v542
                %v544 = vld [vmem:[%s226 + $0x1330] sm:$0xff]
                %545 = vst [vmem:[%s227 + $0x4f0] sm:$0xff] %v544
                %v546 = vld [vmem:[%s226 + $0x1338] sm:$0xff]
                %547 = vst [vmem:[%s227 + $0x4f8] sm:$0xff] %v546
                %v548 = vld [vmem:[%s226 + $0x1400] sm:$0xff]
                %549 = vst [vmem:[%s227 + $0x500] sm:$0xff] %v548
                %v550 = vld [vmem:[%s226 + $0x1408] sm:$0xff]
                %551 = vst [vmem:[%s227 + $0x508] sm:$0xff] %v550
                %v552 = vld [vmem:[%s226 + $0x1410] sm:$0xff]
                %553 = vst [vmem:[%s227 + $0x510] sm:$0xff] %v552
                %v554 = vld [vmem:[%s226 + $0x1418] sm:$0xff]
                %555 = vst [vmem:[%s227 + $0x518] sm:$0xff] %v554
                %v556 = vld [vmem:[%s226 + $0x1420] sm:$0xff]
                %557 = vst [vmem:[%s227 + $0x520] sm:$0xff] %v556
                %v558 = vld [vmem:[%s226 + $0x1428] sm:$0xff]
                %559 = vst [vmem:[%s227 + $0x528] sm:$0xff] %v558
                %v560 = vld [vmem:[%s226 + $0x1430] sm:$0xff]
                %561 = vst [vmem:[%s227 + $0x530] sm:$0xff] %v560
                %v562 = vld [vmem:[%s226 + $0x1438] sm:$0xff]
                %563 = vst [vmem:[%s227 + $0x538] sm:$0xff] %v562
                %v564 = vld [vmem:[%s226 + $0x1500] sm:$0xff]
                %565 = vst [vmem:[%s227 + $0x540] sm:$0xff] %v564
                %v566 = vld [vmem:[%s226 + $0x1508] sm:$0xff]
                %567 = vst [vmem:[%s227 + $0x548] sm:$0xff] %v566
                %v568 = vld [vmem:[%s226 + $0x1510] sm:$0xff]
                %569 = vst [vmem:[%s227 + $0x550] sm:$0xff] %v568
                %v570 = vld [vmem:[%s226 + $0x1518] sm:$0xff]
                %571 = vst [vmem:[%s227 + $0x558] sm:$0xff] %v570
                %v572 = vld [vmem:[%s226 + $0x1520] sm:$0xff]
                %573 = vst [vmem:[%s227 + $0x560] sm:$0xff] %v572
                %v574 = vld [vmem:[%s226 + $0x1528] sm:$0xff]
                %575 = vst [vmem:[%s227 + $0x568] sm:$0xff] %v574
                %v576 = vld [vmem:[%s226 + $0x1530] sm:$0xff]
                %577 = vst [vmem:[%s227 + $0x570] sm:$0xff] %v576
                %v578 = vld [vmem:[%s226 + $0x1538] sm:$0xff]
                %579 = vst [vmem:[%s227 + $0x578] sm:$0xff] %v578
                %v580 = vld [vmem:[%s226 + $0x1600] sm:$0xff]
                %581 = vst [vmem:[%s227 + $0x580] sm:$0xff] %v580
                %v582 = vld [vmem:[%s226 + $0x1608] sm:$0xff]
                %583 = vst [vmem:[%s227 + $0x588] sm:$0xff] %v582
                %v584 = vld [vmem:[%s226 + $0x1610] sm:$0xff]
                %585 = vst [vmem:[%s227 + $0x590] sm:$0xff] %v584
                %v586 = vld [vmem:[%s226 + $0x1618] sm:$0xff]
                %587 = vst [vmem:[%s227 + $0x598] sm:$0xff] %v586
                %v588 = vld [vmem:[%s226 + $0x1620] sm:$0xff]
                %589 = vst [vmem:[%s227 + $0x5a0] sm:$0xff] %v588
                %v590 = vld [vmem:[%s226 + $0x1628] sm:$0xff]
                %591 = vst [vmem:[%s227 + $0x5a8] sm:$0xff] %v590
                %v592 = vld [vmem:[%s226 + $0x1630] sm:$0xff]
                %593 = vst [vmem:[%s227 + $0x5b0] sm:$0xff] %v592
                %v594 = vld [vmem:[%s226 + $0x1638] sm:$0xff]
                %595 = vst [vmem:[%s227 + $0x5b8] sm:$0xff] %v594
                %v596 = vld [vmem:[%s226 + $0x1700] sm:$0xff]
                %597 = vst [vmem:[%s227 + $0x5c0] sm:$0xff] %v596
                %v598 = vld [vmem:[%s226 + $0x1708] sm:$0xff]
                %599 = vst [vmem:[%s227 + $0x5c8] sm:$0xff] %v598
                %v600 = vld [vmem:[%s226 + $0x1710] sm:$0xff]
                %601 = vst [vmem:[%s227 + $0x5d0] sm:$0xff] %v600
                %v602 = vld [vmem:[%s226 + $0x1718] sm:$0xff]
                %603 = vst [vmem:[%s227 + $0x5d8] sm:$0xff] %v602
                %v604 = vld [vmem:[%s226 + $0x1720] sm:$0xff]
                %605 = vst [vmem:[%s227 + $0x5e0] sm:$0xff] %v604
                %v606 = vld [vmem:[%s226 + $0x1728] sm:$0xff]
                %607 = vst [vmem:[%s227 + $0x5e8] sm:$0xff] %v606
                %v608 = vld [vmem:[%s226 + $0x1730] sm:$0xff]
                %609 = vst [vmem:[%s227 + $0x5f0] sm:$0xff] %v608
                %v610 = vld [vmem:[%s226 + $0x1738] sm:$0xff]
                %611 = vst [vmem:[%s227 + $0x5f8] sm:$0xff] %v610
                %v612 = vld [vmem:[%s226 + $0x1800] sm:$0xff]
                %613 = vst [vmem:[%s227 + $0x600] sm:$0xff] %v612
                %v614 = vld [vmem:[%s226 + $0x1808] sm:$0xff]
                %615 = vst [vmem:[%s227 + $0x608] sm:$0xff] %v614
                %v616 = vld [vmem:[%s226 + $0x1810] sm:$0xff]
                %617 = vst [vmem:[%s227 + $0x610] sm:$0xff] %v616
                %v618 = vld [vmem:[%s226 + $0x1818] sm:$0xff]
                %619 = vst [vmem:[%s227 + $0x618] sm:$0xff] %v618
                %v620 = vld [vmem:[%s226 + $0x1820] sm:$0xff]
                %621 = vst [vmem:[%s227 + $0x620] sm:$0xff] %v620
                %v622 = vld [vmem:[%s226 + $0x1828] sm:$0xff]
                %623 = vst [vmem:[%s227 + $0x628] sm:$0xff] %v622
                %v624 = vld [vmem:[%s226 + $0x1830] sm:$0xff]
                %625 = vst [vmem:[%s227 + $0x630] sm:$0xff] %v624
                %v626 = vld [vmem:[%s226 + $0x1838] sm:$0xff]
                %627 = vst [vmem:[%s227 + $0x638] sm:$0xff] %v626
                %v628 = vld [vmem:[%s226 + $0x1900] sm:$0xff]
                %629 = vst [vmem:[%s227 + $0x640] sm:$0xff] %v628
                %v630 = vld [vmem:[%s226 + $0x1908] sm:$0xff]
                %631 = vst [vmem:[%s227 + $0x648] sm:$0xff] %v630
                %v632 = vld [vmem:[%s226 + $0x1910] sm:$0xff]
                %633 = vst [vmem:[%s227 + $0x650] sm:$0xff] %v632
                %v634 = vld [vmem:[%s226 + $0x1918] sm:$0xff]
                %635 = vst [vmem:[%s227 + $0x658] sm:$0xff] %v634
                %v636 = vld [vmem:[%s226 + $0x1920] sm:$0xff]
                %637 = vst [vmem:[%s227 + $0x660] sm:$0xff] %v636
                %v638 = vld [vmem:[%s226 + $0x1928] sm:$0xff]
                %639 = vst [vmem:[%s227 + $0x668] sm:$0xff] %v638
                %v640 = vld [vmem:[%s226 + $0x1930] sm:$0xff]
                %641 = vst [vmem:[%s227 + $0x670] sm:$0xff] %v640
                %v642 = vld [vmem:[%s226 + $0x1938] sm:$0xff]
                %643 = vst [vmem:[%s227 + $0x678] sm:$0xff] %v642
                %v644 = vld [vmem:[%s226 + $0x1a00] sm:$0xff]
                %645 = vst [vmem:[%s227 + $0x680] sm:$0xff] %v644
                %v646 = vld [vmem:[%s226 + $0x1a08] sm:$0xff]
                %647 = vst [vmem:[%s227 + $0x688] sm:$0xff] %v646
                %v648 = vld [vmem:[%s226 + $0x1a10] sm:$0xff]
                %649 = vst [vmem:[%s227 + $0x690] sm:$0xff] %v648
                %v650 = vld [vmem:[%s226 + $0x1a18] sm:$0xff]
                %651 = vst [vmem:[%s227 + $0x698] sm:$0xff] %v650
                %v652 = vld [vmem:[%s226 + $0x1a20] sm:$0xff]
                %653 = vst [vmem:[%s227 + $0x6a0] sm:$0xff] %v652
                %v654 = vld [vmem:[%s226 + $0x1a28] sm:$0xff]
                %655 = vst [vmem:[%s227 + $0x6a8] sm:$0xff] %v654
                %v656 = vld [vmem:[%s226 + $0x1a30] sm:$0xff]
                %657 = vst [vmem:[%s227 + $0x6b0] sm:$0xff] %v656
                %v658 = vld [vmem:[%s226 + $0x1a38] sm:$0xff]
                %659 = vst [vmem:[%s227 + $0x6b8] sm:$0xff] %v658
              $region49: #{double_conv_forward.4} parent=43 // loop_footer
                %s225 = sadd.s32 1, %s221
              $region50: #{double_conv_forward.4} parent=43 // loop_footer_branch
                %220 = sbr.rel target = $region46
              $region51: #{double_conv_forward.4} parent=43 // loop_exit
                _
            $region44: #{double_conv_forward.4} parent=39 // pred_fallthru
              _
            // Predicated region
            $region52: #{double_conv_forward.4} parent=39 // pred_check
              _
            $region53: #{double_conv_forward.4} parent=39 // pred_check_branch
              %661 = sbr.rel target = $region55
            $region54: #{double_conv_forward.4} parent=39 // pred_region
              _
            $region55: #{double_conv_forward.4} parent=39 // pred_fallthru
              _
          $region40: #{double_conv_forward.4} parent=35 // pred_fallthru
            _
          %662 = vnop
        $region36: #{double_conv_forward.4} parent=31 // pred_fallthru
          _
      $region32: #{double_conv_forward.4} parent=5 // pred_fallthru
        _
      %p663 = scmp.le.s32.totalorder 1, %s13
      %p664 = scmp.lt.s32.totalorder %s13, 5
      %p665 = pnand %p663, %p664
      %p666 = pneg %p665
      // Predicated region
      $region56: #{double_conv_forward.4} parent=5 // pred_check
        _
      $region57: #{double_conv_forward.4} parent=5 // pred_check_branch
        %668 = sbr.rel (%p665) target = $region59
      $region58: #{double_conv_forward.4} parent=5 // pred_region
        %s669 = ssub.s32 %s13, 1
        %s670 = sand.u32 %s26, 1
        %s671 = sand.u32 %s26, 1
        %s672 = smul.addr %s671, 1728
        %s673 = scalar_lea.vmem [#allocation2], %s672
        // Predicated region
        $region60: #{double_conv_forward.4} parent=58 // pred_check
          %p674 = pneg %p39
        $region61: #{double_conv_forward.4} parent=58 // pred_check_branch
          %676 = sbr.rel (%p674) target = $region63
        $region62: #{double_conv_forward.4} parent=58 // pred_region
          _
        $region63: #{double_conv_forward.4} parent=58 // pred_fallthru
          _
        %s677 = sand.u32 %s26, 1
        %s678 = sand.u32 %s26, 1
        %s679 = smul.addr %s678, 1728
        %s680 = scalar_lea.vmem [#allocation2], %s679
        %p681 = pneg %p39
        %p682 = pneg %p36
        %p683 = pneg %p60
        %p684 = pneg %p57
        %p685 = pneg %p81
        %p686 = pneg %p78
        %p687 = pneg %p102
        %p688 = pneg %p99
        %p689 = pneg %p123
        %p690 = pneg %p120
        %p691 = pneg %p149
        %p692 = pneg %p146
        %s693 = smul.u32 16, %s18
        %p694 = scmp.lt.s32.totalorder %s693, 63
        %s695 = scalar_select %p694, %s693, 63
        %s696 = smul.addr %s695, 8
        %s697 = scalar_lea.vmem %s5, %s696
        %p698 = pneg %p175
        %p699 = pneg %p172
        %p700 = scmp.lt.s32.totalorder %s18, 3
        %s701 = scalar_select %p700, %s18, 3
        %s702 = smul.addr %s701, 8
        %s703 = scalar_lea.vmem %s6, %s702
        %s704 = smul.u32 16, %s18
        %s705 = smul.u32 16, %s18
        %p706 = scmp.lt.s32.totalorder %s705, 63
        %s707 = scalar_select %p706, %s705, 63
        %s708 = smul.addr %s707, 8
        %s709 = scalar_lea.vmem %s5, %s708
        %s710 = smul.u32 16, %s18
        %p711 = scmp.lt.s32.totalorder %s18, 3
        %s712 = scalar_select %p711, %s18, 3
        %s713 = smul.addr %s712, 8
        %s714 = scalar_lea.vmem %s6, %s713
        %v716 = vld [vmem:[%s673] sm:$0xff]
        %v717 = vld [vmem:[%s673 + $0x8] sm:$0xff]
        %v718 = vld [vmem:[%s673 + $0x10] sm:$0xff]
        %v719 = vld [vmem:[%s673 + $0x18] sm:$0xff]
        %v720 = vld [vmem:[%s673 + $0x20] sm:$0xff]
        %v721 = vld [vmem:[%s673 + $0x28] sm:$0xff]
        %v722 = vld [vmem:[%s673 + $0x30] sm:$0xff]
        %v723 = vld [vmem:[%s673 + $0x38] sm:$0xff]
        %v724 = vld [vmem:[%s673 + $0x40] sm:$0xff]
        %v725 = vld [vmem:[%s673 + $0x48] sm:$0xff]
        %v726 = vld [vmem:[%s673 + $0x50] sm:$0xff]
        %v727 = vld [vmem:[%s673 + $0x58] sm:$0xff]
        %v728 = vld [vmem:[%s673 + $0x60] sm:$0xff]
        %v729 = vld [vmem:[%s673 + $0x68] sm:$0xff]
        %v730 = vld [vmem:[%s673 + $0x70] sm:$0xff]
        %v731 = vld [vmem:[%s673 + $0x78] sm:$0xff]
        %v732 = vld [vmem:[%s673 + $0x80] sm:$0xff]
        %v733 = vld [vmem:[%s673 + $0x88] sm:$0xff]
        %v734 = vld [vmem:[%s673 + $0x90] sm:$0xff]
        %v735 = vld [vmem:[%s673 + $0x98] sm:$0xff]
        %v736 = vld [vmem:[%s673 + $0xa0] sm:$0xff]
        %v737 = vld [vmem:[%s673 + $0xa8] sm:$0xff]
        %v738 = vld [vmem:[%s673 + $0xb0] sm:$0xff]
        %v739 = vld [vmem:[%s673 + $0xb8] sm:$0xff]
        %v740 = vld [vmem:[%s673 + $0xc0] sm:$0xff]
        %v741 = vld [vmem:[%s673 + $0xc8] sm:$0xff]
        %v742 = vld [vmem:[%s673 + $0xd0] sm:$0xff]
        %v743 = vld [vmem:[%s673 + $0xd8] sm:$0xff]
        %v744 = vld [vmem:[%s673 + $0xe0] sm:$0xff]
        %v745 = vld [vmem:[%s673 + $0xe8] sm:$0xff]
        %v746 = vld [vmem:[%s673 + $0xf0] sm:$0xff]
        %v747 = vld [vmem:[%s673 + $0xf8] sm:$0xff]
        %v748 = vld [vmem:[%s673 + $0x100] sm:$0xff]
        %v749 = vld [vmem:[%s673 + $0x108] sm:$0xff]
        %v750 = vld [vmem:[%s673 + $0x110] sm:$0xff]
        %v751 = vld [vmem:[%s673 + $0x118] sm:$0xff]
        %v752 = vld [vmem:[%s673 + $0x120] sm:$0xff]
        %v753 = vld [vmem:[%s673 + $0x128] sm:$0xff]
        %v754 = vld [vmem:[%s673 + $0x130] sm:$0xff]
        %v755 = vld [vmem:[%s673 + $0x138] sm:$0xff]
        %v756 = vld [vmem:[%s673 + $0x140] sm:$0xff]
        %v757 = vld [vmem:[%s673 + $0x148] sm:$0xff]
        %v758 = vld [vmem:[%s673 + $0x150] sm:$0xff]
        %v759 = vld [vmem:[%s673 + $0x158] sm:$0xff]
        %v760 = vld [vmem:[%s673 + $0x160] sm:$0xff]
        %v761 = vld [vmem:[%s673 + $0x168] sm:$0xff]
        %v762 = vld [vmem:[%s673 + $0x170] sm:$0xff]
        %v763 = vld [vmem:[%s673 + $0x178] sm:$0xff]
        %v764 = vld [vmem:[%s673 + $0x180] sm:$0xff]
        %v765 = vld [vmem:[%s673 + $0x188] sm:$0xff]
        %v766 = vld [vmem:[%s673 + $0x190] sm:$0xff]
        %v767 = vld [vmem:[%s673 + $0x198] sm:$0xff]
        %v768 = vld [vmem:[%s673 + $0x1a0] sm:$0xff]
        %v769 = vld [vmem:[%s673 + $0x1a8] sm:$0xff]
        %v770 = vld [vmem:[%s673 + $0x1b0] sm:$0xff]
        %v771 = vld [vmem:[%s673 + $0x1b8] sm:$0xff]
        %v772 = vld [vmem:[%s673 + $0x1c0] sm:$0xff]
        %v773 = vld [vmem:[%s673 + $0x1c8] sm:$0xff]
        %v774 = vld [vmem:[%s673 + $0x1d0] sm:$0xff]
        %v775 = vld [vmem:[%s673 + $0x1d8] sm:$0xff]
        %v776 = vld [vmem:[%s673 + $0x1e0] sm:$0xff]
        %v777 = vld [vmem:[%s673 + $0x1e8] sm:$0xff]
        %v778 = vld [vmem:[%s673 + $0x1f0] sm:$0xff]
        %v779 = vld [vmem:[%s673 + $0x1f8] sm:$0xff]
        %v780 = vld [vmem:[%s673 + $0x200] sm:$0xff]
        %v781 = vld [vmem:[%s673 + $0x208] sm:$0xff]
        %v782 = vld [vmem:[%s673 + $0x210] sm:$0xff]
        %v783 = vld [vmem:[%s673 + $0x218] sm:$0xff]
        %v784 = vld [vmem:[%s673 + $0x220] sm:$0xff]
        %v785 = vld [vmem:[%s673 + $0x228] sm:$0xff]
        %v786 = vld [vmem:[%s673 + $0x230] sm:$0xff]
        %v787 = vld [vmem:[%s673 + $0x238] sm:$0xff]
        %v788 = vld [vmem:[%s673 + $0x240] sm:$0xff]
        %v789 = vld [vmem:[%s673 + $0x248] sm:$0xff]
        %v790 = vld [vmem:[%s673 + $0x250] sm:$0xff]
        %v791 = vld [vmem:[%s673 + $0x258] sm:$0xff]
        %v792 = vld [vmem:[%s673 + $0x260] sm:$0xff]
        %v793 = vld [vmem:[%s673 + $0x268] sm:$0xff]
        %v794 = vld [vmem:[%s673 + $0x270] sm:$0xff]
        %v795 = vld [vmem:[%s673 + $0x278] sm:$0xff]
        %v796 = vld [vmem:[%s673 + $0x280] sm:$0xff]
        %v797 = vld [vmem:[%s673 + $0x288] sm:$0xff]
        %v798 = vld [vmem:[%s673 + $0x290] sm:$0xff]
        %v799 = vld [vmem:[%s673 + $0x298] sm:$0xff]
        %v800 = vld [vmem:[%s673 + $0x2a0] sm:$0xff]
        %v801 = vld [vmem:[%s673 + $0x2a8] sm:$0xff]
        %v802 = vld [vmem:[%s673 + $0x2b0] sm:$0xff]
        %v803 = vld [vmem:[%s673 + $0x2b8] sm:$0xff]
        %v804 = vld [vmem:[%s673 + $0x2c0] sm:$0xff]
        %v805 = vld [vmem:[%s673 + $0x2c8] sm:$0xff]
        %v806 = vld [vmem:[%s673 + $0x2d0] sm:$0xff]
        %v807 = vld [vmem:[%s673 + $0x2d8] sm:$0xff]
        %v808 = vld [vmem:[%s673 + $0x2e0] sm:$0xff]
        %v809 = vld [vmem:[%s673 + $0x2e8] sm:$0xff]
        %v810 = vld [vmem:[%s673 + $0x2f0] sm:$0xff]
        %v811 = vld [vmem:[%s673 + $0x2f8] sm:$0xff]
        %v812 = vld [vmem:[%s673 + $0x300] sm:$0xff]
        %v813 = vld [vmem:[%s673 + $0x308] sm:$0xff]
        %v814 = vld [vmem:[%s673 + $0x310] sm:$0xff]
        %v815 = vld [vmem:[%s673 + $0x318] sm:$0xff]
        %v816 = vld [vmem:[%s673 + $0x320] sm:$0xff]
        %v817 = vld [vmem:[%s673 + $0x328] sm:$0xff]
        %v818 = vld [vmem:[%s673 + $0x330] sm:$0xff]
        %v819 = vld [vmem:[%s673 + $0x338] sm:$0xff]
        %v820 = vld [vmem:[%s673 + $0x340] sm:$0xff]
        %v821 = vld [vmem:[%s673 + $0x348] sm:$0xff]
        %v822 = vld [vmem:[%s673 + $0x350] sm:$0xff]
        %v823 = vld [vmem:[%s673 + $0x358] sm:$0xff]
        %v824 = vld [vmem:[%s673 + $0x360] sm:$0xff]
        %v825 = vld [vmem:[%s673 + $0x368] sm:$0xff]
        %v826 = vld [vmem:[%s673 + $0x370] sm:$0xff]
        %v827 = vld [vmem:[%s673 + $0x378] sm:$0xff]
        %v828 = vld [vmem:[%s673 + $0x380] sm:$0xff]
        %v829 = vld [vmem:[%s673 + $0x388] sm:$0xff]
        %v830 = vld [vmem:[%s673 + $0x390] sm:$0xff]
        %v831 = vld [vmem:[%s673 + $0x398] sm:$0xff]
        %v832 = vld [vmem:[%s673 + $0x3a0] sm:$0xff]
        %v833 = vld [vmem:[%s673 + $0x3a8] sm:$0xff]
        %v834 = vld [vmem:[%s673 + $0x3b0] sm:$0xff]
        %v835 = vld [vmem:[%s673 + $0x3b8] sm:$0xff]
        %v836 = vld [vmem:[%s673 + $0x3c0] sm:$0xff]
        %v837 = vld [vmem:[%s673 + $0x3c8] sm:$0xff]
        %v838 = vld [vmem:[%s673 + $0x3d0] sm:$0xff]
        %v839 = vld [vmem:[%s673 + $0x3d8] sm:$0xff]
        %v840 = vld [vmem:[%s673 + $0x3e0] sm:$0xff]
        %v841 = vld [vmem:[%s673 + $0x3e8] sm:$0xff]
        %v842 = vld [vmem:[%s673 + $0x3f0] sm:$0xff]
        %v843 = vld [vmem:[%s673 + $0x3f8] sm:$0xff]
        %v844 = vld [vmem:[%s673 + $0x400] sm:$0xff]
        %v845 = vld [vmem:[%s673 + $0x408] sm:$0xff]
        %v846 = vld [vmem:[%s673 + $0x410] sm:$0xff]
        %v847 = vld [vmem:[%s673 + $0x418] sm:$0xff]
        %v848 = vld [vmem:[%s673 + $0x420] sm:$0xff]
        %v849 = vld [vmem:[%s673 + $0x428] sm:$0xff]
        %v850 = vld [vmem:[%s673 + $0x430] sm:$0xff]
        %v851 = vld [vmem:[%s673 + $0x438] sm:$0xff]
        %v852 = vld [vmem:[%s673 + $0x440] sm:$0xff]
        %v853 = vld [vmem:[%s673 + $0x448] sm:$0xff]
        %v854 = vld [vmem:[%s673 + $0x450] sm:$0xff]
        %v855 = vld [vmem:[%s673 + $0x458] sm:$0xff]
        %v856 = vld [vmem:[%s673 + $0x460] sm:$0xff]
        %v857 = vld [vmem:[%s673 + $0x468] sm:$0xff]
        %v858 = vld [vmem:[%s673 + $0x470] sm:$0xff]
        %v859 = vld [vmem:[%s673 + $0x478] sm:$0xff]
        %v860 = vld [vmem:[%s673 + $0x480] sm:$0xff]
        %v861 = vld [vmem:[%s673 + $0x488] sm:$0xff]
        %v862 = vld [vmem:[%s673 + $0x490] sm:$0xff]
        %v863 = vld [vmem:[%s673 + $0x498] sm:$0xff]
        %v864 = vld [vmem:[%s673 + $0x4a0] sm:$0xff]
        %v865 = vld [vmem:[%s673 + $0x4a8] sm:$0xff]
        %v866 = vld [vmem:[%s673 + $0x4b0] sm:$0xff]
        %v867 = vld [vmem:[%s673 + $0x4b8] sm:$0xff]
        %v868 = vld [vmem:[%s673 + $0x4c0] sm:$0xff]
        %v869 = vld [vmem:[%s673 + $0x4c8] sm:$0xff]
        %v870 = vld [vmem:[%s673 + $0x4d0] sm:$0xff]
        %v871 = vld [vmem:[%s673 + $0x4d8] sm:$0xff]
        %v872 = vld [vmem:[%s673 + $0x4e0] sm:$0xff]
        %v873 = vld [vmem:[%s673 + $0x4e8] sm:$0xff]
        %v874 = vld [vmem:[%s673 + $0x4f0] sm:$0xff]
        %v875 = vld [vmem:[%s673 + $0x4f8] sm:$0xff]
        %v876 = vld [vmem:[%s673 + $0x500] sm:$0xff]
        %v877 = vld [vmem:[%s673 + $0x508] sm:$0xff]
        %v878 = vld [vmem:[%s673 + $0x510] sm:$0xff]
        %v879 = vld [vmem:[%s673 + $0x518] sm:$0xff]
        %v880 = vld [vmem:[%s673 + $0x520] sm:$0xff]
        %v881 = vld [vmem:[%s673 + $0x528] sm:$0xff]
        %v882 = vld [vmem:[%s673 + $0x530] sm:$0xff]
        %v883 = vld [vmem:[%s673 + $0x538] sm:$0xff]
        %v884 = vld [vmem:[%s673 + $0x540] sm:$0xff]
        %v885 = vld [vmem:[%s673 + $0x548] sm:$0xff]
        %v886 = vld [vmem:[%s673 + $0x550] sm:$0xff]
        %v887 = vld [vmem:[%s673 + $0x558] sm:$0xff]
        %v888 = vld [vmem:[%s673 + $0x560] sm:$0xff]
        %v889 = vld [vmem:[%s673 + $0x568] sm:$0xff]
        %v890 = vld [vmem:[%s673 + $0x570] sm:$0xff]
        %v891 = vld [vmem:[%s673 + $0x578] sm:$0xff]
        %v892 = vld [vmem:[%s673 + $0x580] sm:$0xff]
        %v893 = vld [vmem:[%s673 + $0x588] sm:$0xff]
        %v894 = vld [vmem:[%s673 + $0x590] sm:$0xff]
        %v895 = vld [vmem:[%s673 + $0x598] sm:$0xff]
        %v896 = vld [vmem:[%s673 + $0x5a0] sm:$0xff]
        %v897 = vld [vmem:[%s673 + $0x5a8] sm:$0xff]
        %v898 = vld [vmem:[%s673 + $0x5b0] sm:$0xff]
        %v899 = vld [vmem:[%s673 + $0x5b8] sm:$0xff]
        %v900 = vld [vmem:[%s673 + $0x5c0] sm:$0xff]
        %v901 = vld [vmem:[%s673 + $0x5c8] sm:$0xff]
        %v902 = vld [vmem:[%s673 + $0x5d0] sm:$0xff]
        %v903 = vld [vmem:[%s673 + $0x5d8] sm:$0xff]
        %v904 = vld [vmem:[%s673 + $0x5e0] sm:$0xff]
        %v905 = vld [vmem:[%s673 + $0x5e8] sm:$0xff]
        %v906 = vld [vmem:[%s673 + $0x5f0] sm:$0xff]
        %v907 = vld [vmem:[%s673 + $0x5f8] sm:$0xff]
        %v908 = vld [vmem:[%s673 + $0x600] sm:$0xff]
        %v909 = vld [vmem:[%s673 + $0x608] sm:$0xff]
        %v910 = vld [vmem:[%s673 + $0x610] sm:$0xff]
        %v911 = vld [vmem:[%s673 + $0x618] sm:$0xff]
        %v912 = vld [vmem:[%s673 + $0x620] sm:$0xff]
        %v913 = vld [vmem:[%s673 + $0x628] sm:$0xff]
        %v914 = vld [vmem:[%s673 + $0x630] sm:$0xff]
        %v915 = vld [vmem:[%s673 + $0x638] sm:$0xff]
        %v916 = vld [vmem:[%s673 + $0x640] sm:$0xff]
        %v917 = vld [vmem:[%s673 + $0x648] sm:$0xff]
        %v918 = vld [vmem:[%s673 + $0x650] sm:$0xff]
        %v919 = vld [vmem:[%s673 + $0x658] sm:$0xff]
        %v920 = vld [vmem:[%s673 + $0x660] sm:$0xff]
        %v921 = vld [vmem:[%s673 + $0x668] sm:$0xff]
        %v922 = vld [vmem:[%s673 + $0x670] sm:$0xff]
        %v923 = vld [vmem:[%s673 + $0x678] sm:$0xff]
        %v924 = vld [vmem:[%s673 + $0x680] sm:$0xff]
        %v925 = vld [vmem:[%s673 + $0x688] sm:$0xff]
        %v926 = vld [vmem:[%s673 + $0x690] sm:$0xff]
        %v927 = vld [vmem:[%s673 + $0x698] sm:$0xff]
        %v928 = vld [vmem:[%s673 + $0x6a0] sm:$0xff]
        %v929 = vld [vmem:[%s673 + $0x6a8] sm:$0xff]
        %v930 = vld [vmem:[%s673 + $0x6b0] sm:$0xff]
        %v931 = vld [vmem:[%s673 + $0x6b8] sm:$0xff]
        %v932 = vunpack.c.l.bf16 %v716
        %v933 = vunpack.c.h.bf16 %v716
        %v934 = vunpack.c.l.bf16 %v717
        %v935 = vunpack.c.h.bf16 %v717
        %v936 = vunpack.c.l.bf16 %v718
        %v937 = vunpack.c.h.bf16 %v718
        %v938 = vunpack.c.l.bf16 %v719
        %v939 = vunpack.c.h.bf16 %v719
        %v940 = vunpack.c.l.bf16 %v720
        %v941 = vunpack.c.h.bf16 %v720
        %v942 = vunpack.c.l.bf16 %v721
        %v943 = vunpack.c.h.bf16 %v721
        %v944 = vunpack.c.l.bf16 %v722
        %v945 = vunpack.c.h.bf16 %v722
        %v946 = vunpack.c.l.bf16 %v723
        %v947 = vunpack.c.h.bf16 %v723
        %v948 = vunpack.c.l.bf16 %v724
        %v949 = vunpack.c.h.bf16 %v724
        %v950 = vunpack.c.l.bf16 %v725
        %v951 = vunpack.c.h.bf16 %v725
        %v952 = vunpack.c.l.bf16 %v726
        %v953 = vunpack.c.h.bf16 %v726
        %v954 = vunpack.c.l.bf16 %v727
        %v955 = vunpack.c.h.bf16 %v727
        %v956 = vunpack.c.l.bf16 %v728
        %v957 = vunpack.c.h.bf16 %v728
        %v958 = vunpack.c.l.bf16 %v729
        %v959 = vunpack.c.h.bf16 %v729
        %v960 = vunpack.c.l.bf16 %v730
        %v961 = vunpack.c.h.bf16 %v730
        %v962 = vunpack.c.l.bf16 %v731
        %v963 = vunpack.c.h.bf16 %v731
        %v964 = vunpack.c.l.bf16 %v732
        %v965 = vunpack.c.h.bf16 %v732
        %v966 = vunpack.c.l.bf16 %v733
        %v967 = vunpack.c.h.bf16 %v733
        %v968 = vunpack.c.l.bf16 %v734
        %v969 = vunpack.c.h.bf16 %v734
        %v970 = vunpack.c.l.bf16 %v735
        %v971 = vunpack.c.h.bf16 %v735
        %v972 = vunpack.c.l.bf16 %v736
        %v973 = vunpack.c.h.bf16 %v736
        %v974 = vunpack.c.l.bf16 %v737
        %v975 = vunpack.c.h.bf16 %v737
        %v976 = vunpack.c.l.bf16 %v738
        %v977 = vunpack.c.h.bf16 %v738
        %v978 = vunpack.c.l.bf16 %v739
        %v979 = vunpack.c.h.bf16 %v739
        %v980 = vunpack.c.l.bf16 %v740
        %v981 = vunpack.c.h.bf16 %v740
        %v982 = vunpack.c.l.bf16 %v741
        %v983 = vunpack.c.h.bf16 %v741
        %v984 = vunpack.c.l.bf16 %v742
        %v985 = vunpack.c.h.bf16 %v742
        %v986 = vunpack.c.l.bf16 %v743
        %v987 = vunpack.c.h.bf16 %v743
        %v988 = vunpack.c.l.bf16 %v744
        %v989 = vunpack.c.h.bf16 %v744
        %v990 = vunpack.c.l.bf16 %v745
        %v991 = vunpack.c.h.bf16 %v745
        %v992 = vunpack.c.l.bf16 %v746
        %v993 = vunpack.c.h.bf16 %v746
        %v994 = vunpack.c.l.bf16 %v747
        %v995 = vunpack.c.h.bf16 %v747
        %v996 = vunpack.c.l.bf16 %v748
        %v997 = vunpack.c.h.bf16 %v748
        %v998 = vunpack.c.l.bf16 %v749
        %v999 = vunpack.c.h.bf16 %v749
        %v1000 = vunpack.c.l.bf16 %v750
        %v1001 = vunpack.c.h.bf16 %v750
        %v1002 = vunpack.c.l.bf16 %v751
        %v1003 = vunpack.c.h.bf16 %v751
        %v1004 = vunpack.c.l.bf16 %v752
        %v1005 = vunpack.c.h.bf16 %v752
        %v1006 = vunpack.c.l.bf16 %v753
        %v1007 = vunpack.c.h.bf16 %v753
        %v1008 = vunpack.c.l.bf16 %v754
        %v1009 = vunpack.c.h.bf16 %v754
        %v1010 = vunpack.c.l.bf16 %v755
        %v1011 = vunpack.c.h.bf16 %v755
        %v1012 = vunpack.c.l.bf16 %v756
        %v1013 = vunpack.c.h.bf16 %v756
        %v1014 = vunpack.c.l.bf16 %v757
        %v1015 = vunpack.c.h.bf16 %v757
        %v1016 = vunpack.c.l.bf16 %v758
        %v1017 = vunpack.c.h.bf16 %v758
        %v1018 = vunpack.c.l.bf16 %v759
        %v1019 = vunpack.c.h.bf16 %v759
        %v1020 = vunpack.c.l.bf16 %v760
        %v1021 = vunpack.c.h.bf16 %v760
        %v1022 = vunpack.c.l.bf16 %v761
        %v1023 = vunpack.c.h.bf16 %v761
        %v1024 = vunpack.c.l.bf16 %v762
        %v1025 = vunpack.c.h.bf16 %v762
        %v1026 = vunpack.c.l.bf16 %v763
        %v1027 = vunpack.c.h.bf16 %v763
        %v1028 = vunpack.c.l.bf16 %v764
        %v1029 = vunpack.c.h.bf16 %v764
        %v1030 = vunpack.c.l.bf16 %v765
        %v1031 = vunpack.c.h.bf16 %v765
        %v1032 = vunpack.c.l.bf16 %v766
        %v1033 = vunpack.c.h.bf16 %v766
        %v1034 = vunpack.c.l.bf16 %v767
        %v1035 = vunpack.c.h.bf16 %v767
        %v1036 = vunpack.c.l.bf16 %v768
        %v1037 = vunpack.c.h.bf16 %v768
        %v1038 = vunpack.c.l.bf16 %v769
        %v1039 = vunpack.c.h.bf16 %v769
        %v1040 = vunpack.c.l.bf16 %v770
        %v1041 = vunpack.c.h.bf16 %v770
        %v1042 = vunpack.c.l.bf16 %v771
        %v1043 = vunpack.c.h.bf16 %v771
        %v1044 = vunpack.c.l.bf16 %v772
        %v1045 = vunpack.c.h.bf16 %v772
        %v1046 = vunpack.c.l.bf16 %v773
        %v1047 = vunpack.c.h.bf16 %v773
        %v1048 = vunpack.c.l.bf16 %v774
        %v1049 = vunpack.c.h.bf16 %v774
        %v1050 = vunpack.c.l.bf16 %v775
        %v1051 = vunpack.c.h.bf16 %v775
        %v1052 = vunpack.c.l.bf16 %v776
        %v1053 = vunpack.c.h.bf16 %v776
        %v1054 = vunpack.c.l.bf16 %v777
        %v1055 = vunpack.c.h.bf16 %v777
        %v1056 = vunpack.c.l.bf16 %v778
        %v1057 = vunpack.c.h.bf16 %v778
        %v1058 = vunpack.c.l.bf16 %v779
        %v1059 = vunpack.c.h.bf16 %v779
        %v1060 = vunpack.c.l.bf16 %v780
        %v1061 = vunpack.c.h.bf16 %v780
        %v1062 = vunpack.c.l.bf16 %v781
        %v1063 = vunpack.c.h.bf16 %v781
        %v1064 = vunpack.c.l.bf16 %v782
        %v1065 = vunpack.c.h.bf16 %v782
        %v1066 = vunpack.c.l.bf16 %v783
        %v1067 = vunpack.c.h.bf16 %v783
        %v1068 = vunpack.c.l.bf16 %v784
        %v1069 = vunpack.c.h.bf16 %v784
        %v1070 = vunpack.c.l.bf16 %v785
        %v1071 = vunpack.c.h.bf16 %v785
        %v1072 = vunpack.c.l.bf16 %v786
        %v1073 = vunpack.c.h.bf16 %v786
        %v1074 = vunpack.c.l.bf16 %v787
        %v1075 = vunpack.c.h.bf16 %v787
        %v1076 = vunpack.c.l.bf16 %v788
        %v1077 = vunpack.c.h.bf16 %v788
        %v1078 = vunpack.c.l.bf16 %v789
        %v1079 = vunpack.c.h.bf16 %v789
        %v1080 = vunpack.c.l.bf16 %v790
        %v1081 = vunpack.c.h.bf16 %v790
        %v1082 = vunpack.c.l.bf16 %v791
        %v1083 = vunpack.c.h.bf16 %v791
        %v1084 = vunpack.c.l.bf16 %v792
        %v1085 = vunpack.c.h.bf16 %v792
        %v1086 = vunpack.c.l.bf16 %v793
        %v1087 = vunpack.c.h.bf16 %v793
        %v1088 = vunpack.c.l.bf16 %v794
        %v1089 = vunpack.c.h.bf16 %v794
        %v1090 = vunpack.c.l.bf16 %v795
        %v1091 = vunpack.c.h.bf16 %v795
        %v1092 = vunpack.c.l.bf16 %v796
        %v1093 = vunpack.c.h.bf16 %v796
        %v1094 = vunpack.c.l.bf16 %v797
        %v1095 = vunpack.c.h.bf16 %v797
        %v1096 = vunpack.c.l.bf16 %v798
        %v1097 = vunpack.c.h.bf16 %v798
        %v1098 = vunpack.c.l.bf16 %v799
        %v1099 = vunpack.c.h.bf16 %v799
        %v1100 = vunpack.c.l.bf16 %v800
        %v1101 = vunpack.c.h.bf16 %v800
        %v1102 = vunpack.c.l.bf16 %v801
        %v1103 = vunpack.c.h.bf16 %v801
        %v1104 = vunpack.c.l.bf16 %v802
        %v1105 = vunpack.c.h.bf16 %v802
        %v1106 = vunpack.c.l.bf16 %v803
        %v1107 = vunpack.c.h.bf16 %v803
        %v1108 = vunpack.c.l.bf16 %v804
        %v1109 = vunpack.c.h.bf16 %v804
        %v1110 = vunpack.c.l.bf16 %v805
        %v1111 = vunpack.c.h.bf16 %v805
        %v1112 = vunpack.c.l.bf16 %v806
        %v1113 = vunpack.c.h.bf16 %v806
        %v1114 = vunpack.c.l.bf16 %v807
        %v1115 = vunpack.c.h.bf16 %v807
        %v1116 = vunpack.c.l.bf16 %v808
        %v1117 = vunpack.c.h.bf16 %v808
        %v1118 = vunpack.c.l.bf16 %v809
        %v1119 = vunpack.c.h.bf16 %v809
        %v1120 = vunpack.c.l.bf16 %v810
        %v1121 = vunpack.c.h.bf16 %v810
        %v1122 = vunpack.c.l.bf16 %v811
        %v1123 = vunpack.c.h.bf16 %v811
        %v1124 = vunpack.c.l.bf16 %v812
        %v1125 = vunpack.c.h.bf16 %v812
        %v1126 = vunpack.c.l.bf16 %v813
        %v1127 = vunpack.c.h.bf16 %v813
        %v1128 = vunpack.c.l.bf16 %v814
        %v1129 = vunpack.c.h.bf16 %v814
        %v1130 = vunpack.c.l.bf16 %v815
        %v1131 = vunpack.c.h.bf16 %v815
        %v1132 = vunpack.c.l.bf16 %v816
        %v1133 = vunpack.c.h.bf16 %v816
        %v1134 = vunpack.c.l.bf16 %v817
        %v1135 = vunpack.c.h.bf16 %v817
        %v1136 = vunpack.c.l.bf16 %v818
        %v1137 = vunpack.c.h.bf16 %v818
        %v1138 = vunpack.c.l.bf16 %v819
        %v1139 = vunpack.c.h.bf16 %v819
        %v1140 = vunpack.c.l.bf16 %v820
        %v1141 = vunpack.c.h.bf16 %v820
        %v1142 = vunpack.c.l.bf16 %v821
        %v1143 = vunpack.c.h.bf16 %v821
        %v1144 = vunpack.c.l.bf16 %v822
        %v1145 = vunpack.c.h.bf16 %v822
        %v1146 = vunpack.c.l.bf16 %v823
        %v1147 = vunpack.c.h.bf16 %v823
        %v1148 = vunpack.c.l.bf16 %v824
        %v1149 = vunpack.c.h.bf16 %v824
        %v1150 = vunpack.c.l.bf16 %v825
        %v1151 = vunpack.c.h.bf16 %v825
        %v1152 = vunpack.c.l.bf16 %v826
        %v1153 = vunpack.c.h.bf16 %v826
        %v1154 = vunpack.c.l.bf16 %v827
        %v1155 = vunpack.c.h.bf16 %v827
        %v1156 = vunpack.c.l.bf16 %v828
        %v1157 = vunpack.c.h.bf16 %v828
        %v1158 = vunpack.c.l.bf16 %v829
        %v1159 = vunpack.c.h.bf16 %v829
        %v1160 = vunpack.c.l.bf16 %v830
        %v1161 = vunpack.c.h.bf16 %v830
        %v1162 = vunpack.c.l.bf16 %v831
        %v1163 = vunpack.c.h.bf16 %v831
        %v1164 = vunpack.c.l.bf16 %v832
        %v1165 = vunpack.c.h.bf16 %v832
        %v1166 = vunpack.c.l.bf16 %v833
        %v1167 = vunpack.c.h.bf16 %v833
        %v1168 = vunpack.c.l.bf16 %v834
        %v1169 = vunpack.c.h.bf16 %v834
        %v1170 = vunpack.c.l.bf16 %v835
        %v1171 = vunpack.c.h.bf16 %v835
        %v1172 = vunpack.c.l.bf16 %v836
        %v1173 = vunpack.c.h.bf16 %v836
        %v1174 = vunpack.c.l.bf16 %v837
        %v1175 = vunpack.c.h.bf16 %v837
        %v1176 = vunpack.c.l.bf16 %v838
        %v1177 = vunpack.c.h.bf16 %v838
        %v1178 = vunpack.c.l.bf16 %v839
        %v1179 = vunpack.c.h.bf16 %v839
        %v1180 = vunpack.c.l.bf16 %v840
        %v1181 = vunpack.c.h.bf16 %v840
        %v1182 = vunpack.c.l.bf16 %v841
        %v1183 = vunpack.c.h.bf16 %v841
        %v1184 = vunpack.c.l.bf16 %v842
        %v1185 = vunpack.c.h.bf16 %v842
        %v1186 = vunpack.c.l.bf16 %v843
        %v1187 = vunpack.c.h.bf16 %v843
        %v1188 = vunpack.c.l.bf16 %v844
        %v1189 = vunpack.c.h.bf16 %v844
        %v1190 = vunpack.c.l.bf16 %v845
        %v1191 = vunpack.c.h.bf16 %v845
        %v1192 = vunpack.c.l.bf16 %v846
        %v1193 = vunpack.c.h.bf16 %v846
        %v1194 = vunpack.c.l.bf16 %v847
        %v1195 = vunpack.c.h.bf16 %v847
        %v1196 = vunpack.c.l.bf16 %v848
        %v1197 = vunpack.c.h.bf16 %v848
        %v1198 = vunpack.c.l.bf16 %v849
        %v1199 = vunpack.c.h.bf16 %v849
        %v1200 = vunpack.c.l.bf16 %v850
        %v1201 = vunpack.c.h.bf16 %v850
        %v1202 = vunpack.c.l.bf16 %v851
        %v1203 = vunpack.c.h.bf16 %v851
        %v1204 = vunpack.c.l.bf16 %v852
        %v1205 = vunpack.c.h.bf16 %v852
        %v1206 = vunpack.c.l.bf16 %v853
        %v1207 = vunpack.c.h.bf16 %v853
        %v1208 = vunpack.c.l.bf16 %v854
        %v1209 = vunpack.c.h.bf16 %v854
        %v1210 = vunpack.c.l.bf16 %v855
        %v1211 = vunpack.c.h.bf16 %v855
        %v1212 = vunpack.c.l.bf16 %v856
        %v1213 = vunpack.c.h.bf16 %v856
        %v1214 = vunpack.c.l.bf16 %v857
        %v1215 = vunpack.c.h.bf16 %v857
        %v1216 = vunpack.c.l.bf16 %v858
        %v1217 = vunpack.c.h.bf16 %v858
        %v1218 = vunpack.c.l.bf16 %v859
        %v1219 = vunpack.c.h.bf16 %v859
        %v1220 = vunpack.c.l.bf16 %v860
        %v1221 = vunpack.c.h.bf16 %v860
        %v1222 = vunpack.c.l.bf16 %v861
        %v1223 = vunpack.c.h.bf16 %v861
        %v1224 = vunpack.c.l.bf16 %v862
        %v1225 = vunpack.c.h.bf16 %v862
        %v1226 = vunpack.c.l.bf16 %v863
        %v1227 = vunpack.c.h.bf16 %v863
        %v1228 = vunpack.c.l.bf16 %v864
        %v1229 = vunpack.c.h.bf16 %v864
        %v1230 = vunpack.c.l.bf16 %v865
        %v1231 = vunpack.c.h.bf16 %v865
        %v1232 = vunpack.c.l.bf16 %v866
        %v1233 = vunpack.c.h.bf16 %v866
        %v1234 = vunpack.c.l.bf16 %v867
        %v1235 = vunpack.c.h.bf16 %v867
        %v1236 = vunpack.c.l.bf16 %v868
        %v1237 = vunpack.c.h.bf16 %v868
        %v1238 = vunpack.c.l.bf16 %v869
        %v1239 = vunpack.c.h.bf16 %v869
        %v1240 = vunpack.c.l.bf16 %v870
        %v1241 = vunpack.c.h.bf16 %v870
        %v1242 = vunpack.c.l.bf16 %v871
        %v1243 = vunpack.c.h.bf16 %v871
        %v1244 = vunpack.c.l.bf16 %v872
        %v1245 = vunpack.c.h.bf16 %v872
        %v1246 = vunpack.c.l.bf16 %v873
        %v1247 = vunpack.c.h.bf16 %v873
        %v1248 = vunpack.c.l.bf16 %v874
        %v1249 = vunpack.c.h.bf16 %v874
        %v1250 = vunpack.c.l.bf16 %v875
        %v1251 = vunpack.c.h.bf16 %v875
        %v1252 = vunpack.c.l.bf16 %v876
        %v1253 = vunpack.c.h.bf16 %v876
        %v1254 = vunpack.c.l.bf16 %v877
        %v1255 = vunpack.c.h.bf16 %v877
        %v1256 = vunpack.c.l.bf16 %v878
        %v1257 = vunpack.c.h.bf16 %v878
        %v1258 = vunpack.c.l.bf16 %v879
        %v1259 = vunpack.c.h.bf16 %v879
        %v1260 = vunpack.c.l.bf16 %v880
        %v1261 = vunpack.c.h.bf16 %v880
        %v1262 = vunpack.c.l.bf16 %v881
        %v1263 = vunpack.c.h.bf16 %v881
        %v1264 = vunpack.c.l.bf16 %v882
        %v1265 = vunpack.c.h.bf16 %v882
        %v1266 = vunpack.c.l.bf16 %v883
        %v1267 = vunpack.c.h.bf16 %v883
        %v1268 = vunpack.c.l.bf16 %v884
        %v1269 = vunpack.c.h.bf16 %v884
        %v1270 = vunpack.c.l.bf16 %v885
        %v1271 = vunpack.c.h.bf16 %v885
        %v1272 = vunpack.c.l.bf16 %v886
        %v1273 = vunpack.c.h.bf16 %v886
        %v1274 = vunpack.c.l.bf16 %v887
        %v1275 = vunpack.c.h.bf16 %v887
        %v1276 = vunpack.c.l.bf16 %v888
        %v1277 = vunpack.c.h.bf16 %v888
        %v1278 = vunpack.c.l.bf16 %v889
        %v1279 = vunpack.c.h.bf16 %v889
        %v1280 = vunpack.c.l.bf16 %v890
        %v1281 = vunpack.c.h.bf16 %v890
        %v1282 = vunpack.c.l.bf16 %v891
        %v1283 = vunpack.c.h.bf16 %v891
        %v1284 = vunpack.c.l.bf16 %v892
        %v1285 = vunpack.c.h.bf16 %v892
        %v1286 = vunpack.c.l.bf16 %v893
        %v1287 = vunpack.c.h.bf16 %v893
        %v1288 = vunpack.c.l.bf16 %v894
        %v1289 = vunpack.c.h.bf16 %v894
        %v1290 = vunpack.c.l.bf16 %v895
        %v1291 = vunpack.c.h.bf16 %v895
        %v1292 = vunpack.c.l.bf16 %v896
        %v1293 = vunpack.c.h.bf16 %v896
        %v1294 = vunpack.c.l.bf16 %v897
        %v1295 = vunpack.c.h.bf16 %v897
        %v1296 = vunpack.c.l.bf16 %v898
        %v1297 = vunpack.c.h.bf16 %v898
        %v1298 = vunpack.c.l.bf16 %v899
        %v1299 = vunpack.c.h.bf16 %v899
        %v1300 = vunpack.c.l.bf16 %v900
        %v1301 = vunpack.c.h.bf16 %v900
        %v1302 = vunpack.c.l.bf16 %v901
        %v1303 = vunpack.c.h.bf16 %v901
        %v1304 = vunpack.c.l.bf16 %v902
        %v1305 = vunpack.c.h.bf16 %v902
        %v1306 = vunpack.c.l.bf16 %v903
        %v1307 = vunpack.c.h.bf16 %v903
        %v1308 = vunpack.c.l.bf16 %v904
        %v1309 = vunpack.c.h.bf16 %v904
        %v1310 = vunpack.c.l.bf16 %v905
        %v1311 = vunpack.c.h.bf16 %v905
        %v1312 = vunpack.c.l.bf16 %v906
        %v1313 = vunpack.c.h.bf16 %v906
        %v1314 = vunpack.c.l.bf16 %v907
        %v1315 = vunpack.c.h.bf16 %v907
        %v1316 = vunpack.c.l.bf16 %v908
        %v1317 = vunpack.c.h.bf16 %v908
        %v1318 = vunpack.c.l.bf16 %v909
        %v1319 = vunpack.c.h.bf16 %v909
        %v1320 = vunpack.c.l.bf16 %v910
        %v1321 = vunpack.c.h.bf16 %v910
        %v1322 = vunpack.c.l.bf16 %v911
        %v1323 = vunpack.c.h.bf16 %v911
        %v1324 = vunpack.c.l.bf16 %v912
        %v1325 = vunpack.c.h.bf16 %v912
        %v1326 = vunpack.c.l.bf16 %v913
        %v1327 = vunpack.c.h.bf16 %v913
        %v1328 = vunpack.c.l.bf16 %v914
        %v1329 = vunpack.c.h.bf16 %v914
        %v1330 = vunpack.c.l.bf16 %v915
        %v1331 = vunpack.c.h.bf16 %v915
        %v1332 = vunpack.c.l.bf16 %v916
        %v1333 = vunpack.c.h.bf16 %v916
        %v1334 = vunpack.c.l.bf16 %v917
        %v1335 = vunpack.c.h.bf16 %v917
        %v1336 = vunpack.c.l.bf16 %v918
        %v1337 = vunpack.c.h.bf16 %v918
        %v1338 = vunpack.c.l.bf16 %v919
        %v1339 = vunpack.c.h.bf16 %v919
        %v1340 = vunpack.c.l.bf16 %v920
        %v1341 = vunpack.c.h.bf16 %v920
        %v1342 = vunpack.c.l.bf16 %v921
        %v1343 = vunpack.c.h.bf16 %v921
        %v1344 = vunpack.c.l.bf16 %v922
        %v1345 = vunpack.c.h.bf16 %v922
        %v1346 = vunpack.c.l.bf16 %v923
        %v1347 = vunpack.c.h.bf16 %v923
        %v1348 = vunpack.c.l.bf16 %v924
        %v1349 = vunpack.c.h.bf16 %v924
        %v1350 = vunpack.c.l.bf16 %v925
        %v1351 = vunpack.c.h.bf16 %v925
        %v1352 = vunpack.c.l.bf16 %v926
        %v1353 = vunpack.c.h.bf16 %v926
        %v1354 = vunpack.c.l.bf16 %v927
        %v1355 = vunpack.c.h.bf16 %v927
        %v1356 = vunpack.c.l.bf16 %v928
        %v1357 = vunpack.c.h.bf16 %v928
        %v1358 = vunpack.c.l.bf16 %v929
        %v1359 = vunpack.c.h.bf16 %v929
        %v1360 = vunpack.c.l.bf16 %v930
        %v1361 = vunpack.c.h.bf16 %v930
        %v1362 = vunpack.c.l.bf16 %v931
        %v1363 = vunpack.c.h.bf16 %v931
        %v1364 = vld [vmem:[%s3] sm:$0xff]
        %v1365 = vld [vmem:[%s3 + $0x8] sm:$0xff]
        %v1366 = vld [vmem:[%s3 + $0x10] sm:$0xff]
        %v1367 = vld [vmem:[%s3 + $0x18] sm:$0xff]
        %v1368 = vld [vmem:[%s3 + $0x20] sm:$0xff]
        %v1369 = vld [vmem:[%s3 + $0x28] sm:$0xff]
        %v1370 = vld [vmem:[%s3 + $0x30] sm:$0xff]
        %v1371 = vld [vmem:[%s3 + $0x38] sm:$0xff]
        %v1372 = vld [vmem:[%s3 + $0x40] sm:$0xff]
        %v1373 = vld [vmem:[%s3 + $0x48] sm:$0xff]
        %v1374 = vld [vmem:[%s3 + $0x50] sm:$0xff]
        %v1375 = vld [vmem:[%s3 + $0x58] sm:$0xff]
        %v1376 = vld [vmem:[%s3 + $0x60] sm:$0xff]
        %v1377 = vld [vmem:[%s3 + $0x68] sm:$0xff]
        %v1378 = vld [vmem:[%s3 + $0x70] sm:$0xff]
        %v1379 = vld [vmem:[%s3 + $0x78] sm:$0xff]
        %v1380 = vld [vmem:[%s3 + $0x80] sm:$0xff]
        %v1381 = vld [vmem:[%s3 + $0x88] sm:$0xff]
        %v1382 = vld [vmem:[%s3 + $0x90] sm:$0xff]
        %v1383 = vld [vmem:[%s3 + $0x98] sm:$0xff]
        %v1384 = vld [vmem:[%s3 + $0xa0] sm:$0xff]
        %v1385 = vld [vmem:[%s3 + $0xa8] sm:$0xff]
        %v1386 = vld [vmem:[%s3 + $0xb0] sm:$0xff]
        %v1387 = vld [vmem:[%s3 + $0xb8] sm:$0xff]
        %v1388 = vld [vmem:[%s3 + $0xc0] sm:$0xff]
        %v1389 = vld [vmem:[%s3 + $0xc8] sm:$0xff]
        %v1390 = vld [vmem:[%s3 + $0xd0] sm:$0xff]
        %1392 = vset.pattern.permute.xlu0 0
        %1393 = vperm.xlu0 %1392, %v1364
        %v1394 = vpop.permute.xlu0 %1393
        %1397 = vset.pattern.permute.xlu0 0
        %1398 = vperm.xlu0 %1397, %v1365
        %v1399 = vpop.permute.xlu0 %1398
        %1402 = vset.pattern.permute.xlu0 0
        %1403 = vperm.xlu0 %1402, %v1366
        %v1404 = vpop.permute.xlu0 %1403
        %1407 = vset.pattern.permute.xlu0 0
        %1408 = vperm.xlu0 %1407, %v1367
        %v1409 = vpop.permute.xlu0 %1408
        %1412 = vset.pattern.permute.xlu0 0
        %1413 = vperm.xlu0 %1412, %v1368
        %v1414 = vpop.permute.xlu0 %1413
        %1417 = vset.pattern.permute.xlu0 0
        %1418 = vperm.xlu0 %1417, %v1369
        %v1419 = vpop.permute.xlu0 %1418
        %1422 = vset.pattern.permute.xlu0 0
        %1423 = vperm.xlu0 %1422, %v1370
        %v1424 = vpop.permute.xlu0 %1423
        %1427 = vset.pattern.permute.xlu0 0
        %1428 = vperm.xlu0 %1427, %v1371
        %v1429 = vpop.permute.xlu0 %1428
        %1432 = vset.pattern.permute.xlu0 0
        %1433 = vperm.xlu0 %1432, %v1372
        %v1434 = vpop.permute.xlu0 %1433
        %1437 = vset.pattern.permute.xlu0 0
        %1438 = vperm.xlu0 %1437, %v1373
        %v1439 = vpop.permute.xlu0 %1438
        %1442 = vset.pattern.permute.xlu0 0
        %1443 = vperm.xlu0 %1442, %v1374
        %v1444 = vpop.permute.xlu0 %1443
        %1447 = vset.pattern.permute.xlu0 0
        %1448 = vperm.xlu0 %1447, %v1375
        %v1449 = vpop.permute.xlu0 %1448
        %1452 = vset.pattern.permute.xlu0 0
        %1453 = vperm.xlu0 %1452, %v1376
        %v1454 = vpop.permute.xlu0 %1453
        %1457 = vset.pattern.permute.xlu0 0
        %1458 = vperm.xlu0 %1457, %v1377
        %v1459 = vpop.permute.xlu0 %1458
        %1462 = vset.pattern.permute.xlu0 0
        %1463 = vperm.xlu0 %1462, %v1378
        %v1464 = vpop.permute.xlu0 %1463
        %1467 = vset.pattern.permute.xlu0 0
        %1468 = vperm.xlu0 %1467, %v1379
        %v1469 = vpop.permute.xlu0 %1468
        %1472 = vset.pattern.permute.xlu0 0
        %1473 = vperm.xlu0 %1472, %v1380
        %v1474 = vpop.permute.xlu0 %1473
        %1477 = vset.pattern.permute.xlu0 0
        %1478 = vperm.xlu0 %1477, %v1381
        %v1479 = vpop.permute.xlu0 %1478
        %1482 = vset.pattern.permute.xlu0 0
        %1483 = vperm.xlu0 %1482, %v1382
        %v1484 = vpop.permute.xlu0 %1483
        %1487 = vset.pattern.permute.xlu0 0
        %1488 = vperm.xlu0 %1487, %v1383
        %v1489 = vpop.permute.xlu0 %1488
        %1492 = vset.pattern.permute.xlu0 0
        %1493 = vperm.xlu0 %1492, %v1384
        %v1494 = vpop.permute.xlu0 %1493
        %1497 = vset.pattern.permute.xlu0 0
        %1498 = vperm.xlu0 %1497, %v1385
        %v1499 = vpop.permute.xlu0 %1498
        %1502 = vset.pattern.permute.xlu0 0
        %1503 = vperm.xlu0 %1502, %v1386
        %v1504 = vpop.permute.xlu0 %1503
        %1507 = vset.pattern.permute.xlu0 0
        %1508 = vperm.xlu0 %1507, %v1387
        %v1509 = vpop.permute.xlu0 %1508
        %1512 = vset.pattern.permute.xlu0 0
        %1513 = vperm.xlu0 %1512, %v1388
        %v1514 = vpop.permute.xlu0 %1513
        %1517 = vset.pattern.permute.xlu0 0
        %1518 = vperm.xlu0 %1517, %v1389
        %v1519 = vpop.permute.xlu0 %1518
        %1522 = vset.pattern.permute.xlu0 0
        %1523 = vperm.xlu0 %1522, %v1390
        %v1524 = vpop.permute.xlu0 %1523
        %v1526 = vmul.f32 %v932, %v1394
        %v1527 = vmul.f32 %v933, %v1394
        %v1528 = vmul.f32 %v934, %v1394
        %v1529 = vmul.f32 %v935, %v1394
        %v1530 = vmul.f32 %v936, %v1394
        %v1531 = vmul.f32 %v937, %v1394
        %v1532 = vmul.f32 %v938, %v1394
        %v1533 = vmul.f32 %v939, %v1394
        %v1534 = vmul.f32 %v940, %v1394
        %v1535 = vmul.f32 %v941, %v1394
        %v1536 = vmul.f32 %v942, %v1394
        %v1537 = vmul.f32 %v943, %v1394
        %v1538 = vmul.f32 %v944, %v1394
        %v1539 = vmul.f32 %v945, %v1394
        %v1540 = vmul.f32 %v946, %v1394
        %v1541 = vmul.f32 %v947, %v1394
        %v1542 = vmul.f32 %v948, %v1399
        %v1543 = vmul.f32 %v949, %v1399
        %v1544 = vmul.f32 %v950, %v1399
        %v1545 = vmul.f32 %v951, %v1399
        %v1546 = vmul.f32 %v952, %v1399
        %v1547 = vmul.f32 %v953, %v1399
        %v1548 = vmul.f32 %v954, %v1399
        %v1549 = vmul.f32 %v955, %v1399
        %v1550 = vmul.f32 %v956, %v1399
        %v1551 = vmul.f32 %v957, %v1399
        %v1552 = vmul.f32 %v958, %v1399
        %v1553 = vmul.f32 %v959, %v1399
        %v1554 = vmul.f32 %v960, %v1399
        %v1555 = vmul.f32 %v961, %v1399
        %v1556 = vmul.f32 %v962, %v1399
        %v1557 = vmul.f32 %v963, %v1399
        %v1558 = vmul.f32 %v964, %v1404
        %v1559 = vmul.f32 %v965, %v1404
        %v1560 = vmul.f32 %v966, %v1404
        %v1561 = vmul.f32 %v967, %v1404
        %v1562 = vmul.f32 %v968, %v1404
        %v1563 = vmul.f32 %v969, %v1404
        %v1564 = vmul.f32 %v970, %v1404
        %v1565 = vmul.f32 %v971, %v1404
        %v1566 = vmul.f32 %v972, %v1404
        %v1567 = vmul.f32 %v973, %v1404
        %v1568 = vmul.f32 %v974, %v1404
        %v1569 = vmul.f32 %v975, %v1404
        %v1570 = vmul.f32 %v976, %v1404
        %v1571 = vmul.f32 %v977, %v1404
        %v1572 = vmul.f32 %v978, %v1404
        %v1573 = vmul.f32 %v979, %v1404
        %v1574 = vmul.f32 %v980, %v1409
        %v1575 = vmul.f32 %v981, %v1409
        %v1576 = vmul.f32 %v982, %v1409
        %v1577 = vmul.f32 %v983, %v1409
        %v1578 = vmul.f32 %v984, %v1409
        %v1579 = vmul.f32 %v985, %v1409
        %v1580 = vmul.f32 %v986, %v1409
        %v1581 = vmul.f32 %v987, %v1409
        %v1582 = vmul.f32 %v988, %v1409
        %v1583 = vmul.f32 %v989, %v1409
        %v1584 = vmul.f32 %v990, %v1409
        %v1585 = vmul.f32 %v991, %v1409
        %v1586 = vmul.f32 %v992, %v1409
        %v1587 = vmul.f32 %v993, %v1409
        %v1588 = vmul.f32 %v994, %v1409
        %v1589 = vmul.f32 %v995, %v1409
        %v1590 = vmul.f32 %v996, %v1414
        %v1591 = vmul.f32 %v997, %v1414
        %v1592 = vmul.f32 %v998, %v1414
        %v1593 = vmul.f32 %v999, %v1414
        %v1594 = vmul.f32 %v1000, %v1414
        %v1595 = vmul.f32 %v1001, %v1414
        %v1596 = vmul.f32 %v1002, %v1414
        %v1597 = vmul.f32 %v1003, %v1414
        %v1598 = vmul.f32 %v1004, %v1414
        %v1599 = vmul.f32 %v1005, %v1414
        %v1600 = vmul.f32 %v1006, %v1414
        %v1601 = vmul.f32 %v1007, %v1414
        %v1602 = vmul.f32 %v1008, %v1414
        %v1603 = vmul.f32 %v1009, %v1414
        %v1604 = vmul.f32 %v1010, %v1414
        %v1605 = vmul.f32 %v1011, %v1414
        %v1606 = vmul.f32 %v1012, %v1419
        %v1607 = vmul.f32 %v1013, %v1419
        %v1608 = vmul.f32 %v1014, %v1419
        %v1609 = vmul.f32 %v1015, %v1419
        %v1610 = vmul.f32 %v1016, %v1419
        %v1611 = vmul.f32 %v1017, %v1419
        %v1612 = vmul.f32 %v1018, %v1419
        %v1613 = vmul.f32 %v1019, %v1419
        %v1614 = vmul.f32 %v1020, %v1419
        %v1615 = vmul.f32 %v1021, %v1419
        %v1616 = vmul.f32 %v1022, %v1419
        %v1617 = vmul.f32 %v1023, %v1419
        %v1618 = vmul.f32 %v1024, %v1419
        %v1619 = vmul.f32 %v1025, %v1419
        %v1620 = vmul.f32 %v1026, %v1419
        %v1621 = vmul.f32 %v1027, %v1419
        %v1622 = vmul.f32 %v1028, %v1424
        %v1623 = vmul.f32 %v1029, %v1424
        %v1624 = vmul.f32 %v1030, %v1424
        %v1625 = vmul.f32 %v1031, %v1424
        %v1626 = vmul.f32 %v1032, %v1424
        %v1627 = vmul.f32 %v1033, %v1424
        %v1628 = vmul.f32 %v1034, %v1424
        %v1629 = vmul.f32 %v1035, %v1424
        %v1630 = vmul.f32 %v1036, %v1424
        %v1631 = vmul.f32 %v1037, %v1424
        %v1632 = vmul.f32 %v1038, %v1424
        %v1633 = vmul.f32 %v1039, %v1424
        %v1634 = vmul.f32 %v1040, %v1424
        %v1635 = vmul.f32 %v1041, %v1424
        %v1636 = vmul.f32 %v1042, %v1424
        %v1637 = vmul.f32 %v1043, %v1424
        %v1638 = vmul.f32 %v1044, %v1429
        %v1639 = vmul.f32 %v1045, %v1429
        %v1640 = vmul.f32 %v1046, %v1429
        %v1641 = vmul.f32 %v1047, %v1429
        %v1642 = vmul.f32 %v1048, %v1429
        %v1643 = vmul.f32 %v1049, %v1429
        %v1644 = vmul.f32 %v1050, %v1429
        %v1645 = vmul.f32 %v1051, %v1429
        %v1646 = vmul.f32 %v1052, %v1429
        %v1647 = vmul.f32 %v1053, %v1429
        %v1648 = vmul.f32 %v1054, %v1429
        %v1649 = vmul.f32 %v1055, %v1429
        %v1650 = vmul.f32 %v1056, %v1429
        %v1651 = vmul.f32 %v1057, %v1429
        %v1652 = vmul.f32 %v1058, %v1429
        %v1653 = vmul.f32 %v1059, %v1429
        %v1654 = vmul.f32 %v1060, %v1434
        %v1655 = vmul.f32 %v1061, %v1434
        %v1656 = vmul.f32 %v1062, %v1434
        %v1657 = vmul.f32 %v1063, %v1434
        %v1658 = vmul.f32 %v1064, %v1434
        %v1659 = vmul.f32 %v1065, %v1434
        %v1660 = vmul.f32 %v1066, %v1434
        %v1661 = vmul.f32 %v1067, %v1434
        %v1662 = vmul.f32 %v1068, %v1434
        %v1663 = vmul.f32 %v1069, %v1434
        %v1664 = vmul.f32 %v1070, %v1434
        %v1665 = vmul.f32 %v1071, %v1434
        %v1666 = vmul.f32 %v1072, %v1434
        %v1667 = vmul.f32 %v1073, %v1434
        %v1668 = vmul.f32 %v1074, %v1434
        %v1669 = vmul.f32 %v1075, %v1434
        %v1670 = vmul.f32 %v1076, %v1439
        %v1671 = vmul.f32 %v1077, %v1439
        %v1672 = vmul.f32 %v1078, %v1439
        %v1673 = vmul.f32 %v1079, %v1439
        %v1674 = vmul.f32 %v1080, %v1439
        %v1675 = vmul.f32 %v1081, %v1439
        %v1676 = vmul.f32 %v1082, %v1439
        %v1677 = vmul.f32 %v1083, %v1439
        %v1678 = vmul.f32 %v1084, %v1439
        %v1679 = vmul.f32 %v1085, %v1439
        %v1680 = vmul.f32 %v1086, %v1439
        %v1681 = vmul.f32 %v1087, %v1439
        %v1682 = vmul.f32 %v1088, %v1439
        %v1683 = vmul.f32 %v1089, %v1439
        %v1684 = vmul.f32 %v1090, %v1439
        %v1685 = vmul.f32 %v1091, %v1439
        %v1686 = vmul.f32 %v1092, %v1444
        %v1687 = vmul.f32 %v1093, %v1444
        %v1688 = vmul.f32 %v1094, %v1444
        %v1689 = vmul.f32 %v1095, %v1444
        %v1690 = vmul.f32 %v1096, %v1444
        %v1691 = vmul.f32 %v1097, %v1444
        %v1692 = vmul.f32 %v1098, %v1444
        %v1693 = vmul.f32 %v1099, %v1444
        %v1694 = vmul.f32 %v1100, %v1444
        %v1695 = vmul.f32 %v1101, %v1444
        %v1696 = vmul.f32 %v1102, %v1444
        %v1697 = vmul.f32 %v1103, %v1444
        %v1698 = vmul.f32 %v1104, %v1444
        %v1699 = vmul.f32 %v1105, %v1444
        %v1700 = vmul.f32 %v1106, %v1444
        %v1701 = vmul.f32 %v1107, %v1444
        %v1702 = vmul.f32 %v1108, %v1449
        %v1703 = vmul.f32 %v1109, %v1449
        %v1704 = vmul.f32 %v1110, %v1449
        %v1705 = vmul.f32 %v1111, %v1449
        %v1706 = vmul.f32 %v1112, %v1449
        %v1707 = vmul.f32 %v1113, %v1449
        %v1708 = vmul.f32 %v1114, %v1449
        %v1709 = vmul.f32 %v1115, %v1449
        %v1710 = vmul.f32 %v1116, %v1449
        %v1711 = vmul.f32 %v1117, %v1449
        %v1712 = vmul.f32 %v1118, %v1449
        %v1713 = vmul.f32 %v1119, %v1449
        %v1714 = vmul.f32 %v1120, %v1449
        %v1715 = vmul.f32 %v1121, %v1449
        %v1716 = vmul.f32 %v1122, %v1449
        %v1717 = vmul.f32 %v1123, %v1449
        %v1718 = vmul.f32 %v1124, %v1454
        %v1719 = vmul.f32 %v1125, %v1454
        %v1720 = vmul.f32 %v1126, %v1454
        %v1721 = vmul.f32 %v1127, %v1454
        %v1722 = vmul.f32 %v1128, %v1454
        %v1723 = vmul.f32 %v1129, %v1454
        %v1724 = vmul.f32 %v1130, %v1454
        %v1725 = vmul.f32 %v1131, %v1454
        %v1726 = vmul.f32 %v1132, %v1454
        %v1727 = vmul.f32 %v1133, %v1454
        %v1728 = vmul.f32 %v1134, %v1454
        %v1729 = vmul.f32 %v1135, %v1454
        %v1730 = vmul.f32 %v1136, %v1454
        %v1731 = vmul.f32 %v1137, %v1454
        %v1732 = vmul.f32 %v1138, %v1454
        %v1733 = vmul.f32 %v1139, %v1454
        %v1734 = vmul.f32 %v1140, %v1459
        %v1735 = vmul.f32 %v1141, %v1459
        %v1736 = vmul.f32 %v1142, %v1459
        %v1737 = vmul.f32 %v1143, %v1459
        %v1738 = vmul.f32 %v1144, %v1459
        %v1739 = vmul.f32 %v1145, %v1459
        %v1740 = vmul.f32 %v1146, %v1459
        %v1741 = vmul.f32 %v1147, %v1459
        %v1742 = vmul.f32 %v1148, %v1459
        %v1743 = vmul.f32 %v1149, %v1459
        %v1744 = vmul.f32 %v1150, %v1459
        %v1745 = vmul.f32 %v1151, %v1459
        %v1746 = vmul.f32 %v1152, %v1459
        %v1747 = vmul.f32 %v1153, %v1459
        %v1748 = vmul.f32 %v1154, %v1459
        %v1749 = vmul.f32 %v1155, %v1459
        %v1750 = vmul.f32 %v1156, %v1464
        %v1751 = vmul.f32 %v1157, %v1464
        %v1752 = vmul.f32 %v1158, %v1464
        %v1753 = vmul.f32 %v1159, %v1464
        %v1754 = vmul.f32 %v1160, %v1464
        %v1755 = vmul.f32 %v1161, %v1464
        %v1756 = vmul.f32 %v1162, %v1464
        %v1757 = vmul.f32 %v1163, %v1464
        %v1758 = vmul.f32 %v1164, %v1464
        %v1759 = vmul.f32 %v1165, %v1464
        %v1760 = vmul.f32 %v1166, %v1464
        %v1761 = vmul.f32 %v1167, %v1464
        %v1762 = vmul.f32 %v1168, %v1464
        %v1763 = vmul.f32 %v1169, %v1464
        %v1764 = vmul.f32 %v1170, %v1464
        %v1765 = vmul.f32 %v1171, %v1464
        %v1766 = vmul.f32 %v1172, %v1469
        %v1767 = vmul.f32 %v1173, %v1469
        %v1768 = vmul.f32 %v1174, %v1469
        %v1769 = vmul.f32 %v1175, %v1469
        %v1770 = vmul.f32 %v1176, %v1469
        %v1771 = vmul.f32 %v1177, %v1469
        %v1772 = vmul.f32 %v1178, %v1469
        %v1773 = vmul.f32 %v1179, %v1469
        %v1774 = vmul.f32 %v1180, %v1469
        %v1775 = vmul.f32 %v1181, %v1469
        %v1776 = vmul.f32 %v1182, %v1469
        %v1777 = vmul.f32 %v1183, %v1469
        %v1778 = vmul.f32 %v1184, %v1469
        %v1779 = vmul.f32 %v1185, %v1469
        %v1780 = vmul.f32 %v1186, %v1469
        %v1781 = vmul.f32 %v1187, %v1469
        %v1782 = vmul.f32 %v1188, %v1474
        %v1783 = vmul.f32 %v1189, %v1474
        %v1784 = vmul.f32 %v1190, %v1474
        %v1785 = vmul.f32 %v1191, %v1474
        %v1786 = vmul.f32 %v1192, %v1474
        %v1787 = vmul.f32 %v1193, %v1474
        %v1788 = vmul.f32 %v1194, %v1474
        %v1789 = vmul.f32 %v1195, %v1474
        %v1790 = vmul.f32 %v1196, %v1474
        %v1791 = vmul.f32 %v1197, %v1474
        %v1792 = vmul.f32 %v1198, %v1474
        %v1793 = vmul.f32 %v1199, %v1474
        %v1794 = vmul.f32 %v1200, %v1474
        %v1795 = vmul.f32 %v1201, %v1474
        %v1796 = vmul.f32 %v1202, %v1474
        %v1797 = vmul.f32 %v1203, %v1474
        %v1798 = vmul.f32 %v1204, %v1479
        %v1799 = vmul.f32 %v1205, %v1479
        %v1800 = vmul.f32 %v1206, %v1479
        %v1801 = vmul.f32 %v1207, %v1479
        %v1802 = vmul.f32 %v1208, %v1479
        %v1803 = vmul.f32 %v1209, %v1479
        %v1804 = vmul.f32 %v1210, %v1479
        %v1805 = vmul.f32 %v1211, %v1479
        %v1806 = vmul.f32 %v1212, %v1479
        %v1807 = vmul.f32 %v1213, %v1479
        %v1808 = vmul.f32 %v1214, %v1479
        %v1809 = vmul.f32 %v1215, %v1479
        %v1810 = vmul.f32 %v1216, %v1479
        %v1811 = vmul.f32 %v1217, %v1479
        %v1812 = vmul.f32 %v1218, %v1479
        %v1813 = vmul.f32 %v1219, %v1479
        %v1814 = vmul.f32 %v1220, %v1484
        %v1815 = vmul.f32 %v1221, %v1484
        %v1816 = vmul.f32 %v1222, %v1484
        %v1817 = vmul.f32 %v1223, %v1484
        %v1818 = vmul.f32 %v1224, %v1484
        %v1819 = vmul.f32 %v1225, %v1484
        %v1820 = vmul.f32 %v1226, %v1484
        %v1821 = vmul.f32 %v1227, %v1484
        %v1822 = vmul.f32 %v1228, %v1484
        %v1823 = vmul.f32 %v1229, %v1484
        %v1824 = vmul.f32 %v1230, %v1484
        %v1825 = vmul.f32 %v1231, %v1484
        %v1826 = vmul.f32 %v1232, %v1484
        %v1827 = vmul.f32 %v1233, %v1484
        %v1828 = vmul.f32 %v1234, %v1484
        %v1829 = vmul.f32 %v1235, %v1484
        %v1830 = vmul.f32 %v1236, %v1489
        %v1831 = vmul.f32 %v1237, %v1489
        %v1832 = vmul.f32 %v1238, %v1489
        %v1833 = vmul.f32 %v1239, %v1489
        %v1834 = vmul.f32 %v1240, %v1489
        %v1835 = vmul.f32 %v1241, %v1489
        %v1836 = vmul.f32 %v1242, %v1489
        %v1837 = vmul.f32 %v1243, %v1489
        %v1838 = vmul.f32 %v1244, %v1489
        %v1839 = vmul.f32 %v1245, %v1489
        %v1840 = vmul.f32 %v1246, %v1489
        %v1841 = vmul.f32 %v1247, %v1489
        %v1842 = vmul.f32 %v1248, %v1489
        %v1843 = vmul.f32 %v1249, %v1489
        %v1844 = vmul.f32 %v1250, %v1489
        %v1845 = vmul.f32 %v1251, %v1489
        %v1846 = vmul.f32 %v1252, %v1494
        %v1847 = vmul.f32 %v1253, %v1494
        %v1848 = vmul.f32 %v1254, %v1494
        %v1849 = vmul.f32 %v1255, %v1494
        %v1850 = vmul.f32 %v1256, %v1494
        %v1851 = vmul.f32 %v1257, %v1494
        %v1852 = vmul.f32 %v1258, %v1494
        %v1853 = vmul.f32 %v1259, %v1494
        %v1854 = vmul.f32 %v1260, %v1494
        %v1855 = vmul.f32 %v1261, %v1494
        %v1856 = vmul.f32 %v1262, %v1494
        %v1857 = vmul.f32 %v1263, %v1494
        %v1858 = vmul.f32 %v1264, %v1494
        %v1859 = vmul.f32 %v1265, %v1494
        %v1860 = vmul.f32 %v1266, %v1494
        %v1861 = vmul.f32 %v1267, %v1494
        %v1862 = vmul.f32 %v1268, %v1499
        %v1863 = vmul.f32 %v1269, %v1499
        %v1864 = vmul.f32 %v1270, %v1499
        %v1865 = vmul.f32 %v1271, %v1499
        %v1866 = vmul.f32 %v1272, %v1499
        %v1867 = vmul.f32 %v1273, %v1499
        %v1868 = vmul.f32 %v1274, %v1499
        %v1869 = vmul.f32 %v1275, %v1499
        %v1870 = vmul.f32 %v1276, %v1499
        %v1871 = vmul.f32 %v1277, %v1499
        %v1872 = vmul.f32 %v1278, %v1499
        %v1873 = vmul.f32 %v1279, %v1499
        %v1874 = vmul.f32 %v1280, %v1499
        %v1875 = vmul.f32 %v1281, %v1499
        %v1876 = vmul.f32 %v1282, %v1499
        %v1877 = vmul.f32 %v1283, %v1499
        %v1878 = vmul.f32 %v1284, %v1504
        %v1879 = vmul.f32 %v1285, %v1504
        %v1880 = vmul.f32 %v1286, %v1504
        %v1881 = vmul.f32 %v1287, %v1504
        %v1882 = vmul.f32 %v1288, %v1504
        %v1883 = vmul.f32 %v1289, %v1504
        %v1884 = vmul.f32 %v1290, %v1504
        %v1885 = vmul.f32 %v1291, %v1504
        %v1886 = vmul.f32 %v1292, %v1504
        %v1887 = vmul.f32 %v1293, %v1504
        %v1888 = vmul.f32 %v1294, %v1504
        %v1889 = vmul.f32 %v1295, %v1504
        %v1890 = vmul.f32 %v1296, %v1504
        %v1891 = vmul.f32 %v1297, %v1504
        %v1892 = vmul.f32 %v1298, %v1504
        %v1893 = vmul.f32 %v1299, %v1504
        %v1894 = vmul.f32 %v1300, %v1509
        %v1895 = vmul.f32 %v1301, %v1509
        %v1896 = vmul.f32 %v1302, %v1509
        %v1897 = vmul.f32 %v1303, %v1509
        %v1898 = vmul.f32 %v1304, %v1509
        %v1899 = vmul.f32 %v1305, %v1509
        %v1900 = vmul.f32 %v1306, %v1509
        %v1901 = vmul.f32 %v1307, %v1509
        %v1902 = vmul.f32 %v1308, %v1509
        %v1903 = vmul.f32 %v1309, %v1509
        %v1904 = vmul.f32 %v1310, %v1509
        %v1905 = vmul.f32 %v1311, %v1509
        %v1906 = vmul.f32 %v1312, %v1509
        %v1907 = vmul.f32 %v1313, %v1509
        %v1908 = vmul.f32 %v1314, %v1509
        %v1909 = vmul.f32 %v1315, %v1509
        %v1910 = vmul.f32 %v1316, %v1514
        %v1911 = vmul.f32 %v1317, %v1514
        %v1912 = vmul.f32 %v1318, %v1514
        %v1913 = vmul.f32 %v1319, %v1514
        %v1914 = vmul.f32 %v1320, %v1514
        %v1915 = vmul.f32 %v1321, %v1514
        %v1916 = vmul.f32 %v1322, %v1514
        %v1917 = vmul.f32 %v1323, %v1514
        %v1918 = vmul.f32 %v1324, %v1514
        %v1919 = vmul.f32 %v1325, %v1514
        %v1920 = vmul.f32 %v1326, %v1514
        %v1921 = vmul.f32 %v1327, %v1514
        %v1922 = vmul.f32 %v1328, %v1514
        %v1923 = vmul.f32 %v1329, %v1514
        %v1924 = vmul.f32 %v1330, %v1514
        %v1925 = vmul.f32 %v1331, %v1514
        %v1926 = vmul.f32 %v1332, %v1519
        %v1927 = vmul.f32 %v1333, %v1519
        %v1928 = vmul.f32 %v1334, %v1519
        %v1929 = vmul.f32 %v1335, %v1519
        %v1930 = vmul.f32 %v1336, %v1519
        %v1931 = vmul.f32 %v1337, %v1519
        %v1932 = vmul.f32 %v1338, %v1519
        %v1933 = vmul.f32 %v1339, %v1519
        %v1934 = vmul.f32 %v1340, %v1519
        %v1935 = vmul.f32 %v1341, %v1519
        %v1936 = vmul.f32 %v1342, %v1519
        %v1937 = vmul.f32 %v1343, %v1519
        %v1938 = vmul.f32 %v1344, %v1519
        %v1939 = vmul.f32 %v1345, %v1519
        %v1940 = vmul.f32 %v1346, %v1519
        %v1941 = vmul.f32 %v1347, %v1519
        %v1942 = vmul.f32 %v1348, %v1524
        %v1943 = vmul.f32 %v1349, %v1524
        %v1944 = vmul.f32 %v1350, %v1524
        %v1945 = vmul.f32 %v1351, %v1524
        %v1946 = vmul.f32 %v1352, %v1524
        %v1947 = vmul.f32 %v1353, %v1524
        %v1948 = vmul.f32 %v1354, %v1524
        %v1949 = vmul.f32 %v1355, %v1524
        %v1950 = vmul.f32 %v1356, %v1524
        %v1951 = vmul.f32 %v1357, %v1524
        %v1952 = vmul.f32 %v1358, %v1524
        %v1953 = vmul.f32 %v1359, %v1524
        %v1954 = vmul.f32 %v1360, %v1524
        %v1955 = vmul.f32 %v1361, %v1524
        %v1956 = vmul.f32 %v1362, %v1524
        %v1957 = vmul.f32 %v1363, %v1524
        %v1958 = vld [vmem:[%s4] sm:$0xff]
        %v1959 = vld [vmem:[%s4 + $0x8] sm:$0xff]
        %v1960 = vld [vmem:[%s4 + $0x10] sm:$0xff]
        %v1961 = vld [vmem:[%s4 + $0x18] sm:$0xff]
        %v1962 = vld [vmem:[%s4 + $0x20] sm:$0xff]
        %v1963 = vld [vmem:[%s4 + $0x28] sm:$0xff]
        %v1964 = vld [vmem:[%s4 + $0x30] sm:$0xff]
        %v1965 = vld [vmem:[%s4 + $0x38] sm:$0xff]
        %v1966 = vld [vmem:[%s4 + $0x40] sm:$0xff]
        %v1967 = vld [vmem:[%s4 + $0x48] sm:$0xff]
        %v1968 = vld [vmem:[%s4 + $0x50] sm:$0xff]
        %v1969 = vld [vmem:[%s4 + $0x58] sm:$0xff]
        %v1970 = vld [vmem:[%s4 + $0x60] sm:$0xff]
        %v1971 = vld [vmem:[%s4 + $0x68] sm:$0xff]
        %v1972 = vld [vmem:[%s4 + $0x70] sm:$0xff]
        %v1973 = vld [vmem:[%s4 + $0x78] sm:$0xff]
        %v1974 = vld [vmem:[%s4 + $0x80] sm:$0xff]
        %v1975 = vld [vmem:[%s4 + $0x88] sm:$0xff]
        %v1976 = vld [vmem:[%s4 + $0x90] sm:$0xff]
        %v1977 = vld [vmem:[%s4 + $0x98] sm:$0xff]
        %v1978 = vld [vmem:[%s4 + $0xa0] sm:$0xff]
        %v1979 = vld [vmem:[%s4 + $0xa8] sm:$0xff]
        %v1980 = vld [vmem:[%s4 + $0xb0] sm:$0xff]
        %v1981 = vld [vmem:[%s4 + $0xb8] sm:$0xff]
        %v1982 = vld [vmem:[%s4 + $0xc0] sm:$0xff]
        %v1983 = vld [vmem:[%s4 + $0xc8] sm:$0xff]
        %v1984 = vld [vmem:[%s4 + $0xd0] sm:$0xff]
        %1986 = vset.pattern.permute.xlu0 0
        %1987 = vperm.xlu0 %1986, %v1958
        %v1988 = vpop.permute.xlu0 %1987
        %1991 = vset.pattern.permute.xlu0 0
        %1992 = vperm.xlu0 %1991, %v1959
        %v1993 = vpop.permute.xlu0 %1992
        %1996 = vset.pattern.permute.xlu0 0
        %1997 = vperm.xlu0 %1996, %v1960
        %v1998 = vpop.permute.xlu0 %1997
        %2001 = vset.pattern.permute.xlu0 0
        %2002 = vperm.xlu0 %2001, %v1961
        %v2003 = vpop.permute.xlu0 %2002
        %2006 = vset.pattern.permute.xlu0 0
        %2007 = vperm.xlu0 %2006, %v1962
        %v2008 = vpop.permute.xlu0 %2007
        %2011 = vset.pattern.permute.xlu0 0
        %2012 = vperm.xlu0 %2011, %v1963
        %v2013 = vpop.permute.xlu0 %2012
        %2016 = vset.pattern.permute.xlu0 0
        %2017 = vperm.xlu0 %2016, %v1964
        %v2018 = vpop.permute.xlu0 %2017
        %2021 = vset.pattern.permute.xlu0 0
        %2022 = vperm.xlu0 %2021, %v1965
        %v2023 = vpop.permute.xlu0 %2022
        %2026 = vset.pattern.permute.xlu0 0
        %2027 = vperm.xlu0 %2026, %v1966
        %v2028 = vpop.permute.xlu0 %2027
        %2031 = vset.pattern.permute.xlu0 0
        %2032 = vperm.xlu0 %2031, %v1967
        %v2033 = vpop.permute.xlu0 %2032
        %2036 = vset.pattern.permute.xlu0 0
        %2037 = vperm.xlu0 %2036, %v1968
        %v2038 = vpop.permute.xlu0 %2037
        %2041 = vset.pattern.permute.xlu0 0
        %2042 = vperm.xlu0 %2041, %v1969
        %v2043 = vpop.permute.xlu0 %2042
        %2046 = vset.pattern.permute.xlu0 0
        %2047 = vperm.xlu0 %2046, %v1970
        %v2048 = vpop.permute.xlu0 %2047
        %2051 = vset.pattern.permute.xlu0 0
        %2052 = vperm.xlu0 %2051, %v1971
        %v2053 = vpop.permute.xlu0 %2052
        %2056 = vset.pattern.permute.xlu0 0
        %2057 = vperm.xlu0 %2056, %v1972
        %v2058 = vpop.permute.xlu0 %2057
        %2061 = vset.pattern.permute.xlu0 0
        %2062 = vperm.xlu0 %2061, %v1973
        %v2063 = vpop.permute.xlu0 %2062
        %2066 = vset.pattern.permute.xlu0 0
        %2067 = vperm.xlu0 %2066, %v1974
        %v2068 = vpop.permute.xlu0 %2067
        %2071 = vset.pattern.permute.xlu0 0
        %2072 = vperm.xlu0 %2071, %v1975
        %v2073 = vpop.permute.xlu0 %2072
        %2076 = vset.pattern.permute.xlu0 0
        %2077 = vperm.xlu0 %2076, %v1976
        %v2078 = vpop.permute.xlu0 %2077
        %2081 = vset.pattern.permute.xlu0 0
        %2082 = vperm.xlu0 %2081, %v1977
        %v2083 = vpop.permute.xlu0 %2082
        %2086 = vset.pattern.permute.xlu0 0
        %2087 = vperm.xlu0 %2086, %v1978
        %v2088 = vpop.permute.xlu0 %2087
        %2091 = vset.pattern.permute.xlu0 0
        %2092 = vperm.xlu0 %2091, %v1979
        %v2093 = vpop.permute.xlu0 %2092
        %2096 = vset.pattern.permute.xlu0 0
        %2097 = vperm.xlu0 %2096, %v1980
        %v2098 = vpop.permute.xlu0 %2097
        %2101 = vset.pattern.permute.xlu0 0
        %2102 = vperm.xlu0 %2101, %v1981
        %v2103 = vpop.permute.xlu0 %2102
        %2106 = vset.pattern.permute.xlu0 0
        %2107 = vperm.xlu0 %2106, %v1982
        %v2108 = vpop.permute.xlu0 %2107
        %2111 = vset.pattern.permute.xlu0 0
        %2112 = vperm.xlu0 %2111, %v1983
        %v2113 = vpop.permute.xlu0 %2112
        %2116 = vset.pattern.permute.xlu0 0
        %2117 = vperm.xlu0 %2116, %v1984
        %v2118 = vpop.permute.xlu0 %2117
        %v2120 = vadd.f32 %v1526, %v1988
        %v2121 = vadd.f32 %v1527, %v1988
        %v2122 = vadd.f32 %v1528, %v1988
        %v2123 = vadd.f32 %v1529, %v1988
        %v2124 = vadd.f32 %v1530, %v1988
        %v2125 = vadd.f32 %v1531, %v1988
        %v2126 = vadd.f32 %v1532, %v1988
        %v2127 = vadd.f32 %v1533, %v1988
        %v2128 = vadd.f32 %v1534, %v1988
        %v2129 = vadd.f32 %v1535, %v1988
        %v2130 = vadd.f32 %v1536, %v1988
        %v2131 = vadd.f32 %v1537, %v1988
        %v2132 = vadd.f32 %v1538, %v1988
        %v2133 = vadd.f32 %v1539, %v1988
        %v2134 = vadd.f32 %v1540, %v1988
        %v2135 = vadd.f32 %v1541, %v1988
        %v2136 = vadd.f32 %v1542, %v1993
        %v2137 = vadd.f32 %v1543, %v1993
        %v2138 = vadd.f32 %v1544, %v1993
        %v2139 = vadd.f32 %v1545, %v1993
        %v2140 = vadd.f32 %v1546, %v1993
        %v2141 = vadd.f32 %v1547, %v1993
        %v2142 = vadd.f32 %v1548, %v1993
        %v2143 = vadd.f32 %v1549, %v1993
        %v2144 = vadd.f32 %v1550, %v1993
        %v2145 = vadd.f32 %v1551, %v1993
        %v2146 = vadd.f32 %v1552, %v1993
        %v2147 = vadd.f32 %v1553, %v1993
        %v2148 = vadd.f32 %v1554, %v1993
        %v2149 = vadd.f32 %v1555, %v1993
        %v2150 = vadd.f32 %v1556, %v1993
        %v2151 = vadd.f32 %v1557, %v1993
        %v2152 = vadd.f32 %v1558, %v1998
        %v2153 = vadd.f32 %v1559, %v1998
        %v2154 = vadd.f32 %v1560, %v1998
        %v2155 = vadd.f32 %v1561, %v1998
        %v2156 = vadd.f32 %v1562, %v1998
        %v2157 = vadd.f32 %v1563, %v1998
        %v2158 = vadd.f32 %v1564, %v1998
        %v2159 = vadd.f32 %v1565, %v1998
        %v2160 = vadd.f32 %v1566, %v1998
        %v2161 = vadd.f32 %v1567, %v1998
        %v2162 = vadd.f32 %v1568, %v1998
        %v2163 = vadd.f32 %v1569, %v1998
        %v2164 = vadd.f32 %v1570, %v1998
        %v2165 = vadd.f32 %v1571, %v1998
        %v2166 = vadd.f32 %v1572, %v1998
        %v2167 = vadd.f32 %v1573, %v1998
        %v2168 = vadd.f32 %v1574, %v2003
        %v2169 = vadd.f32 %v1575, %v2003
        %v2170 = vadd.f32 %v1576, %v2003
        %v2171 = vadd.f32 %v1577, %v2003
        %v2172 = vadd.f32 %v1578, %v2003
        %v2173 = vadd.f32 %v1579, %v2003
        %v2174 = vadd.f32 %v1580, %v2003
        %v2175 = vadd.f32 %v1581, %v2003
        %v2176 = vadd.f32 %v1582, %v2003
        %v2177 = vadd.f32 %v1583, %v2003
        %v2178 = vadd.f32 %v1584, %v2003
        %v2179 = vadd.f32 %v1585, %v2003
        %v2180 = vadd.f32 %v1586, %v2003
        %v2181 = vadd.f32 %v1587, %v2003
        %v2182 = vadd.f32 %v1588, %v2003
        %v2183 = vadd.f32 %v1589, %v2003
        %v2184 = vadd.f32 %v1590, %v2008
        %v2185 = vadd.f32 %v1591, %v2008
        %v2186 = vadd.f32 %v1592, %v2008
        %v2187 = vadd.f32 %v1593, %v2008
        %v2188 = vadd.f32 %v1594, %v2008
        %v2189 = vadd.f32 %v1595, %v2008
        %v2190 = vadd.f32 %v1596, %v2008
        %v2191 = vadd.f32 %v1597, %v2008
        %v2192 = vadd.f32 %v1598, %v2008
        %v2193 = vadd.f32 %v1599, %v2008
        %v2194 = vadd.f32 %v1600, %v2008
        %v2195 = vadd.f32 %v1601, %v2008
        %v2196 = vadd.f32 %v1602, %v2008
        %v2197 = vadd.f32 %v1603, %v2008
        %v2198 = vadd.f32 %v1604, %v2008
        %v2199 = vadd.f32 %v1605, %v2008
        %v2200 = vadd.f32 %v1606, %v2013
        %v2201 = vadd.f32 %v1607, %v2013
        %v2202 = vadd.f32 %v1608, %v2013
        %v2203 = vadd.f32 %v1609, %v2013
        %v2204 = vadd.f32 %v1610, %v2013
        %v2205 = vadd.f32 %v1611, %v2013
        %v2206 = vadd.f32 %v1612, %v2013
        %v2207 = vadd.f32 %v1613, %v2013
        %v2208 = vadd.f32 %v1614, %v2013
        %v2209 = vadd.f32 %v1615, %v2013
        %v2210 = vadd.f32 %v1616, %v2013
        %v2211 = vadd.f32 %v1617, %v2013
        %v2212 = vadd.f32 %v1618, %v2013
        %v2213 = vadd.f32 %v1619, %v2013
        %v2214 = vadd.f32 %v1620, %v2013
        %v2215 = vadd.f32 %v1621, %v2013
        %v2216 = vadd.f32 %v1622, %v2018
        %v2217 = vadd.f32 %v1623, %v2018
        %v2218 = vadd.f32 %v1624, %v2018
        %v2219 = vadd.f32 %v1625, %v2018
        %v2220 = vadd.f32 %v1626, %v2018
        %v2221 = vadd.f32 %v1627, %v2018
        %v2222 = vadd.f32 %v1628, %v2018
        %v2223 = vadd.f32 %v1629, %v2018
        %v2224 = vadd.f32 %v1630, %v2018
        %v2225 = vadd.f32 %v1631, %v2018
        %v2226 = vadd.f32 %v1632, %v2018
        %v2227 = vadd.f32 %v1633, %v2018
        %v2228 = vadd.f32 %v1634, %v2018
        %v2229 = vadd.f32 %v1635, %v2018
        %v2230 = vadd.f32 %v1636, %v2018
        %v2231 = vadd.f32 %v1637, %v2018
        %v2232 = vadd.f32 %v1638, %v2023
        %v2233 = vadd.f32 %v1639, %v2023
        %v2234 = vadd.f32 %v1640, %v2023
        %v2235 = vadd.f32 %v1641, %v2023
        %v2236 = vadd.f32 %v1642, %v2023
        %v2237 = vadd.f32 %v1643, %v2023
        %v2238 = vadd.f32 %v1644, %v2023
        %v2239 = vadd.f32 %v1645, %v2023
        %v2240 = vadd.f32 %v1646, %v2023
        %v2241 = vadd.f32 %v1647, %v2023
        %v2242 = vadd.f32 %v1648, %v2023
        %v2243 = vadd.f32 %v1649, %v2023
        %v2244 = vadd.f32 %v1650, %v2023
        %v2245 = vadd.f32 %v1651, %v2023
        %v2246 = vadd.f32 %v1652, %v2023
        %v2247 = vadd.f32 %v1653, %v2023
        %v2248 = vadd.f32 %v1654, %v2028
        %v2249 = vadd.f32 %v1655, %v2028
        %v2250 = vadd.f32 %v1656, %v2028
        %v2251 = vadd.f32 %v1657, %v2028
        %v2252 = vadd.f32 %v1658, %v2028
        %v2253 = vadd.f32 %v1659, %v2028
        %v2254 = vadd.f32 %v1660, %v2028
        %v2255 = vadd.f32 %v1661, %v2028
        %v2256 = vadd.f32 %v1662, %v2028
        %v2257 = vadd.f32 %v1663, %v2028
        %v2258 = vadd.f32 %v1664, %v2028
        %v2259 = vadd.f32 %v1665, %v2028
        %v2260 = vadd.f32 %v1666, %v2028
        %v2261 = vadd.f32 %v1667, %v2028
        %v2262 = vadd.f32 %v1668, %v2028
        %v2263 = vadd.f32 %v1669, %v2028
        %v2264 = vadd.f32 %v1670, %v2033
        %v2265 = vadd.f32 %v1671, %v2033
        %v2266 = vadd.f32 %v1672, %v2033
        %v2267 = vadd.f32 %v1673, %v2033
        %v2268 = vadd.f32 %v1674, %v2033
        %v2269 = vadd.f32 %v1675, %v2033
        %v2270 = vadd.f32 %v1676, %v2033
        %v2271 = vadd.f32 %v1677, %v2033
        %v2272 = vadd.f32 %v1678, %v2033
        %v2273 = vadd.f32 %v1679, %v2033
        %v2274 = vadd.f32 %v1680, %v2033
        %v2275 = vadd.f32 %v1681, %v2033
        %v2276 = vadd.f32 %v1682, %v2033
        %v2277 = vadd.f32 %v1683, %v2033
        %v2278 = vadd.f32 %v1684, %v2033
        %v2279 = vadd.f32 %v1685, %v2033
        %v2280 = vadd.f32 %v1686, %v2038
        %v2281 = vadd.f32 %v1687, %v2038
        %v2282 = vadd.f32 %v1688, %v2038
        %v2283 = vadd.f32 %v1689, %v2038
        %v2284 = vadd.f32 %v1690, %v2038
        %v2285 = vadd.f32 %v1691, %v2038
        %v2286 = vadd.f32 %v1692, %v2038
        %v2287 = vadd.f32 %v1693, %v2038
        %v2288 = vadd.f32 %v1694, %v2038
        %v2289 = vadd.f32 %v1695, %v2038
        %v2290 = vadd.f32 %v1696, %v2038
        %v2291 = vadd.f32 %v1697, %v2038
        %v2292 = vadd.f32 %v1698, %v2038
        %v2293 = vadd.f32 %v1699, %v2038
        %v2294 = vadd.f32 %v1700, %v2038
        %v2295 = vadd.f32 %v1701, %v2038
        %v2296 = vadd.f32 %v1702, %v2043
        %v2297 = vadd.f32 %v1703, %v2043
        %v2298 = vadd.f32 %v1704, %v2043
        %v2299 = vadd.f32 %v1705, %v2043
        %v2300 = vadd.f32 %v1706, %v2043
        %v2301 = vadd.f32 %v1707, %v2043
        %v2302 = vadd.f32 %v1708, %v2043
        %v2303 = vadd.f32 %v1709, %v2043
        %v2304 = vadd.f32 %v1710, %v2043
        %v2305 = vadd.f32 %v1711, %v2043
        %v2306 = vadd.f32 %v1712, %v2043
        %v2307 = vadd.f32 %v1713, %v2043
        %v2308 = vadd.f32 %v1714, %v2043
        %v2309 = vadd.f32 %v1715, %v2043
        %v2310 = vadd.f32 %v1716, %v2043
        %v2311 = vadd.f32 %v1717, %v2043
        %v2312 = vadd.f32 %v1718, %v2048
        %v2313 = vadd.f32 %v1719, %v2048
        %v2314 = vadd.f32 %v1720, %v2048
        %v2315 = vadd.f32 %v1721, %v2048
        %v2316 = vadd.f32 %v1722, %v2048
        %v2317 = vadd.f32 %v1723, %v2048
        %v2318 = vadd.f32 %v1724, %v2048
        %v2319 = vadd.f32 %v1725, %v2048
        %v2320 = vadd.f32 %v1726, %v2048
        %v2321 = vadd.f32 %v1727, %v2048
        %v2322 = vadd.f32 %v1728, %v2048
        %v2323 = vadd.f32 %v1729, %v2048
        %v2324 = vadd.f32 %v1730, %v2048
        %v2325 = vadd.f32 %v1731, %v2048
        %v2326 = vadd.f32 %v1732, %v2048
        %v2327 = vadd.f32 %v1733, %v2048
        %v2328 = vadd.f32 %v1734, %v2053
        %v2329 = vadd.f32 %v1735, %v2053
        %v2330 = vadd.f32 %v1736, %v2053
        %v2331 = vadd.f32 %v1737, %v2053
        %v2332 = vadd.f32 %v1738, %v2053
        %v2333 = vadd.f32 %v1739, %v2053
        %v2334 = vadd.f32 %v1740, %v2053
        %v2335 = vadd.f32 %v1741, %v2053
        %v2336 = vadd.f32 %v1742, %v2053
        %v2337 = vadd.f32 %v1743, %v2053
        %v2338 = vadd.f32 %v1744, %v2053
        %v2339 = vadd.f32 %v1745, %v2053
        %v2340 = vadd.f32 %v1746, %v2053
        %v2341 = vadd.f32 %v1747, %v2053
        %v2342 = vadd.f32 %v1748, %v2053
        %v2343 = vadd.f32 %v1749, %v2053
        %v2344 = vadd.f32 %v1750, %v2058
        %v2345 = vadd.f32 %v1751, %v2058
        %v2346 = vadd.f32 %v1752, %v2058
        %v2347 = vadd.f32 %v1753, %v2058
        %v2348 = vadd.f32 %v1754, %v2058
        %v2349 = vadd.f32 %v1755, %v2058
        %v2350 = vadd.f32 %v1756, %v2058
        %v2351 = vadd.f32 %v1757, %v2058
        %v2352 = vadd.f32 %v1758, %v2058
        %v2353 = vadd.f32 %v1759, %v2058
        %v2354 = vadd.f32 %v1760, %v2058
        %v2355 = vadd.f32 %v1761, %v2058
        %v2356 = vadd.f32 %v1762, %v2058
        %v2357 = vadd.f32 %v1763, %v2058
        %v2358 = vadd.f32 %v1764, %v2058
        %v2359 = vadd.f32 %v1765, %v2058
        %v2360 = vadd.f32 %v1766, %v2063
        %v2361 = vadd.f32 %v1767, %v2063
        %v2362 = vadd.f32 %v1768, %v2063
        %v2363 = vadd.f32 %v1769, %v2063
        %v2364 = vadd.f32 %v1770, %v2063
        %v2365 = vadd.f32 %v1771, %v2063
        %v2366 = vadd.f32 %v1772, %v2063
        %v2367 = vadd.f32 %v1773, %v2063
        %v2368 = vadd.f32 %v1774, %v2063
        %v2369 = vadd.f32 %v1775, %v2063
        %v2370 = vadd.f32 %v1776, %v2063
        %v2371 = vadd.f32 %v1777, %v2063
        %v2372 = vadd.f32 %v1778, %v2063
        %v2373 = vadd.f32 %v1779, %v2063
        %v2374 = vadd.f32 %v1780, %v2063
        %v2375 = vadd.f32 %v1781, %v2063
        %v2376 = vadd.f32 %v1782, %v2068
        %v2377 = vadd.f32 %v1783, %v2068
        %v2378 = vadd.f32 %v1784, %v2068
        %v2379 = vadd.f32 %v1785, %v2068
        %v2380 = vadd.f32 %v1786, %v2068
        %v2381 = vadd.f32 %v1787, %v2068
        %v2382 = vadd.f32 %v1788, %v2068
        %v2383 = vadd.f32 %v1789, %v2068
        %v2384 = vadd.f32 %v1790, %v2068
        %v2385 = vadd.f32 %v1791, %v2068
        %v2386 = vadd.f32 %v1792, %v2068
        %v2387 = vadd.f32 %v1793, %v2068
        %v2388 = vadd.f32 %v1794, %v2068
        %v2389 = vadd.f32 %v1795, %v2068
        %v2390 = vadd.f32 %v1796, %v2068
        %v2391 = vadd.f32 %v1797, %v2068
        %v2392 = vadd.f32 %v1798, %v2073
        %v2393 = vadd.f32 %v1799, %v2073
        %v2394 = vadd.f32 %v1800, %v2073
        %v2395 = vadd.f32 %v1801, %v2073
        %v2396 = vadd.f32 %v1802, %v2073
        %v2397 = vadd.f32 %v1803, %v2073
        %v2398 = vadd.f32 %v1804, %v2073
        %v2399 = vadd.f32 %v1805, %v2073
        %v2400 = vadd.f32 %v1806, %v2073
        %v2401 = vadd.f32 %v1807, %v2073
        %v2402 = vadd.f32 %v1808, %v2073
        %v2403 = vadd.f32 %v1809, %v2073
        %v2404 = vadd.f32 %v1810, %v2073
        %v2405 = vadd.f32 %v1811, %v2073
        %v2406 = vadd.f32 %v1812, %v2073
        %v2407 = vadd.f32 %v1813, %v2073
        %v2408 = vadd.f32 %v1814, %v2078
        %v2409 = vadd.f32 %v1815, %v2078
        %v2410 = vadd.f32 %v1816, %v2078
        %v2411 = vadd.f32 %v1817, %v2078
        %v2412 = vadd.f32 %v1818, %v2078
        %v2413 = vadd.f32 %v1819, %v2078
        %v2414 = vadd.f32 %v1820, %v2078
        %v2415 = vadd.f32 %v1821, %v2078
        %v2416 = vadd.f32 %v1822, %v2078
        %v2417 = vadd.f32 %v1823, %v2078
        %v2418 = vadd.f32 %v1824, %v2078
        %v2419 = vadd.f32 %v1825, %v2078
        %v2420 = vadd.f32 %v1826, %v2078
        %v2421 = vadd.f32 %v1827, %v2078
        %v2422 = vadd.f32 %v1828, %v2078
        %v2423 = vadd.f32 %v1829, %v2078
        %v2424 = vadd.f32 %v1830, %v2083
        %v2425 = vadd.f32 %v1831, %v2083
        %v2426 = vadd.f32 %v1832, %v2083
        %v2427 = vadd.f32 %v1833, %v2083
        %v2428 = vadd.f32 %v1834, %v2083
        %v2429 = vadd.f32 %v1835, %v2083
        %v2430 = vadd.f32 %v1836, %v2083
        %v2431 = vadd.f32 %v1837, %v2083
        %v2432 = vadd.f32 %v1838, %v2083
        %v2433 = vadd.f32 %v1839, %v2083
        %v2434 = vadd.f32 %v1840, %v2083
        %v2435 = vadd.f32 %v1841, %v2083
        %v2436 = vadd.f32 %v1842, %v2083
        %v2437 = vadd.f32 %v1843, %v2083
        %v2438 = vadd.f32 %v1844, %v2083
        %v2439 = vadd.f32 %v1845, %v2083
        %v2440 = vadd.f32 %v1846, %v2088
        %v2441 = vadd.f32 %v1847, %v2088
        %v2442 = vadd.f32 %v1848, %v2088
        %v2443 = vadd.f32 %v1849, %v2088
        %v2444 = vadd.f32 %v1850, %v2088
        %v2445 = vadd.f32 %v1851, %v2088
        %v2446 = vadd.f32 %v1852, %v2088
        %v2447 = vadd.f32 %v1853, %v2088
        %v2448 = vadd.f32 %v1854, %v2088
        %v2449 = vadd.f32 %v1855, %v2088
        %v2450 = vadd.f32 %v1856, %v2088
        %v2451 = vadd.f32 %v1857, %v2088
        %v2452 = vadd.f32 %v1858, %v2088
        %v2453 = vadd.f32 %v1859, %v2088
        %v2454 = vadd.f32 %v1860, %v2088
        %v2455 = vadd.f32 %v1861, %v2088
        %v2456 = vadd.f32 %v1862, %v2093
        %v2457 = vadd.f32 %v1863, %v2093
        %v2458 = vadd.f32 %v1864, %v2093
        %v2459 = vadd.f32 %v1865, %v2093
        %v2460 = vadd.f32 %v1866, %v2093
        %v2461 = vadd.f32 %v1867, %v2093
        %v2462 = vadd.f32 %v1868, %v2093
        %v2463 = vadd.f32 %v1869, %v2093
        %v2464 = vadd.f32 %v1870, %v2093
        %v2465 = vadd.f32 %v1871, %v2093
        %v2466 = vadd.f32 %v1872, %v2093
        %v2467 = vadd.f32 %v1873, %v2093
        %v2468 = vadd.f32 %v1874, %v2093
        %v2469 = vadd.f32 %v1875, %v2093
        %v2470 = vadd.f32 %v1876, %v2093
        %v2471 = vadd.f32 %v1877, %v2093
        %v2472 = vadd.f32 %v1878, %v2098
        %v2473 = vadd.f32 %v1879, %v2098
        %v2474 = vadd.f32 %v1880, %v2098
        %v2475 = vadd.f32 %v1881, %v2098
        %v2476 = vadd.f32 %v1882, %v2098
        %v2477 = vadd.f32 %v1883, %v2098
        %v2478 = vadd.f32 %v1884, %v2098
        %v2479 = vadd.f32 %v1885, %v2098
        %v2480 = vadd.f32 %v1886, %v2098
        %v2481 = vadd.f32 %v1887, %v2098
        %v2482 = vadd.f32 %v1888, %v2098
        %v2483 = vadd.f32 %v1889, %v2098
        %v2484 = vadd.f32 %v1890, %v2098
        %v2485 = vadd.f32 %v1891, %v2098
        %v2486 = vadd.f32 %v1892, %v2098
        %v2487 = vadd.f32 %v1893, %v2098
        %v2488 = vadd.f32 %v1894, %v2103
        %v2489 = vadd.f32 %v1895, %v2103
        %v2490 = vadd.f32 %v1896, %v2103
        %v2491 = vadd.f32 %v1897, %v2103
        %v2492 = vadd.f32 %v1898, %v2103
        %v2493 = vadd.f32 %v1899, %v2103
        %v2494 = vadd.f32 %v1900, %v2103
        %v2495 = vadd.f32 %v1901, %v2103
        %v2496 = vadd.f32 %v1902, %v2103
        %v2497 = vadd.f32 %v1903, %v2103
        %v2498 = vadd.f32 %v1904, %v2103
        %v2499 = vadd.f32 %v1905, %v2103
        %v2500 = vadd.f32 %v1906, %v2103
        %v2501 = vadd.f32 %v1907, %v2103
        %v2502 = vadd.f32 %v1908, %v2103
        %v2503 = vadd.f32 %v1909, %v2103
        %v2504 = vadd.f32 %v1910, %v2108
        %v2505 = vadd.f32 %v1911, %v2108
        %v2506 = vadd.f32 %v1912, %v2108
        %v2507 = vadd.f32 %v1913, %v2108
        %v2508 = vadd.f32 %v1914, %v2108
        %v2509 = vadd.f32 %v1915, %v2108
        %v2510 = vadd.f32 %v1916, %v2108
        %v2511 = vadd.f32 %v1917, %v2108
        %v2512 = vadd.f32 %v1918, %v2108
        %v2513 = vadd.f32 %v1919, %v2108
        %v2514 = vadd.f32 %v1920, %v2108
        %v2515 = vadd.f32 %v1921, %v2108
        %v2516 = vadd.f32 %v1922, %v2108
        %v2517 = vadd.f32 %v1923, %v2108
        %v2518 = vadd.f32 %v1924, %v2108
        %v2519 = vadd.f32 %v1925, %v2108
        %v2520 = vadd.f32 %v1926, %v2113
        %v2521 = vadd.f32 %v1927, %v2113
        %v2522 = vadd.f32 %v1928, %v2113
        %v2523 = vadd.f32 %v1929, %v2113
        %v2524 = vadd.f32 %v1930, %v2113
        %v2525 = vadd.f32 %v1931, %v2113
        %v2526 = vadd.f32 %v1932, %v2113
        %v2527 = vadd.f32 %v1933, %v2113
        %v2528 = vadd.f32 %v1934, %v2113
        %v2529 = vadd.f32 %v1935, %v2113
        %v2530 = vadd.f32 %v1936, %v2113
        %v2531 = vadd.f32 %v1937, %v2113
        %v2532 = vadd.f32 %v1938, %v2113
        %v2533 = vadd.f32 %v1939, %v2113
        %v2534 = vadd.f32 %v1940, %v2113
        %v2535 = vadd.f32 %v1941, %v2113
        %v2536 = vadd.f32 %v1942, %v2118
        %v2537 = vadd.f32 %v1943, %v2118
        %v2538 = vadd.f32 %v1944, %v2118
        %v2539 = vadd.f32 %v1945, %v2118
        %v2540 = vadd.f32 %v1946, %v2118
        %v2541 = vadd.f32 %v1947, %v2118
        %v2542 = vadd.f32 %v1948, %v2118
        %v2543 = vadd.f32 %v1949, %v2118
        %v2544 = vadd.f32 %v1950, %v2118
        %v2545 = vadd.f32 %v1951, %v2118
        %v2546 = vadd.f32 %v1952, %v2118
        %v2547 = vadd.f32 %v1953, %v2118
        %v2548 = vadd.f32 %v1954, %v2118
        %v2549 = vadd.f32 %v1955, %v2118
        %v2550 = vadd.f32 %v1956, %v2118
        %v2551 = vadd.f32 %v1957, %v2118
        %v2552 = vmax.f32 %v2120, 0.0
        %v2553 = vmax.f32 %v2121, 0.0
        %v2554 = vmax.f32 %v2122, 0.0
        %v2555 = vmax.f32 %v2123, 0.0
        %v2556 = vmax.f32 %v2124, 0.0
        %v2557 = vmax.f32 %v2125, 0.0
        %v2558 = vmax.f32 %v2126, 0.0
        %v2559 = vmax.f32 %v2127, 0.0
        %v2560 = vmax.f32 %v2128, 0.0
        %v2561 = vmax.f32 %v2129, 0.0
        %v2562 = vmax.f32 %v2130, 0.0
        %v2563 = vmax.f32 %v2131, 0.0
        %v2564 = vmax.f32 %v2132, 0.0
        %v2565 = vmax.f32 %v2133, 0.0
        %v2566 = vmax.f32 %v2134, 0.0
        %v2567 = vmax.f32 %v2135, 0.0
        %v2568 = vmax.f32 %v2136, 0.0
        %v2569 = vmax.f32 %v2137, 0.0
        %v2570 = vmax.f32 %v2138, 0.0
        %v2571 = vmax.f32 %v2139, 0.0
        %v2572 = vmax.f32 %v2140, 0.0
        %v2573 = vmax.f32 %v2141, 0.0
        %v2574 = vmax.f32 %v2142, 0.0
        %v2575 = vmax.f32 %v2143, 0.0
        %v2576 = vmax.f32 %v2144, 0.0
        %v2577 = vmax.f32 %v2145, 0.0
        %v2578 = vmax.f32 %v2146, 0.0
        %v2579 = vmax.f32 %v2147, 0.0
        %v2580 = vmax.f32 %v2148, 0.0
        %v2581 = vmax.f32 %v2149, 0.0
        %v2582 = vmax.f32 %v2150, 0.0
        %v2583 = vmax.f32 %v2151, 0.0
        %v2584 = vmax.f32 %v2152, 0.0
        %v2585 = vmax.f32 %v2153, 0.0
        %v2586 = vmax.f32 %v2154, 0.0
        %v2587 = vmax.f32 %v2155, 0.0
        %v2588 = vmax.f32 %v2156, 0.0
        %v2589 = vmax.f32 %v2157, 0.0
        %v2590 = vmax.f32 %v2158, 0.0
        %v2591 = vmax.f32 %v2159, 0.0
        %v2592 = vmax.f32 %v2160, 0.0
        %v2593 = vmax.f32 %v2161, 0.0
        %v2594 = vmax.f32 %v2162, 0.0
        %v2595 = vmax.f32 %v2163, 0.0
        %v2596 = vmax.f32 %v2164, 0.0
        %v2597 = vmax.f32 %v2165, 0.0
        %v2598 = vmax.f32 %v2166, 0.0
        %v2599 = vmax.f32 %v2167, 0.0
        %v2600 = vmax.f32 %v2168, 0.0
        %v2601 = vmax.f32 %v2169, 0.0
        %v2602 = vmax.f32 %v2170, 0.0
        %v2603 = vmax.f32 %v2171, 0.0
        %v2604 = vmax.f32 %v2172, 0.0
        %v2605 = vmax.f32 %v2173, 0.0
        %v2606 = vmax.f32 %v2174, 0.0
        %v2607 = vmax.f32 %v2175, 0.0
        %v2608 = vmax.f32 %v2176, 0.0
        %v2609 = vmax.f32 %v2177, 0.0
        %v2610 = vmax.f32 %v2178, 0.0
        %v2611 = vmax.f32 %v2179, 0.0
        %v2612 = vmax.f32 %v2180, 0.0
        %v2613 = vmax.f32 %v2181, 0.0
        %v2614 = vmax.f32 %v2182, 0.0
        %v2615 = vmax.f32 %v2183, 0.0
        %v2616 = vmax.f32 %v2184, 0.0
        %v2617 = vmax.f32 %v2185, 0.0
        %v2618 = vmax.f32 %v2186, 0.0
        %v2619 = vmax.f32 %v2187, 0.0
        %v2620 = vmax.f32 %v2188, 0.0
        %v2621 = vmax.f32 %v2189, 0.0
        %v2622 = vmax.f32 %v2190, 0.0
        %v2623 = vmax.f32 %v2191, 0.0
        %v2624 = vmax.f32 %v2192, 0.0
        %v2625 = vmax.f32 %v2193, 0.0
        %v2626 = vmax.f32 %v2194, 0.0
        %v2627 = vmax.f32 %v2195, 0.0
        %v2628 = vmax.f32 %v2196, 0.0
        %v2629 = vmax.f32 %v2197, 0.0
        %v2630 = vmax.f32 %v2198, 0.0
        %v2631 = vmax.f32 %v2199, 0.0
        %v2632 = vmax.f32 %v2200, 0.0
        %v2633 = vmax.f32 %v2201, 0.0
        %v2634 = vmax.f32 %v2202, 0.0
        %v2635 = vmax.f32 %v2203, 0.0
        %v2636 = vmax.f32 %v2204, 0.0
        %v2637 = vmax.f32 %v2205, 0.0
        %v2638 = vmax.f32 %v2206, 0.0
        %v2639 = vmax.f32 %v2207, 0.0
        %v2640 = vmax.f32 %v2208, 0.0
        %v2641 = vmax.f32 %v2209, 0.0
        %v2642 = vmax.f32 %v2210, 0.0
        %v2643 = vmax.f32 %v2211, 0.0
        %v2644 = vmax.f32 %v2212, 0.0
        %v2645 = vmax.f32 %v2213, 0.0
        %v2646 = vmax.f32 %v2214, 0.0
        %v2647 = vmax.f32 %v2215, 0.0
        %v2648 = vmax.f32 %v2216, 0.0
        %v2649 = vmax.f32 %v2217, 0.0
        %v2650 = vmax.f32 %v2218, 0.0
        %v2651 = vmax.f32 %v2219, 0.0
        %v2652 = vmax.f32 %v2220, 0.0
        %v2653 = vmax.f32 %v2221, 0.0
        %v2654 = vmax.f32 %v2222, 0.0
        %v2655 = vmax.f32 %v2223, 0.0
        %v2656 = vmax.f32 %v2224, 0.0
        %v2657 = vmax.f32 %v2225, 0.0
        %v2658 = vmax.f32 %v2226, 0.0
        %v2659 = vmax.f32 %v2227, 0.0
        %v2660 = vmax.f32 %v2228, 0.0
        %v2661 = vmax.f32 %v2229, 0.0
        %v2662 = vmax.f32 %v2230, 0.0
        %v2663 = vmax.f32 %v2231, 0.0
        %v2664 = vmax.f32 %v2232, 0.0
        %v2665 = vmax.f32 %v2233, 0.0
        %v2666 = vmax.f32 %v2234, 0.0
        %v2667 = vmax.f32 %v2235, 0.0
        %v2668 = vmax.f32 %v2236, 0.0
        %v2669 = vmax.f32 %v2237, 0.0
        %v2670 = vmax.f32 %v2238, 0.0
        %v2671 = vmax.f32 %v2239, 0.0
        %v2672 = vmax.f32 %v2240, 0.0
        %v2673 = vmax.f32 %v2241, 0.0
        %v2674 = vmax.f32 %v2242, 0.0
        %v2675 = vmax.f32 %v2243, 0.0
        %v2676 = vmax.f32 %v2244, 0.0
        %v2677 = vmax.f32 %v2245, 0.0
        %v2678 = vmax.f32 %v2246, 0.0
        %v2679 = vmax.f32 %v2247, 0.0
        %v2680 = vmax.f32 %v2248, 0.0
        %v2681 = vmax.f32 %v2249, 0.0
        %v2682 = vmax.f32 %v2250, 0.0
        %v2683 = vmax.f32 %v2251, 0.0
        %v2684 = vmax.f32 %v2252, 0.0
        %v2685 = vmax.f32 %v2253, 0.0
        %v2686 = vmax.f32 %v2254, 0.0
        %v2687 = vmax.f32 %v2255, 0.0
        %v2688 = vmax.f32 %v2256, 0.0
        %v2689 = vmax.f32 %v2257, 0.0
        %v2690 = vmax.f32 %v2258, 0.0
        %v2691 = vmax.f32 %v2259, 0.0
        %v2692 = vmax.f32 %v2260, 0.0
        %v2693 = vmax.f32 %v2261, 0.0
        %v2694 = vmax.f32 %v2262, 0.0
        %v2695 = vmax.f32 %v2263, 0.0
        %v2696 = vmax.f32 %v2264, 0.0
        %v2697 = vmax.f32 %v2265, 0.0
        %v2698 = vmax.f32 %v2266, 0.0
        %v2699 = vmax.f32 %v2267, 0.0
        %v2700 = vmax.f32 %v2268, 0.0
        %v2701 = vmax.f32 %v2269, 0.0
        %v2702 = vmax.f32 %v2270, 0.0
        %v2703 = vmax.f32 %v2271, 0.0
        %v2704 = vmax.f32 %v2272, 0.0
        %v2705 = vmax.f32 %v2273, 0.0
        %v2706 = vmax.f32 %v2274, 0.0
        %v2707 = vmax.f32 %v2275, 0.0
        %v2708 = vmax.f32 %v2276, 0.0
        %v2709 = vmax.f32 %v2277, 0.0
        %v2710 = vmax.f32 %v2278, 0.0
        %v2711 = vmax.f32 %v2279, 0.0
        %v2712 = vmax.f32 %v2280, 0.0
        %v2713 = vmax.f32 %v2281, 0.0
        %v2714 = vmax.f32 %v2282, 0.0
        %v2715 = vmax.f32 %v2283, 0.0
        %v2716 = vmax.f32 %v2284, 0.0
        %v2717 = vmax.f32 %v2285, 0.0
        %v2718 = vmax.f32 %v2286, 0.0
        %v2719 = vmax.f32 %v2287, 0.0
        %v2720 = vmax.f32 %v2288, 0.0
        %v2721 = vmax.f32 %v2289, 0.0
        %v2722 = vmax.f32 %v2290, 0.0
        %v2723 = vmax.f32 %v2291, 0.0
        %v2724 = vmax.f32 %v2292, 0.0
        %v2725 = vmax.f32 %v2293, 0.0
        %v2726 = vmax.f32 %v2294, 0.0
        %v2727 = vmax.f32 %v2295, 0.0
        %v2728 = vmax.f32 %v2296, 0.0
        %v2729 = vmax.f32 %v2297, 0.0
        %v2730 = vmax.f32 %v2298, 0.0
        %v2731 = vmax.f32 %v2299, 0.0
        %v2732 = vmax.f32 %v2300, 0.0
        %v2733 = vmax.f32 %v2301, 0.0
        %v2734 = vmax.f32 %v2302, 0.0
        %v2735 = vmax.f32 %v2303, 0.0
        %v2736 = vmax.f32 %v2304, 0.0
        %v2737 = vmax.f32 %v2305, 0.0
        %v2738 = vmax.f32 %v2306, 0.0
        %v2739 = vmax.f32 %v2307, 0.0
        %v2740 = vmax.f32 %v2308, 0.0
        %v2741 = vmax.f32 %v2309, 0.0
        %v2742 = vmax.f32 %v2310, 0.0
        %v2743 = vmax.f32 %v2311, 0.0
        %v2744 = vmax.f32 %v2312, 0.0
        %v2745 = vmax.f32 %v2313, 0.0
        %v2746 = vmax.f32 %v2314, 0.0
        %v2747 = vmax.f32 %v2315, 0.0
        %v2748 = vmax.f32 %v2316, 0.0
        %v2749 = vmax.f32 %v2317, 0.0
        %v2750 = vmax.f32 %v2318, 0.0
        %v2751 = vmax.f32 %v2319, 0.0
        %v2752 = vmax.f32 %v2320, 0.0
        %v2753 = vmax.f32 %v2321, 0.0
        %v2754 = vmax.f32 %v2322, 0.0
        %v2755 = vmax.f32 %v2323, 0.0
        %v2756 = vmax.f32 %v2324, 0.0
        %v2757 = vmax.f32 %v2325, 0.0
        %v2758 = vmax.f32 %v2326, 0.0
        %v2759 = vmax.f32 %v2327, 0.0
        %v2760 = vmax.f32 %v2328, 0.0
        %v2761 = vmax.f32 %v2329, 0.0
        %v2762 = vmax.f32 %v2330, 0.0
        %v2763 = vmax.f32 %v2331, 0.0
        %v2764 = vmax.f32 %v2332, 0.0
        %v2765 = vmax.f32 %v2333, 0.0
        %v2766 = vmax.f32 %v2334, 0.0
        %v2767 = vmax.f32 %v2335, 0.0
        %v2768 = vmax.f32 %v2336, 0.0
        %v2769 = vmax.f32 %v2337, 0.0
        %v2770 = vmax.f32 %v2338, 0.0
        %v2771 = vmax.f32 %v2339, 0.0
        %v2772 = vmax.f32 %v2340, 0.0
        %v2773 = vmax.f32 %v2341, 0.0
        %v2774 = vmax.f32 %v2342, 0.0
        %v2775 = vmax.f32 %v2343, 0.0
        %v2776 = vmax.f32 %v2344, 0.0
        %v2777 = vmax.f32 %v2345, 0.0
        %v2778 = vmax.f32 %v2346, 0.0
        %v2779 = vmax.f32 %v2347, 0.0
        %v2780 = vmax.f32 %v2348, 0.0
        %v2781 = vmax.f32 %v2349, 0.0
        %v2782 = vmax.f32 %v2350, 0.0
        %v2783 = vmax.f32 %v2351, 0.0
        %v2784 = vmax.f32 %v2352, 0.0
        %v2785 = vmax.f32 %v2353, 0.0
        %v2786 = vmax.f32 %v2354, 0.0
        %v2787 = vmax.f32 %v2355, 0.0
        %v2788 = vmax.f32 %v2356, 0.0
        %v2789 = vmax.f32 %v2357, 0.0
        %v2790 = vmax.f32 %v2358, 0.0
        %v2791 = vmax.f32 %v2359, 0.0
        %v2792 = vmax.f32 %v2360, 0.0
        %v2793 = vmax.f32 %v2361, 0.0
        %v2794 = vmax.f32 %v2362, 0.0
        %v2795 = vmax.f32 %v2363, 0.0
        %v2796 = vmax.f32 %v2364, 0.0
        %v2797 = vmax.f32 %v2365, 0.0
        %v2798 = vmax.f32 %v2366, 0.0
        %v2799 = vmax.f32 %v2367, 0.0
        %v2800 = vmax.f32 %v2368, 0.0
        %v2801 = vmax.f32 %v2369, 0.0
        %v2802 = vmax.f32 %v2370, 0.0
        %v2803 = vmax.f32 %v2371, 0.0
        %v2804 = vmax.f32 %v2372, 0.0
        %v2805 = vmax.f32 %v2373, 0.0
        %v2806 = vmax.f32 %v2374, 0.0
        %v2807 = vmax.f32 %v2375, 0.0
        %v2808 = vmax.f32 %v2376, 0.0
        %v2809 = vmax.f32 %v2377, 0.0
        %v2810 = vmax.f32 %v2378, 0.0
        %v2811 = vmax.f32 %v2379, 0.0
        %v2812 = vmax.f32 %v2380, 0.0
        %v2813 = vmax.f32 %v2381, 0.0
        %v2814 = vmax.f32 %v2382, 0.0
        %v2815 = vmax.f32 %v2383, 0.0
        %v2816 = vmax.f32 %v2384, 0.0
        %v2817 = vmax.f32 %v2385, 0.0
        %v2818 = vmax.f32 %v2386, 0.0
        %v2819 = vmax.f32 %v2387, 0.0
        %v2820 = vmax.f32 %v2388, 0.0
        %v2821 = vmax.f32 %v2389, 0.0
        %v2822 = vmax.f32 %v2390, 0.0
        %v2823 = vmax.f32 %v2391, 0.0
        %v2824 = vmax.f32 %v2392, 0.0
        %v2825 = vmax.f32 %v2393, 0.0
        %v2826 = vmax.f32 %v2394, 0.0
        %v2827 = vmax.f32 %v2395, 0.0
        %v2828 = vmax.f32 %v2396, 0.0
        %v2829 = vmax.f32 %v2397, 0.0
        %v2830 = vmax.f32 %v2398, 0.0
        %v2831 = vmax.f32 %v2399, 0.0
        %v2832 = vmax.f32 %v2400, 0.0
        %v2833 = vmax.f32 %v2401, 0.0
        %v2834 = vmax.f32 %v2402, 0.0
        %v2835 = vmax.f32 %v2403, 0.0
        %v2836 = vmax.f32 %v2404, 0.0
        %v2837 = vmax.f32 %v2405, 0.0
        %v2838 = vmax.f32 %v2406, 0.0
        %v2839 = vmax.f32 %v2407, 0.0
        %v2840 = vmax.f32 %v2408, 0.0
        %v2841 = vmax.f32 %v2409, 0.0
        %v2842 = vmax.f32 %v2410, 0.0
        %v2843 = vmax.f32 %v2411, 0.0
        %v2844 = vmax.f32 %v2412, 0.0
        %v2845 = vmax.f32 %v2413, 0.0
        %v2846 = vmax.f32 %v2414, 0.0
        %v2847 = vmax.f32 %v2415, 0.0
        %v2848 = vmax.f32 %v2416, 0.0
        %v2849 = vmax.f32 %v2417, 0.0
        %v2850 = vmax.f32 %v2418, 0.0
        %v2851 = vmax.f32 %v2419, 0.0
        %v2852 = vmax.f32 %v2420, 0.0
        %v2853 = vmax.f32 %v2421, 0.0
        %v2854 = vmax.f32 %v2422, 0.0
        %v2855 = vmax.f32 %v2423, 0.0
        %v2856 = vmax.f32 %v2424, 0.0
        %v2857 = vmax.f32 %v2425, 0.0
        %v2858 = vmax.f32 %v2426, 0.0
        %v2859 = vmax.f32 %v2427, 0.0
        %v2860 = vmax.f32 %v2428, 0.0
        %v2861 = vmax.f32 %v2429, 0.0
        %v2862 = vmax.f32 %v2430, 0.0
        %v2863 = vmax.f32 %v2431, 0.0
        %v2864 = vmax.f32 %v2432, 0.0
        %v2865 = vmax.f32 %v2433, 0.0
        %v2866 = vmax.f32 %v2434, 0.0
        %v2867 = vmax.f32 %v2435, 0.0
        %v2868 = vmax.f32 %v2436, 0.0
        %v2869 = vmax.f32 %v2437, 0.0
        %v2870 = vmax.f32 %v2438, 0.0
        %v2871 = vmax.f32 %v2439, 0.0
        %v2872 = vmax.f32 %v2440, 0.0
        %v2873 = vmax.f32 %v2441, 0.0
        %v2874 = vmax.f32 %v2442, 0.0
        %v2875 = vmax.f32 %v2443, 0.0
        %v2876 = vmax.f32 %v2444, 0.0
        %v2877 = vmax.f32 %v2445, 0.0
        %v2878 = vmax.f32 %v2446, 0.0
        %v2879 = vmax.f32 %v2447, 0.0
        %v2880 = vmax.f32 %v2448, 0.0
        %v2881 = vmax.f32 %v2449, 0.0
        %v2882 = vmax.f32 %v2450, 0.0
        %v2883 = vmax.f32 %v2451, 0.0
        %v2884 = vmax.f32 %v2452, 0.0
        %v2885 = vmax.f32 %v2453, 0.0
        %v2886 = vmax.f32 %v2454, 0.0
        %v2887 = vmax.f32 %v2455, 0.0
        %v2888 = vmax.f32 %v2456, 0.0
        %v2889 = vmax.f32 %v2457, 0.0
        %v2890 = vmax.f32 %v2458, 0.0
        %v2891 = vmax.f32 %v2459, 0.0
        %v2892 = vmax.f32 %v2460, 0.0
        %v2893 = vmax.f32 %v2461, 0.0
        %v2894 = vmax.f32 %v2462, 0.0
        %v2895 = vmax.f32 %v2463, 0.0
        %v2896 = vmax.f32 %v2464, 0.0
        %v2897 = vmax.f32 %v2465, 0.0
        %v2898 = vmax.f32 %v2466, 0.0
        %v2899 = vmax.f32 %v2467, 0.0
        %v2900 = vmax.f32 %v2468, 0.0
        %v2901 = vmax.f32 %v2469, 0.0
        %v2902 = vmax.f32 %v2470, 0.0
        %v2903 = vmax.f32 %v2471, 0.0
        %v2904 = vmax.f32 %v2472, 0.0
        %v2905 = vmax.f32 %v2473, 0.0
        %v2906 = vmax.f32 %v2474, 0.0
        %v2907 = vmax.f32 %v2475, 0.0
        %v2908 = vmax.f32 %v2476, 0.0
        %v2909 = vmax.f32 %v2477, 0.0
        %v2910 = vmax.f32 %v2478, 0.0
        %v2911 = vmax.f32 %v2479, 0.0
        %v2912 = vmax.f32 %v2480, 0.0
        %v2913 = vmax.f32 %v2481, 0.0
        %v2914 = vmax.f32 %v2482, 0.0
        %v2915 = vmax.f32 %v2483, 0.0
        %v2916 = vmax.f32 %v2484, 0.0
        %v2917 = vmax.f32 %v2485, 0.0
        %v2918 = vmax.f32 %v2486, 0.0
        %v2919 = vmax.f32 %v2487, 0.0
        %v2920 = vmax.f32 %v2488, 0.0
        %v2921 = vmax.f32 %v2489, 0.0
        %v2922 = vmax.f32 %v2490, 0.0
        %v2923 = vmax.f32 %v2491, 0.0
        %v2924 = vmax.f32 %v2492, 0.0
        %v2925 = vmax.f32 %v2493, 0.0
        %v2926 = vmax.f32 %v2494, 0.0
        %v2927 = vmax.f32 %v2495, 0.0
        %v2928 = vmax.f32 %v2496, 0.0
        %v2929 = vmax.f32 %v2497, 0.0
        %v2930 = vmax.f32 %v2498, 0.0
        %v2931 = vmax.f32 %v2499, 0.0
        %v2932 = vmax.f32 %v2500, 0.0
        %v2933 = vmax.f32 %v2501, 0.0
        %v2934 = vmax.f32 %v2502, 0.0
        %v2935 = vmax.f32 %v2503, 0.0
        %v2936 = vmax.f32 %v2504, 0.0
        %v2937 = vmax.f32 %v2505, 0.0
        %v2938 = vmax.f32 %v2506, 0.0
        %v2939 = vmax.f32 %v2507, 0.0
        %v2940 = vmax.f32 %v2508, 0.0
        %v2941 = vmax.f32 %v2509, 0.0
        %v2942 = vmax.f32 %v2510, 0.0
        %v2943 = vmax.f32 %v2511, 0.0
        %v2944 = vmax.f32 %v2512, 0.0
        %v2945 = vmax.f32 %v2513, 0.0
        %v2946 = vmax.f32 %v2514, 0.0
        %v2947 = vmax.f32 %v2515, 0.0
        %v2948 = vmax.f32 %v2516, 0.0
        %v2949 = vmax.f32 %v2517, 0.0
        %v2950 = vmax.f32 %v2518, 0.0
        %v2951 = vmax.f32 %v2519, 0.0
        %v2952 = vmax.f32 %v2520, 0.0
        %v2953 = vmax.f32 %v2521, 0.0
        %v2954 = vmax.f32 %v2522, 0.0
        %v2955 = vmax.f32 %v2523, 0.0
        %v2956 = vmax.f32 %v2524, 0.0
        %v2957 = vmax.f32 %v2525, 0.0
        %v2958 = vmax.f32 %v2526, 0.0
        %v2959 = vmax.f32 %v2527, 0.0
        %v2960 = vmax.f32 %v2528, 0.0
        %v2961 = vmax.f32 %v2529, 0.0
        %v2962 = vmax.f32 %v2530, 0.0
        %v2963 = vmax.f32 %v2531, 0.0
        %v2964 = vmax.f32 %v2532, 0.0
        %v2965 = vmax.f32 %v2533, 0.0
        %v2966 = vmax.f32 %v2534, 0.0
        %v2967 = vmax.f32 %v2535, 0.0
        %v2968 = vmax.f32 %v2536, 0.0
        %v2969 = vmax.f32 %v2537, 0.0
        %v2970 = vmax.f32 %v2538, 0.0
        %v2971 = vmax.f32 %v2539, 0.0
        %v2972 = vmax.f32 %v2540, 0.0
        %v2973 = vmax.f32 %v2541, 0.0
        %v2974 = vmax.f32 %v2542, 0.0
        %v2975 = vmax.f32 %v2543, 0.0
        %v2976 = vmax.f32 %v2544, 0.0
        %v2977 = vmax.f32 %v2545, 0.0
        %v2978 = vmax.f32 %v2546, 0.0
        %v2979 = vmax.f32 %v2547, 0.0
        %v2980 = vmax.f32 %v2548, 0.0
        %v2981 = vmax.f32 %v2549, 0.0
        %v2982 = vmax.f32 %v2550, 0.0
        %v2983 = vmax.f32 %v2551, 0.0
        %v2984 = vpack.c.bf16 %v2568, %v2552
        %v2985 = vpack.c.bf16 %v2569, %v2553
        %v2986 = vpack.c.bf16 %v2570, %v2554
        %v2987 = vpack.c.bf16 %v2571, %v2555
        %v2988 = vpack.c.bf16 %v2572, %v2556
        %v2989 = vpack.c.bf16 %v2573, %v2557
        %v2990 = vpack.c.bf16 %v2574, %v2558
        %v2991 = vpack.c.bf16 %v2575, %v2559
        %v2992 = vpack.c.bf16 %v2576, %v2560
        %v2993 = vpack.c.bf16 %v2577, %v2561
        %v2994 = vpack.c.bf16 %v2578, %v2562
        %v2995 = vpack.c.bf16 %v2579, %v2563
        %v2996 = vpack.c.bf16 %v2580, %v2564
        %v2997 = vpack.c.bf16 %v2581, %v2565
        %v2998 = vpack.c.bf16 %v2582, %v2566
        %v2999 = vpack.c.bf16 %v2583, %v2567
        %v3000 = vpack.c.bf16 %v2600, %v2584
        %v3001 = vpack.c.bf16 %v2601, %v2585
        %v3002 = vpack.c.bf16 %v2602, %v2586
        %v3003 = vpack.c.bf16 %v2603, %v2587
        %v3004 = vpack.c.bf16 %v2604, %v2588
        %v3005 = vpack.c.bf16 %v2605, %v2589
        %v3006 = vpack.c.bf16 %v2606, %v2590
        %v3007 = vpack.c.bf16 %v2607, %v2591
        %v3008 = vpack.c.bf16 %v2608, %v2592
        %v3009 = vpack.c.bf16 %v2609, %v2593
        %v3010 = vpack.c.bf16 %v2610, %v2594
        %v3011 = vpack.c.bf16 %v2611, %v2595
        %v3012 = vpack.c.bf16 %v2612, %v2596
        %v3013 = vpack.c.bf16 %v2613, %v2597
        %v3014 = vpack.c.bf16 %v2614, %v2598
        %v3015 = vpack.c.bf16 %v2615, %v2599
        %v3016 = vpack.c.bf16 %v2632, %v2616
        %v3017 = vpack.c.bf16 %v2633, %v2617
        %v3018 = vpack.c.bf16 %v2634, %v2618
        %v3019 = vpack.c.bf16 %v2635, %v2619
        %v3020 = vpack.c.bf16 %v2636, %v2620
        %v3021 = vpack.c.bf16 %v2637, %v2621
        %v3022 = vpack.c.bf16 %v2638, %v2622
        %v3023 = vpack.c.bf16 %v2639, %v2623
        %v3024 = vpack.c.bf16 %v2640, %v2624
        %v3025 = vpack.c.bf16 %v2641, %v2625
        %v3026 = vpack.c.bf16 %v2642, %v2626
        %v3027 = vpack.c.bf16 %v2643, %v2627
        %v3028 = vpack.c.bf16 %v2644, %v2628
        %v3029 = vpack.c.bf16 %v2645, %v2629
        %v3030 = vpack.c.bf16 %v2646, %v2630
        %v3031 = vpack.c.bf16 %v2647, %v2631
        %v3032 = vpack.c.bf16 %v2664, %v2648
        %v3033 = vpack.c.bf16 %v2665, %v2649
        %v3034 = vpack.c.bf16 %v2666, %v2650
        %v3035 = vpack.c.bf16 %v2667, %v2651
        %v3036 = vpack.c.bf16 %v2668, %v2652
        %v3037 = vpack.c.bf16 %v2669, %v2653
        %v3038 = vpack.c.bf16 %v2670, %v2654
        %v3039 = vpack.c.bf16 %v2671, %v2655
        %v3040 = vpack.c.bf16 %v2672, %v2656
        %v3041 = vpack.c.bf16 %v2673, %v2657
        %v3042 = vpack.c.bf16 %v2674, %v2658
        %v3043 = vpack.c.bf16 %v2675, %v2659
        %v3044 = vpack.c.bf16 %v2676, %v2660
        %v3045 = vpack.c.bf16 %v2677, %v2661
        %v3046 = vpack.c.bf16 %v2678, %v2662
        %v3047 = vpack.c.bf16 %v2679, %v2663
        %v3048 = vpack.c.bf16 %v2696, %v2680
        %v3049 = vpack.c.bf16 %v2697, %v2681
        %v3050 = vpack.c.bf16 %v2698, %v2682
        %v3051 = vpack.c.bf16 %v2699, %v2683
        %v3052 = vpack.c.bf16 %v2700, %v2684
        %v3053 = vpack.c.bf16 %v2701, %v2685
        %v3054 = vpack.c.bf16 %v2702, %v2686
        %v3055 = vpack.c.bf16 %v2703, %v2687
        %v3056 = vpack.c.bf16 %v2704, %v2688
        %v3057 = vpack.c.bf16 %v2705, %v2689
        %v3058 = vpack.c.bf16 %v2706, %v2690
        %v3059 = vpack.c.bf16 %v2707, %v2691
        %v3060 = vpack.c.bf16 %v2708, %v2692
        %v3061 = vpack.c.bf16 %v2709, %v2693
        %v3062 = vpack.c.bf16 %v2710, %v2694
        %v3063 = vpack.c.bf16 %v2711, %v2695
        %v3064 = vpack.c.bf16 %v2728, %v2712
        %v3065 = vpack.c.bf16 %v2729, %v2713
        %v3066 = vpack.c.bf16 %v2730, %v2714
        %v3067 = vpack.c.bf16 %v2731, %v2715
        %v3068 = vpack.c.bf16 %v2732, %v2716
        %v3069 = vpack.c.bf16 %v2733, %v2717
        %v3070 = vpack.c.bf16 %v2734, %v2718
        %v3071 = vpack.c.bf16 %v2735, %v2719
        %v3072 = vpack.c.bf16 %v2736, %v2720
        %v3073 = vpack.c.bf16 %v2737, %v2721
        %v3074 = vpack.c.bf16 %v2738, %v2722
        %v3075 = vpack.c.bf16 %v2739, %v2723
        %v3076 = vpack.c.bf16 %v2740, %v2724
        %v3077 = vpack.c.bf16 %v2741, %v2725
        %v3078 = vpack.c.bf16 %v2742, %v2726
        %v3079 = vpack.c.bf16 %v2743, %v2727
        %v3080 = vpack.c.bf16 %v2760, %v2744
        %v3081 = vpack.c.bf16 %v2761, %v2745
        %v3082 = vpack.c.bf16 %v2762, %v2746
        %v3083 = vpack.c.bf16 %v2763, %v2747
        %v3084 = vpack.c.bf16 %v2764, %v2748
        %v3085 = vpack.c.bf16 %v2765, %v2749
        %v3086 = vpack.c.bf16 %v2766, %v2750
        %v3087 = vpack.c.bf16 %v2767, %v2751
        %v3088 = vpack.c.bf16 %v2768, %v2752
        %v3089 = vpack.c.bf16 %v2769, %v2753
        %v3090 = vpack.c.bf16 %v2770, %v2754
        %v3091 = vpack.c.bf16 %v2771, %v2755
        %v3092 = vpack.c.bf16 %v2772, %v2756
        %v3093 = vpack.c.bf16 %v2773, %v2757
        %v3094 = vpack.c.bf16 %v2774, %v2758
        %v3095 = vpack.c.bf16 %v2775, %v2759
        %v3096 = vpack.c.bf16 %v2792, %v2776
        %v3097 = vpack.c.bf16 %v2793, %v2777
        %v3098 = vpack.c.bf16 %v2794, %v2778
        %v3099 = vpack.c.bf16 %v2795, %v2779
        %v3100 = vpack.c.bf16 %v2796, %v2780
        %v3101 = vpack.c.bf16 %v2797, %v2781
        %v3102 = vpack.c.bf16 %v2798, %v2782
        %v3103 = vpack.c.bf16 %v2799, %v2783
        %v3104 = vpack.c.bf16 %v2800, %v2784
        %v3105 = vpack.c.bf16 %v2801, %v2785
        %v3106 = vpack.c.bf16 %v2802, %v2786
        %v3107 = vpack.c.bf16 %v2803, %v2787
        %v3108 = vpack.c.bf16 %v2804, %v2788
        %v3109 = vpack.c.bf16 %v2805, %v2789
        %v3110 = vpack.c.bf16 %v2806, %v2790
        %v3111 = vpack.c.bf16 %v2807, %v2791
        %v3112 = vpack.c.bf16 %v2824, %v2808
        %v3113 = vpack.c.bf16 %v2825, %v2809
        %v3114 = vpack.c.bf16 %v2826, %v2810
        %v3115 = vpack.c.bf16 %v2827, %v2811
        %v3116 = vpack.c.bf16 %v2828, %v2812
        %v3117 = vpack.c.bf16 %v2829, %v2813
        %v3118 = vpack.c.bf16 %v2830, %v2814
        %v3119 = vpack.c.bf16 %v2831, %v2815
        %v3120 = vpack.c.bf16 %v2832, %v2816
        %v3121 = vpack.c.bf16 %v2833, %v2817
        %v3122 = vpack.c.bf16 %v2834, %v2818
        %v3123 = vpack.c.bf16 %v2835, %v2819
        %v3124 = vpack.c.bf16 %v2836, %v2820
        %v3125 = vpack.c.bf16 %v2837, %v2821
        %v3126 = vpack.c.bf16 %v2838, %v2822
        %v3127 = vpack.c.bf16 %v2839, %v2823
        %v3128 = vpack.c.bf16 %v2856, %v2840
        %v3129 = vpack.c.bf16 %v2857, %v2841
        %v3130 = vpack.c.bf16 %v2858, %v2842
        %v3131 = vpack.c.bf16 %v2859, %v2843
        %v3132 = vpack.c.bf16 %v2860, %v2844
        %v3133 = vpack.c.bf16 %v2861, %v2845
        %v3134 = vpack.c.bf16 %v2862, %v2846
        %v3135 = vpack.c.bf16 %v2863, %v2847
        %v3136 = vpack.c.bf16 %v2864, %v2848
        %v3137 = vpack.c.bf16 %v2865, %v2849
        %v3138 = vpack.c.bf16 %v2866, %v2850
        %v3139 = vpack.c.bf16 %v2867, %v2851
        %v3140 = vpack.c.bf16 %v2868, %v2852
        %v3141 = vpack.c.bf16 %v2869, %v2853
        %v3142 = vpack.c.bf16 %v2870, %v2854
        %v3143 = vpack.c.bf16 %v2871, %v2855
        %v3144 = vpack.c.bf16 %v2888, %v2872
        %v3145 = vpack.c.bf16 %v2889, %v2873
        %v3146 = vpack.c.bf16 %v2890, %v2874
        %v3147 = vpack.c.bf16 %v2891, %v2875
        %v3148 = vpack.c.bf16 %v2892, %v2876
        %v3149 = vpack.c.bf16 %v2893, %v2877
        %v3150 = vpack.c.bf16 %v2894, %v2878
        %v3151 = vpack.c.bf16 %v2895, %v2879
        %v3152 = vpack.c.bf16 %v2896, %v2880
        %v3153 = vpack.c.bf16 %v2897, %v2881
        %v3154 = vpack.c.bf16 %v2898, %v2882
        %v3155 = vpack.c.bf16 %v2899, %v2883
        %v3156 = vpack.c.bf16 %v2900, %v2884
        %v3157 = vpack.c.bf16 %v2901, %v2885
        %v3158 = vpack.c.bf16 %v2902, %v2886
        %v3159 = vpack.c.bf16 %v2903, %v2887
        %v3160 = vpack.c.bf16 %v2920, %v2904
        %v3161 = vpack.c.bf16 %v2921, %v2905
        %v3162 = vpack.c.bf16 %v2922, %v2906
        %v3163 = vpack.c.bf16 %v2923, %v2907
        %v3164 = vpack.c.bf16 %v2924, %v2908
        %v3165 = vpack.c.bf16 %v2925, %v2909
        %v3166 = vpack.c.bf16 %v2926, %v2910
        %v3167 = vpack.c.bf16 %v2927, %v2911
        %v3168 = vpack.c.bf16 %v2928, %v2912
        %v3169 = vpack.c.bf16 %v2929, %v2913
        %v3170 = vpack.c.bf16 %v2930, %v2914
        %v3171 = vpack.c.bf16 %v2931, %v2915
        %v3172 = vpack.c.bf16 %v2932, %v2916
        %v3173 = vpack.c.bf16 %v2933, %v2917
        %v3174 = vpack.c.bf16 %v2934, %v2918
        %v3175 = vpack.c.bf16 %v2935, %v2919
        %v3176 = vpack.c.bf16 %v2952, %v2936
        %v3177 = vpack.c.bf16 %v2953, %v2937
        %v3178 = vpack.c.bf16 %v2954, %v2938
        %v3179 = vpack.c.bf16 %v2955, %v2939
        %v3180 = vpack.c.bf16 %v2956, %v2940
        %v3181 = vpack.c.bf16 %v2957, %v2941
        %v3182 = vpack.c.bf16 %v2958, %v2942
        %v3183 = vpack.c.bf16 %v2959, %v2943
        %v3184 = vpack.c.bf16 %v2960, %v2944
        %v3185 = vpack.c.bf16 %v2961, %v2945
        %v3186 = vpack.c.bf16 %v2962, %v2946
        %v3187 = vpack.c.bf16 %v2963, %v2947
        %v3188 = vpack.c.bf16 %v2964, %v2948
        %v3189 = vpack.c.bf16 %v2965, %v2949
        %v3190 = vpack.c.bf16 %v2966, %v2950
        %v3191 = vpack.c.bf16 %v2967, %v2951
        %v3192 = vpack.c.bf16 %v2968, %v2968
        %v3193 = vpack.c.bf16 %v2969, %v2969
        %v3194 = vpack.c.bf16 %v2970, %v2970
        %v3195 = vpack.c.bf16 %v2971, %v2971
        %v3196 = vpack.c.bf16 %v2972, %v2972
        %v3197 = vpack.c.bf16 %v2973, %v2973
        %v3198 = vpack.c.bf16 %v2974, %v2974
        %v3199 = vpack.c.bf16 %v2975, %v2975
        %v3200 = vpack.c.bf16 %v2976, %v2976
        %v3201 = vpack.c.bf16 %v2977, %v2977
        %v3202 = vpack.c.bf16 %v2978, %v2978
        %v3203 = vpack.c.bf16 %v2979, %v2979
        %v3204 = vpack.c.bf16 %v2980, %v2980
        %v3205 = vpack.c.bf16 %v2981, %v2981
        %v3206 = vpack.c.bf16 %v2982, %v2982
        %v3207 = vpack.c.bf16 %v2983, %v2983
        %v3208 = vld [vmem:[%s1] sm:$0xff]
        %v3209 = vld [vmem:[%s2] sm:$0xff]
        %3211 = vset.pattern.permute.xlu0 0
        %3212 = vperm.xlu0 %3211, %v3209
        %v3213 = vpop.permute.xlu0 %3212
        %v3216 = vunpack.c.l.b16 %v3208
        %v3217 = vunpack.c.h.b16 %v3208
        %v3218 = vpack.c.b16 %v3216, %v3216
        %v3219 = vpack.c.b16 %v3217, %v3217
        %vm3221 = vcmask 719872
        %v3223 = vsel %vm3221, %v3219, 0
        %vm3225 = vcmask 1043456
        %v3227 = vsel %vm3225, %v3192, 0
        %v3230 = vsel %vm3225, %v3193, 0
        %v3233 = vsel %vm3225, %v3194, 0
        %v3236 = vsel %vm3225, %v3195, 0
        %v3239 = vsel %vm3225, %v3196, 0
        %v3242 = vsel %vm3225, %v3197, 0
        %v3245 = vsel %vm3225, %v3198, 0
        %v3248 = vsel %vm3225, %v3199, 0
        %v3251 = vsel %vm3225, %v3200, 0
        %v3254 = vsel %vm3225, %v3201, 0
        %v3257 = vsel %vm3225, %v3202, 0
        %v3260 = vsel %vm3225, %v3203, 0
        %v3263 = vsel %vm3225, %v3204, 0
        %v3266 = vsel %vm3225, %v3205, 0
        %v3269 = vsel %vm3225, %v3206, 0
        %v3272 = vsel %vm3225, %v3207, 0
        %3274 = vmatprep.subr.bf16.mxu0 %v2985
        %3275 = vmatpush1.bf16.msra.mxu0 %v2984
        %3276 = vmatprep.subr.bf16.mxu0 %v3001
        %3277 = vmatpush1.bf16.msra.mxu0 %v3000
        %3278 = vmatprep.subr.bf16.mxu0 %v3017
        %3279 = vmatpush1.bf16.msra.mxu0 %v3016
        %3280 = vmatprep.subr.bf16.mxu0 %v3033
        %3281 = vmatpush1.bf16.msra.mxu0 %v3032
        %3282 = vmatprep.subr.bf16.mxu0 %v3049
        %3283 = vmatpush1.bf16.msra.mxu0 %v3048
        %3284 = vmatprep.subr.bf16.mxu0 %v3065
        %3285 = vmatpush1.bf16.msra.mxu0 %v3064
        %3286 = vmatprep.subr.bf16.mxu0 %v3081
        %3287 = vmatpush1.bf16.msra.mxu0 %v3080
        %3288 = vmatprep.subr.bf16.mxu0 %v3097
        %3289 = vmatpush1.bf16.msra.mxu0 %v3096
        %3290 = vmatprep.subr.bf16.mxu0 %v3113
        %3291 = vmatpush1.bf16.msra.mxu0 %v3112
        %3292 = vmatprep.subr.bf16.mxu0 %v3129
        %3293 = vmatpush1.bf16.msra.mxu0 %v3128
        %3294 = vmatprep.subr.bf16.mxu0 %v3145
        %3295 = vmatpush1.bf16.msra.mxu0 %v3144
        %3296 = vmatprep.subr.bf16.mxu0 %v3161
        %3297 = vmatpush1.bf16.msra.mxu0 %v3160
        %3298 = vmatprep.subr.bf16.mxu0 %v3177
        %3299 = vmatpush1.bf16.msra.mxu0 %v3176
        %3300 = vmatprep.subr.bf16.mxu0 %v3230
        %3301 = vmatpush1.bf16.msra.mxu0 %v3227
        %3302 = vmatprep.subr.bf16.mxu0 0
        %3303 = vmatpush1.bf16.msra.mxu0 0
        %3304 = vmatprep.subr.bf16.mxu0 0
        %3305 = vmatpush1.bf16.msra.mxu0 0
        %3306 = vmatprep.mubr.bf16.mxu0 %v3223
        %3307 = vmatmul.mubr.bf16.gmra.mrb[0].mxu0 %v3218
        %v3308 = vpop.f32.mrb[0].mxu0
        %v3309 = vadd.f32 %v3213, %v3308
        %v3310 = vpop.f32.mrb[0].mxu0
        %v3311 = vadd.f32 %v3213, %v3310
        %v3312 = vpop.f32.mrb[0].mxu0
        %v3313 = vpop.f32.mrb[0].mxu0
        %3314 = vdwg.mxu0
        %3315 = vmatprep.subr.bf16.mxu0 %v2987
        %3316 = vmatpush1.bf16.msra.mxu0 %v2986
        %3317 = vmatprep.subr.bf16.mxu0 %v3003
        %3318 = vmatpush1.bf16.msra.mxu0 %v3002
        %3319 = vmatprep.subr.bf16.mxu0 %v3019
        %3320 = vmatpush1.bf16.msra.mxu0 %v3018
        %3321 = vmatprep.subr.bf16.mxu0 %v3035
        %3322 = vmatpush1.bf16.msra.mxu0 %v3034
        %3323 = vmatprep.subr.bf16.mxu0 %v3051
        %3324 = vmatpush1.bf16.msra.mxu0 %v3050
        %3325 = vmatprep.subr.bf16.mxu0 %v3067
        %3326 = vmatpush1.bf16.msra.mxu0 %v3066
        %3327 = vmatprep.subr.bf16.mxu0 %v3083
        %3328 = vmatpush1.bf16.msra.mxu0 %v3082
        %3329 = vmatprep.subr.bf16.mxu0 %v3099
        %3330 = vmatpush1.bf16.msra.mxu0 %v3098
        %3331 = vmatprep.subr.bf16.mxu0 %v3115
        %3332 = vmatpush1.bf16.msra.mxu0 %v3114
        %3333 = vmatprep.subr.bf16.mxu0 %v3131
        %3334 = vmatpush1.bf16.msra.mxu0 %v3130
        %3335 = vmatprep.subr.bf16.mxu0 %v3147
        %3336 = vmatpush1.bf16.msra.mxu0 %v3146
        %3337 = vmatprep.subr.bf16.mxu0 %v3163
        %3338 = vmatpush1.bf16.msra.mxu0 %v3162
        %3339 = vmatprep.subr.bf16.mxu0 %v3179
        %3340 = vmatpush1.bf16.msra.mxu0 %v3178
        %3341 = vmatprep.subr.bf16.mxu0 %v3236
        %3342 = vmatpush1.bf16.msra.mxu0 %v3233
        %3343 = vmatprep.subr.bf16.mxu0 0
        %3344 = vmatpush1.bf16.msra.mxu0 0
        %3345 = vmatprep.subr.bf16.mxu0 0
        %3346 = vmatpush1.bf16.msra.mxu0 0
        %3347 = vmatprep.mubr.bf16.mxu0 %v3223
        %3348 = vmatmul.mubr.bf16.gmra.mrb[0].mxu0 %v3218
        %v3349 = vpop.f32.mrb[0].mxu0
        %v3350 = vadd.f32 %v3213, %v3349
        %v3351 = vpop.f32.mrb[0].mxu0
        %v3352 = vadd.f32 %v3213, %v3351
        %v3353 = vpop.f32.mrb[0].mxu0
        %v3354 = vpop.f32.mrb[0].mxu0
        %3355 = vdwg.mxu0
        %3356 = vmatprep.subr.bf16.mxu0 %v2989
        %3357 = vmatpush1.bf16.msra.mxu0 %v2988
        %3358 = vmatprep.subr.bf16.mxu0 %v3005
        %3359 = vmatpush1.bf16.msra.mxu0 %v3004
        %3360 = vmatprep.subr.bf16.mxu0 %v3021
        %3361 = vmatpush1.bf16.msra.mxu0 %v3020
        %3362 = vmatprep.subr.bf16.mxu0 %v3037
        %3363 = vmatpush1.bf16.msra.mxu0 %v3036
        %3364 = vmatprep.subr.bf16.mxu0 %v3053
        %3365 = vmatpush1.bf16.msra.mxu0 %v3052
        %3366 = vmatprep.subr.bf16.mxu0 %v3069
        %3367 = vmatpush1.bf16.msra.mxu0 %v3068
        %3368 = vmatprep.subr.bf16.mxu0 %v3085
        %3369 = vmatpush1.bf16.msra.mxu0 %v3084
        %3370 = vmatprep.subr.bf16.mxu0 %v3101
        %3371 = vmatpush1.bf16.msra.mxu0 %v3100
        %3372 = vmatprep.subr.bf16.mxu0 %v3117
        %3373 = vmatpush1.bf16.msra.mxu0 %v3116
        %3374 = vmatprep.subr.bf16.mxu0 %v3133
        %3375 = vmatpush1.bf16.msra.mxu0 %v3132
        %3376 = vmatprep.subr.bf16.mxu0 %v3149
        %3377 = vmatpush1.bf16.msra.mxu0 %v3148
        %3378 = vmatprep.subr.bf16.mxu0 %v3165
        %3379 = vmatpush1.bf16.msra.mxu0 %v3164
        %3380 = vmatprep.subr.bf16.mxu0 %v3181
        %3381 = vmatpush1.bf16.msra.mxu0 %v3180
        %3382 = vmatprep.subr.bf16.mxu0 %v3242
        %3383 = vmatpush1.bf16.msra.mxu0 %v3239
        %3384 = vmatprep.subr.bf16.mxu0 0
        %3385 = vmatpush1.bf16.msra.mxu0 0
        %3386 = vmatprep.subr.bf16.mxu0 0
        %3387 = vmatpush1.bf16.msra.mxu0 0
        %3388 = vmatprep.mubr.bf16.mxu0 %v3223
        %3389 = vmatmul.mubr.bf16.gmra.mrb[0].mxu0 %v3218
        %v3390 = vpop.f32.mrb[0].mxu0
        %v3391 = vadd.f32 %v3213, %v3390
        %v3392 = vpop.f32.mrb[0].mxu0
        %v3393 = vadd.f32 %v3213, %v3392
        %v3394 = vpop.f32.mrb[0].mxu0
        %v3395 = vpop.f32.mrb[0].mxu0
        %3396 = vdwg.mxu0
        %3397 = vmatprep.subr.bf16.mxu0 %v2991
        %3398 = vmatpush1.bf16.msra.mxu0 %v2990
        %3399 = vmatprep.subr.bf16.mxu0 %v3007
        %3400 = vmatpush1.bf16.msra.mxu0 %v3006
        %3401 = vmatprep.subr.bf16.mxu0 %v3023
        %3402 = vmatpush1.bf16.msra.mxu0 %v3022
        %3403 = vmatprep.subr.bf16.mxu0 %v3039
        %3404 = vmatpush1.bf16.msra.mxu0 %v3038
        %3405 = vmatprep.subr.bf16.mxu0 %v3055
        %3406 = vmatpush1.bf16.msra.mxu0 %v3054
        %3407 = vmatprep.subr.bf16.mxu0 %v3071
        %3408 = vmatpush1.bf16.msra.mxu0 %v3070
        %3409 = vmatprep.subr.bf16.mxu0 %v3087
        %3410 = vmatpush1.bf16.msra.mxu0 %v3086
        %3411 = vmatprep.subr.bf16.mxu0 %v3103
        %3412 = vmatpush1.bf16.msra.mxu0 %v3102
        %3413 = vmatprep.subr.bf16.mxu0 %v3119
        %3414 = vmatpush1.bf16.msra.mxu0 %v3118
        %3415 = vmatprep.subr.bf16.mxu0 %v3135
        %3416 = vmatpush1.bf16.msra.mxu0 %v3134
        %3417 = vmatprep.subr.bf16.mxu0 %v3151
        %3418 = vmatpush1.bf16.msra.mxu0 %v3150
        %3419 = vmatprep.subr.bf16.mxu0 %v3167
        %3420 = vmatpush1.bf16.msra.mxu0 %v3166
        %3421 = vmatprep.subr.bf16.mxu0 %v3183
        %3422 = vmatpush1.bf16.msra.mxu0 %v3182
        %3423 = vmatprep.subr.bf16.mxu0 %v3248
        %3424 = vmatpush1.bf16.msra.mxu0 %v3245
        %3425 = vmatprep.subr.bf16.mxu0 0
        %3426 = vmatpush1.bf16.msra.mxu0 0
        %3427 = vmatprep.subr.bf16.mxu0 0
        %3428 = vmatpush1.bf16.msra.mxu0 0
        %3429 = vmatprep.mubr.bf16.mxu0 %v3223
        %3430 = vmatmul.mubr.bf16.gmra.mrb[0].mxu0 %v3218
        %v3431 = vpop.f32.mrb[0].mxu0
        %v3432 = vadd.f32 %v3213, %v3431
        %v3433 = vpop.f32.mrb[0].mxu0
        %v3434 = vadd.f32 %v3213, %v3433
        %v3435 = vpop.f32.mrb[0].mxu0
        %v3436 = vpop.f32.mrb[0].mxu0
        %3437 = vdwg.mxu0
        %3438 = vmatprep.subr.bf16.mxu0 %v2993
        %3439 = vmatpush1.bf16.msra.mxu0 %v2992
        %3440 = vmatprep.subr.bf16.mxu0 %v3009
        %3441 = vmatpush1.bf16.msra.mxu0 %v3008
        %3442 = vmatprep.subr.bf16.mxu0 %v3025
        %3443 = vmatpush1.bf16.msra.mxu0 %v3024
        %3444 = vmatprep.subr.bf16.mxu0 %v3041
        %3445 = vmatpush1.bf16.msra.mxu0 %v3040
        %3446 = vmatprep.subr.bf16.mxu0 %v3057
        %3447 = vmatpush1.bf16.msra.mxu0 %v3056
        %3448 = vmatprep.subr.bf16.mxu0 %v3073
        %3449 = vmatpush1.bf16.msra.mxu0 %v3072
        %3450 = vmatprep.subr.bf16.mxu0 %v3089
        %3451 = vmatpush1.bf16.msra.mxu0 %v3088
        %3452 = vmatprep.subr.bf16.mxu0 %v3105
        %3453 = vmatpush1.bf16.msra.mxu0 %v3104
        %3454 = vmatprep.subr.bf16.mxu0 %v3121
        %3455 = vmatpush1.bf16.msra.mxu0 %v3120
        %3456 = vmatprep.subr.bf16.mxu0 %v3137
        %3457 = vmatpush1.bf16.msra.mxu0 %v3136
        %3458 = vmatprep.subr.bf16.mxu0 %v3153
        %3459 = vmatpush1.bf16.msra.mxu0 %v3152
        %3460 = vmatprep.subr.bf16.mxu0 %v3169
        %3461 = vmatpush1.bf16.msra.mxu0 %v3168
        %3462 = vmatprep.subr.bf16.mxu0 %v3185
        %3463 = vmatpush1.bf16.msra.mxu0 %v3184
        %3464 = vmatprep.subr.bf16.mxu0 %v3254
        %3465 = vmatpush1.bf16.msra.mxu0 %v3251
        %3466 = vmatprep.subr.bf16.mxu0 0
        %3467 = vmatpush1.bf16.msra.mxu0 0
        %3468 = vmatprep.subr.bf16.mxu0 0
        %3469 = vmatpush1.bf16.msra.mxu0 0
        %3470 = vmatprep.mubr.bf16.mxu0 %v3223
        %3471 = vmatmul.mubr.bf16.gmra.mrb[0].mxu0 %v3218
        %v3472 = vpop.f32.mrb[0].mxu0
        %v3473 = vadd.f32 %v3213, %v3472
        %v3474 = vpop.f32.mrb[0].mxu0
        %v3475 = vadd.f32 %v3213, %v3474
        %v3476 = vpop.f32.mrb[0].mxu0
        %v3477 = vpop.f32.mrb[0].mxu0
        %3478 = vdwg.mxu0
        %3479 = vmatprep.subr.bf16.mxu0 %v2995
        %3480 = vmatpush1.bf16.msra.mxu0 %v2994
        %3481 = vmatprep.subr.bf16.mxu0 %v3011
        %3482 = vmatpush1.bf16.msra.mxu0 %v3010
        %3483 = vmatprep.subr.bf16.mxu0 %v3027
        %3484 = vmatpush1.bf16.msra.mxu0 %v3026
        %3485 = vmatprep.subr.bf16.mxu0 %v3043
        %3486 = vmatpush1.bf16.msra.mxu0 %v3042
        %3487 = vmatprep.subr.bf16.mxu0 %v3059
        %3488 = vmatpush1.bf16.msra.mxu0 %v3058
        %3489 = vmatprep.subr.bf16.mxu0 %v3075
        %3490 = vmatpush1.bf16.msra.mxu0 %v3074
        %3491 = vmatprep.subr.bf16.mxu0 %v3091
        %3492 = vmatpush1.bf16.msra.mxu0 %v3090
        %3493 = vmatprep.subr.bf16.mxu0 %v3107
        %3494 = vmatpush1.bf16.msra.mxu0 %v3106
        %3495 = vmatprep.subr.bf16.mxu0 %v3123
        %3496 = vmatpush1.bf16.msra.mxu0 %v3122
        %3497 = vmatprep.subr.bf16.mxu0 %v3139
        %3498 = vmatpush1.bf16.msra.mxu0 %v3138
        %3499 = vmatprep.subr.bf16.mxu0 %v3155
        %3500 = vmatpush1.bf16.msra.mxu0 %v3154
        %3501 = vmatprep.subr.bf16.mxu0 %v3171
        %3502 = vmatpush1.bf16.msra.mxu0 %v3170
        %3503 = vmatprep.subr.bf16.mxu0 %v3187
        %3504 = vmatpush1.bf16.msra.mxu0 %v3186
        %3505 = vmatprep.subr.bf16.mxu0 %v3260
        %3506 = vmatpush1.bf16.msra.mxu0 %v3257
        %3507 = vmatprep.subr.bf16.mxu0 0
        %3508 = vmatpush1.bf16.msra.mxu0 0
        %3509 = vmatprep.subr.bf16.mxu0 0
        %3510 = vmatpush1.bf16.msra.mxu0 0
        %3511 = vmatprep.mubr.bf16.mxu0 %v3223
        %3512 = vmatmul.mubr.bf16.gmra.mrb[0].mxu0 %v3218
        %v3513 = vpop.f32.mrb[0].mxu0
        %v3514 = vadd.f32 %v3213, %v3513
        %v3515 = vpop.f32.mrb[0].mxu0
        %v3516 = vadd.f32 %v3213, %v3515
        %v3517 = vpop.f32.mrb[0].mxu0
        %v3518 = vpop.f32.mrb[0].mxu0
        %3519 = vdwg.mxu0
        %3520 = vmatprep.subr.bf16.mxu0 %v2997
        %3521 = vmatpush1.bf16.msra.mxu0 %v2996
        %3522 = vmatprep.subr.bf16.mxu0 %v3013
        %3523 = vmatpush1.bf16.msra.mxu0 %v3012
        %3524 = vmatprep.subr.bf16.mxu0 %v3029
        %3525 = vmatpush1.bf16.msra.mxu0 %v3028
        %3526 = vmatprep.subr.bf16.mxu0 %v3045
        %3527 = vmatpush1.bf16.msra.mxu0 %v3044
        %3528 = vmatprep.subr.bf16.mxu0 %v3061
        %3529 = vmatpush1.bf16.msra.mxu0 %v3060
        %3530 = vmatprep.subr.bf16.mxu0 %v3077
        %3531 = vmatpush1.bf16.msra.mxu0 %v3076
        %3532 = vmatprep.subr.bf16.mxu0 %v3093
        %3533 = vmatpush1.bf16.msra.mxu0 %v3092
        %3534 = vmatprep.subr.bf16.mxu0 %v3109
        %3535 = vmatpush1.bf16.msra.mxu0 %v3108
        %3536 = vmatprep.subr.bf16.mxu0 %v3125
        %3537 = vmatpush1.bf16.msra.mxu0 %v3124
        %3538 = vmatprep.subr.bf16.mxu0 %v3141
        %3539 = vmatpush1.bf16.msra.mxu0 %v3140
        %3540 = vmatprep.subr.bf16.mxu0 %v3157
        %3541 = vmatpush1.bf16.msra.mxu0 %v3156
        %3542 = vmatprep.subr.bf16.mxu0 %v3173
        %3543 = vmatpush1.bf16.msra.mxu0 %v3172
        %3544 = vmatprep.subr.bf16.mxu0 %v3189
        %3545 = vmatpush1.bf16.msra.mxu0 %v3188
        %3546 = vmatprep.subr.bf16.mxu0 %v3266
        %3547 = vmatpush1.bf16.msra.mxu0 %v3263
        %3548 = vmatprep.subr.bf16.mxu0 0
        %3549 = vmatpush1.bf16.msra.mxu0 0
        %3550 = vmatprep.subr.bf16.mxu0 0
        %3551 = vmatpush1.bf16.msra.mxu0 0
        %3552 = vmatprep.mubr.bf16.mxu0 %v3223
        %3553 = vmatmul.mubr.bf16.gmra.mrb[0].mxu0 %v3218
        %v3554 = vpop.f32.mrb[0].mxu0
        %v3555 = vadd.f32 %v3213, %v3554
        %v3556 = vpop.f32.mrb[0].mxu0
        %v3557 = vadd.f32 %v3213, %v3556
        %v3558 = vpop.f32.mrb[0].mxu0
        %v3559 = vpop.f32.mrb[0].mxu0
        %3560 = vdwg.mxu0
        %3561 = vmatprep.subr.bf16.mxu0 %v2999
        %3562 = vmatpush1.bf16.msra.mxu0 %v2998
        %3563 = vmatprep.subr.bf16.mxu0 %v3015
        %3564 = vmatpush1.bf16.msra.mxu0 %v3014
        %3565 = vmatprep.subr.bf16.mxu0 %v3031
        %3566 = vmatpush1.bf16.msra.mxu0 %v3030
        %3567 = vmatprep.subr.bf16.mxu0 %v3047
        %3568 = vmatpush1.bf16.msra.mxu0 %v3046
        %3569 = vmatprep.subr.bf16.mxu0 %v3063
        %3570 = vmatpush1.bf16.msra.mxu0 %v3062
        %3571 = vmatprep.subr.bf16.mxu0 %v3079
        %3572 = vmatpush1.bf16.msra.mxu0 %v3078
        %3573 = vmatprep.subr.bf16.mxu0 %v3095
        %3574 = vmatpush1.bf16.msra.mxu0 %v3094
        %3575 = vmatprep.subr.bf16.mxu0 %v3111
        %3576 = vmatpush1.bf16.msra.mxu0 %v3110
        %3577 = vmatprep.subr.bf16.mxu0 %v3127
        %3578 = vmatpush1.bf16.msra.mxu0 %v3126
        %3579 = vmatprep.subr.bf16.mxu0 %v3143
        %3580 = vmatpush1.bf16.msra.mxu0 %v3142
        %3581 = vmatprep.subr.bf16.mxu0 %v3159
        %3582 = vmatpush1.bf16.msra.mxu0 %v3158
        %3583 = vmatprep.subr.bf16.mxu0 %v3175
        %3584 = vmatpush1.bf16.msra.mxu0 %v3174
        %3585 = vmatprep.subr.bf16.mxu0 %v3191
        %3586 = vmatpush1.bf16.msra.mxu0 %v3190
        %3587 = vmatprep.subr.bf16.mxu0 %v3272
        %3588 = vmatpush1.bf16.msra.mxu0 %v3269
        %3589 = vmatprep.subr.bf16.mxu0 0
        %3590 = vmatpush1.bf16.msra.mxu0 0
        %3591 = vmatprep.subr.bf16.mxu0 0
        %3592 = vmatpush1.bf16.msra.mxu0 0
        %3593 = vmatprep.mubr.bf16.mxu0 %v3223
        %3594 = vmatmul.mubr.bf16.gmra.mrb[0].mxu0 %v3218
        %v3595 = vpop.f32.mrb[0].mxu0
        %v3596 = vadd.f32 %v3213, %v3595
        %v3597 = vpop.f32.mrb[0].mxu0
        %v3598 = vadd.f32 %v3213, %v3597
        %v3599 = vpop.f32.mrb[0].mxu0
        %v3600 = vpop.f32.mrb[0].mxu0
        %3601 = vdwg.mxu0
        %3602 = vst [vmem:[%s709] sm:$0xff] %v3309
        %3603 = vst [vmem:[%s709 + $0x8] sm:$0xff] %v3311
        %3604 = vst [vmem:[%s709 + $0x10] sm:$0xff] %v3350
        %3605 = vst [vmem:[%s709 + $0x18] sm:$0xff] %v3352
        %3606 = vst [vmem:[%s709 + $0x20] sm:$0xff] %v3391
        %3607 = vst [vmem:[%s709 + $0x28] sm:$0xff] %v3393
        %3608 = vst [vmem:[%s709 + $0x30] sm:$0xff] %v3432
        %3609 = vst [vmem:[%s709 + $0x38] sm:$0xff] %v3434
        %3610 = vst [vmem:[%s709 + $0x40] sm:$0xff] %v3473
        %3611 = vst [vmem:[%s709 + $0x48] sm:$0xff] %v3475
        %3612 = vst [vmem:[%s709 + $0x50] sm:$0xff] %v3514
        %3613 = vst [vmem:[%s709 + $0x58] sm:$0xff] %v3516
        %3614 = vst [vmem:[%s709 + $0x60] sm:$0xff] %v3555
        %3615 = vst [vmem:[%s709 + $0x68] sm:$0xff] %v3557
        %3616 = vst [vmem:[%s709 + $0x70] sm:$0xff] %v3596
        %3617 = vst [vmem:[%s709 + $0x78] sm:$0xff] %v3598
        %v3618 = vadd.f32 %v3309, %v3311
        %v3619 = vadd.f32 %v3618, %v3350
        %v3620 = vadd.f32 %v3619, %v3352
        %v3621 = vadd.f32 %v3620, %v3391
        %v3622 = vadd.f32 %v3621, %v3393
        %v3623 = vadd.f32 %v3622, %v3432
        %v3624 = vadd.f32 %v3623, %v3434
        %v3625 = vadd.f32 %v3624, %v3473
        %v3626 = vadd.f32 %v3625, %v3475
        %v3627 = vadd.f32 %v3626, %v3514
        %v3628 = vadd.f32 %v3627, %v3516
        %v3629 = vadd.f32 %v3628, %v3555
        %v3630 = vadd.f32 %v3629, %v3557
        %v3631 = vadd.f32 %v3630, %v3596
        %v3632 = vadd.f32 %v3631, %v3598
        %3633 = vadd.xlane.f32.xlu0 %v3632
        %v3634 = vpop.xlane.xlu0 %3633
        %v3635 = vmul.f32 %v3309, %v3309
        %v3636 = vmul.f32 %v3311, %v3311
        %v3637 = vmul.f32 %v3350, %v3350
        %v3638 = vmul.f32 %v3352, %v3352
        %v3639 = vmul.f32 %v3391, %v3391
        %v3640 = vmul.f32 %v3393, %v3393
        %v3641 = vmul.f32 %v3432, %v3432
        %v3642 = vmul.f32 %v3434, %v3434
        %v3643 = vmul.f32 %v3473, %v3473
        %v3644 = vmul.f32 %v3475, %v3475
        %v3645 = vmul.f32 %v3514, %v3514
        %v3646 = vmul.f32 %v3516, %v3516
        %v3647 = vmul.f32 %v3555, %v3555
        %v3648 = vmul.f32 %v3557, %v3557
        %v3649 = vmul.f32 %v3596, %v3596
        %v3650 = vmul.f32 %v3598, %v3598
        %v3651 = vadd.f32 %v3635, %v3636
        %v3652 = vadd.f32 %v3651, %v3637
        %v3653 = vadd.f32 %v3652, %v3638
        %v3654 = vadd.f32 %v3653, %v3639
        %v3655 = vadd.f32 %v3654, %v3640
        %v3656 = vadd.f32 %v3655, %v3641
        %v3657 = vadd.f32 %v3656, %v3642
        %v3658 = vadd.f32 %v3657, %v3643
        %v3659 = vadd.f32 %v3658, %v3644
        %v3660 = vadd.f32 %v3659, %v3645
        %v3661 = vadd.f32 %v3660, %v3646
        %v3662 = vadd.f32 %v3661, %v3647
        %v3663 = vadd.f32 %v3662, %v3648
        %v3664 = vadd.f32 %v3663, %v3649
        %v3665 = vadd.f32 %v3664, %v3650
        %3666 = vadd.xlane.f32.xlu0 %v3665
        %v3667 = vpop.xlane.xlu0 %3666
        %v3668 = vlaneseq
        %v3669 = vand.u32 %v3668, 127
        %vm3670 = vcmp.eq.s32.totalorder %v3669, 0
        %vm3671 = vcmp.eq.s32.totalorder %v3669, 1
        %v3672 = vsel %vm3671, %v3667, 0.0
        %v3673 = vsel %vm3670, %v3634, %v3672
        %3674 = vst [vmem:[%s714] sm:$0xff] %v3673
        %s3675 = smul.u32 16, %s18
        %p3676 = scmp.lt.s32.totalorder %s3675, 63
        %s3677 = scalar_select %p3676, %s3675, 63
        %s3678 = smul.addr %s3677, 8
        %s3679 = scalar_lea.vmem %s5, %s3678
        %p3680 = scmp.lt.s32.totalorder %s18, 3
        %s3681 = scalar_select %p3680, %s18, 3
        %s3682 = smul.addr %s3681, 8
        %s3683 = scalar_lea.vmem %s6, %s3682
        // Predicated region
        $region64: #{double_conv_forward.4} parent=58 // pred_check
          %p3684 = pneg %p146
        $region65: #{double_conv_forward.4} parent=58 // pred_check_branch
          %3686 = sbr.rel (%p3684) target = $region67
        $region66: #{double_conv_forward.4} parent=58 // pred_region
          %s3687 = smul.u32 16, %s18
        $region67: #{double_conv_forward.4} parent=58 // pred_fallthru
          _
        // Predicated region
        $region68: #{double_conv_forward.4} parent=58 // pred_check
          %p3688 = pneg %p172
        $region69: #{double_conv_forward.4} parent=58 // pred_check_branch
          %3690 = sbr.rel (%p3688) target = $region71
        $region70: #{double_conv_forward.4} parent=58 // pred_region
          _
        $region71: #{double_conv_forward.4} parent=58 // pred_fallthru
          _
      $region59: #{double_conv_forward.4} parent=5 // pred_fallthru
        _
      %p3691 = scmp.le.s32.totalorder 2, %s13
      // Predicated region
      $region72: #{double_conv_forward.4} parent=5 // pred_check
        %p3692 = pneg %p3691
      $region73: #{double_conv_forward.4} parent=5 // pred_check_branch
        %3694 = sbr.rel (%p3692) target = $region75
      $region74: #{double_conv_forward.4} parent=5 // pred_region
        %s3695 = ssub.s32 %s13, 2
        // Predicated region
        $region76: #{double_conv_forward.4} parent=74 // pred_check
          %p3696 = pneg %p152
        $region77: #{double_conv_forward.4} parent=74 // pred_check_branch
          %3698 = sbr.rel (%p3696) target = $region79
        $region78: #{double_conv_forward.4} parent=74 // pred_region
          %s3699 = smul.u32 16, %s19
          %p3700 = scmp.lt.s32.totalorder %s3699, 63
          %s3701 = scalar_select %p3700, %s3699, 63
          %s3702 = smul.addr %s3701, 8
          %s3703 = scalar_lea.vmem %s5, %s3702
        $region79: #{double_conv_forward.4} parent=74 // pred_fallthru
          _
        // Predicated region
        $region80: #{double_conv_forward.4} parent=74 // pred_check
          %p3704 = pneg %p178
        $region81: #{double_conv_forward.4} parent=74 // pred_check_branch
          %3706 = sbr.rel (%p3704) target = $region83
        $region82: #{double_conv_forward.4} parent=74 // pred_region
          %p3707 = scmp.lt.s32.totalorder %s19, 3
          %s3708 = scalar_select %p3707, %s19, 3
          %s3709 = smul.addr %s3708, 8
          %s3710 = scalar_lea.vmem %s6, %s3709
        $region83: #{double_conv_forward.4} parent=74 // pred_fallthru
          _
      $region75: #{double_conv_forward.4} parent=5 // pred_fallthru
        _
    $region6: #{double_conv_forward.4} parent=1 // loop_footer
      %s17 = sadd.s32 1, %s13
    $region7: #{double_conv_forward.4} parent=1 // loop_footer_branch
      %12 = sbr.rel target = $region3
    $region8: #{double_conv_forward.4} parent=1 // loop_exit
      _

// kernel: double_conv_forward.5
$region0: #{double_conv_forward.5}
  #allocation0 [shape = 'u32[]', space=smem, size = 0x4, offset = 0x4, fixed_abs, tag = 'smem constant byte address 0x4 - core index']
  #allocation1 [shape = 'u32[144,128]{1,0:T(1,128)}', space=vmem, size = 0x12000, scoped, tag = 'internal scratch']
  %s0 = inlined_call_operand.vmem [shape: f32[8,8192], index: 0, kind: input, shape index: {}]
  %s1 = inlined_call_operand.vmem [shape: f32[8,1], index: 1, kind: input, shape index: {}]
  %s2 = inlined_call_operand.vmem [shape: f32[8,1], index: 2, kind: input, shape index: {}]
  %s3 = inlined_call_operand.vmem [shape: f32[8,8192], index: 3, kind: output, shape index: {}]
  %s4 = sld [smem:[#allocation0]]
  $region45: #{double_conv_forward.5} parent=0
    _
  %s6 = ssub.s32 1, %s4
  %s7 = scalar_select 0, %s6, %s4
  loop: start=0, step=1, limit=6
  $region2: #{double_conv_forward.5} parent=0 // loop_pre_header
    _
  $region3: #{double_conv_forward.5} parent=0 // loop_header
    %s9 = sphi 0, %s13
    %p10 = scmp.ge.s32.totalorder %s9, 6
    %s19 = sphi 0, %s21
    %s22 = sphi 0, %s19
    %s23 = sphi 0, %s22
    %s39 = sphi 0, %s23
    %s43 = sphi 0, %s43
    %s45 = sphi 0, %s43
    %s46 = sphi 0, %s45
    %s60 = sphi 0, %s46
    %s64 = sphi 0, %s64
    %s66 = sphi 0, %s64
    %s67 = sphi 0, %s66
    %s81 = sphi 0, %s67
    %s87 = sphi 0, %s89
    %s90 = sphi 0, %s87
    %s91 = sphi 0, %s90
    %s107 = sphi 0, %s91
  $region4: #{double_conv_forward.5} parent=0 // loop_header_branch
    %12 = sbr.rel (%p10) target = $region8
  $region5: #{double_conv_forward.5} parent=0 // loop_body
    %s14 = ssub.s32 %s9, 1
    %s15 = ssub.s32 %s9, 2
    %s16 = sadd.s32 %s9, 1
    %s17 = ssub.s32 %s9, %s16
    %p18 = scmp.eq.s32.totalorder %s17, 0
    %s20 = sadd.s32 %s19, 1
    %s21 = scalar_select %p18, %s19, %s20
    %p24 = pneg %p18
    %p25 = scmp.eq.s32.totalorder %s9, 3
    %p26 = por %p24, %p25
    %p27 = scmp.ne.s32.totalorder %s19, %s22
    %p28 = scmp.eq.s32.totalorder %s9, 0
    %p29 = por %p27, %p28
    %p30 = scmp.ne.s32.totalorder %s19, %s22
    %p31 = scmp.eq.s32.totalorder %s14, 3
    %p32 = por %p30, %p31
    %p33 = scmp.ne.s32.totalorder %s22, %s23
    %p34 = scmp.eq.s32.totalorder %s14, 0
    %p35 = por %p33, %p34
    %p36 = scmp.ne.s32.totalorder %s22, %s23
    %p37 = scmp.eq.s32.totalorder %s15, 3
    %p38 = por %p36, %p37
    %p40 = scmp.ne.s32.totalorder %s23, %s39
    %p41 = scmp.eq.s32.totalorder %s15, 0
    %p42 = por %p40, %p41
    %s44 = sadd.s32 %s43, 1
    %p47 = scmp.eq.s32.totalorder %s9, 3
    %p48 = scmp.ne.s32.totalorder %s43, %s45
    %p49 = scmp.eq.s32.totalorder %s9, 0
    %p50 = por %p48, %p49
    %p51 = scmp.ne.s32.totalorder %s43, %s45
    %p52 = scmp.eq.s32.totalorder %s14, 3
    %p53 = por %p51, %p52
    %p54 = scmp.ne.s32.totalorder %s45, %s46
    %p55 = scmp.eq.s32.totalorder %s14, 0
    %p56 = por %p54, %p55
    %p57 = scmp.ne.s32.totalorder %s45, %s46
    %p58 = scmp.eq.s32.totalorder %s15, 3
    %p59 = por %p57, %p58
    %p61 = scmp.ne.s32.totalorder %s46, %s60
    %p62 = scmp.eq.s32.totalorder %s15, 0
    %p63 = por %p61, %p62
    %s65 = sadd.s32 %s64, 1
    %p68 = scmp.eq.s32.totalorder %s9, 3
    %p69 = scmp.ne.s32.totalorder %s64, %s66
    %p70 = scmp.eq.s32.totalorder %s9, 0
    %p71 = por %p69, %p70
    %p72 = scmp.ne.s32.totalorder %s64, %s66
    %p73 = scmp.eq.s32.totalorder %s14, 3
    %p74 = por %p72, %p73
    %p75 = scmp.ne.s32.totalorder %s66, %s67
    %p76 = scmp.eq.s32.totalorder %s14, 0
    %p77 = por %p75, %p76
    %p78 = scmp.ne.s32.totalorder %s66, %s67
    %p79 = scmp.eq.s32.totalorder %s15, 3
    %p80 = por %p78, %p79
    %p82 = scmp.ne.s32.totalorder %s67, %s81
    %p83 = scmp.eq.s32.totalorder %s15, 0
    %p84 = por %p82, %p83
    %s85 = ssub.s32 %s9, %s16
    %p86 = scmp.eq.s32.totalorder %s85, 0
    %s88 = sadd.s32 %s87, 1
    %s89 = scalar_select %p86, %s87, %s88
    %p92 = pneg %p86
    %p93 = scmp.eq.s32.totalorder %s9, 3
    %p94 = por %p92, %p93
    %p95 = scmp.ne.s32.totalorder %s87, %s90
    %p96 = scmp.eq.s32.totalorder %s9, 0
    %p97 = por %p95, %p96
    %p98 = scmp.ne.s32.totalorder %s87, %s90
    %p99 = scmp.eq.s32.totalorder %s14, 3
    %p100 = por %p98, %p99
    %p101 = scmp.ne.s32.totalorder %s90, %s91
    %p102 = scmp.eq.s32.totalorder %s14, 0
    %p103 = por %p101, %p102
    %p104 = scmp.ne.s32.totalorder %s90, %s91
    %p105 = scmp.eq.s32.totalorder %s15, 3
    %p106 = por %p104, %p105
    %p108 = scmp.ne.s32.totalorder %s91, %s107
    %p109 = scmp.eq.s32.totalorder %s15, 0
    %p110 = por %p108, %p109
    %p111 = scmp.le.s32.totalorder 1, %s9
    %p112 = scmp.lt.s32.totalorder %s9, 5
    %p113 = pnand %p111, %p112
    %p114 = pneg %p113
    // Predicated region
    $region9: #{double_conv_forward.5} parent=5 // pred_check
      _
    $region10: #{double_conv_forward.5} parent=5 // pred_check_branch
      %116 = sbr.rel (%p113) target = $region12
    $region11: #{double_conv_forward.5} parent=5 // pred_region
      %s117 = ssub.s32 %s9, 1
      // Predicated region
      $region13: #{double_conv_forward.5} parent=11 // pred_check
        %p118 = pneg %p56
      $region14: #{double_conv_forward.5} parent=11 // pred_check_branch
        %120 = sbr.rel (%p118) target = $region16
      $region15: #{double_conv_forward.5} parent=11 // pred_region
        _
      $region16: #{double_conv_forward.5} parent=11 // pred_fallthru
        _
      // Predicated region
      $region17: #{double_conv_forward.5} parent=11 // pred_check
        %p121 = pneg %p77
      $region18: #{double_conv_forward.5} parent=11 // pred_check_branch
        %123 = sbr.rel (%p121) target = $region20
      $region19: #{double_conv_forward.5} parent=11 // pred_region
        _
      $region20: #{double_conv_forward.5} parent=11 // pred_fallthru
        _
    $region12: #{double_conv_forward.5} parent=5 // pred_fallthru
      _
    %p124 = scmp.lt.s32.totalorder %s9, 4
    // Predicated region
    $region21: #{double_conv_forward.5} parent=5 // pred_check
      %p125 = pneg %p124
    $region22: #{double_conv_forward.5} parent=5 // pred_check_branch
      %127 = sbr.rel (%p125) target = $region24
    $region23: #{double_conv_forward.5} parent=5 // pred_region
      // Predicated region
      $region25: #{double_conv_forward.5} parent=23 // pred_check
        %p128 = pneg %p29
      $region26: #{double_conv_forward.5} parent=23 // pred_check_branch
        %130 = sbr.rel (%p128) target = $region28
      $region27: #{double_conv_forward.5} parent=23 // pred_region
        %s131 = smul.u32 16, %s9
        %p132 = scmp.lt.s32.totalorder %s131, 63
        %s133 = scalar_select %p132, %s131, 63
        %s134 = smul.addr %s133, 8
        %s135 = scalar_lea.vmem %s0, %s134
        %s136 = smul.u32 16, %s9
      $region28: #{double_conv_forward.5} parent=23 // pred_fallthru
        _
    $region24: #{double_conv_forward.5} parent=5 // pred_fallthru
      _
    %p137 = scmp.le.s32.totalorder 1, %s9
    %p138 = scmp.lt.s32.totalorder %s9, 5
    %p139 = pnand %p137, %p138
    %p140 = pneg %p139
    // Predicated region
    $region29: #{double_conv_forward.5} parent=5 // pred_check
      _
    $region30: #{double_conv_forward.5} parent=5 // pred_check_branch
      %142 = sbr.rel (%p139) target = $region32
    $region31: #{double_conv_forward.5} parent=5 // pred_region
      %s143 = ssub.s32 %s9, 1
      %s144 = smul.u32 16, %s14
      %p145 = scmp.lt.s32.totalorder %s144, 63
      %s146 = scalar_select %p145, %s144, 63
      %s147 = smul.addr %s146, 8
      %s148 = scalar_lea.vmem %s0, %s147
      %p149 = pneg %p35
      %p150 = pneg %p32
      %p151 = pneg %p56
      %p152 = pneg %p53
      %p153 = pneg %p77
      %p154 = pneg %p74
      %p155 = pneg %p103
      %p156 = pneg %p100
      %s157 = smul.u32 16, %s14
      %p158 = scmp.lt.s32.totalorder %s157, 63
      %s159 = scalar_select %p158, %s157, 63
      %s160 = smul.addr %s159, 8
      %s161 = scalar_lea.vmem %s3, %s160
      %s162 = smul.u32 16, %s14
      %p163 = scmp.lt.s32.totalorder %s162, 63
      %s164 = scalar_select %p163, %s162, 63
      %s165 = smul.addr %s164, 8
      %s166 = scalar_lea.vmem %s0, %s165
      %s167 = smul.u32 16, %s14
      %s168 = smul.u32 16, %s14
      %p169 = scmp.lt.s32.totalorder %s168, 63
      %s170 = scalar_select %p169, %s168, 63
      %s171 = smul.addr %s170, 8
      %s172 = scalar_lea.vmem %s3, %s171
      %s173 = smul.u32 16, %s14
      %v174 = vld [vmem:[%s166] sm:$0xff]
      %v175 = vld [vmem:[%s166 + $0x8] sm:$0xff]
      %v176 = vld [vmem:[%s166 + $0x10] sm:$0xff]
      %v177 = vld [vmem:[%s166 + $0x18] sm:$0xff]
      %v178 = vld [vmem:[%s166 + $0x20] sm:$0xff]
      %v179 = vld [vmem:[%s166 + $0x28] sm:$0xff]
      %v180 = vld [vmem:[%s166 + $0x30] sm:$0xff]
      %v181 = vld [vmem:[%s166 + $0x38] sm:$0xff]
      %v182 = vld [vmem:[%s166 + $0x40] sm:$0xff]
      %v183 = vld [vmem:[%s166 + $0x48] sm:$0xff]
      %v184 = vld [vmem:[%s166 + $0x50] sm:$0xff]
      %v185 = vld [vmem:[%s166 + $0x58] sm:$0xff]
      %v186 = vld [vmem:[%s166 + $0x60] sm:$0xff]
      %v187 = vld [vmem:[%s166 + $0x68] sm:$0xff]
      %v188 = vld [vmem:[%s166 + $0x70] sm:$0xff]
      %v189 = vld [vmem:[%s166 + $0x78] sm:$0xff]
      %v190 = vld [vmem:[%s1] sm:$0xff]
      %192 = vset.pattern.permute.xlu0 0
      %193 = vperm.xlu0 %192, %v190
      %v194 = vpop.permute.xlu0 %193
      %v196 = vmul.f32 %v174, %v194
      %v197 = vmul.f32 %v175, %v194
      %v198 = vmul.f32 %v176, %v194
      %v199 = vmul.f32 %v177, %v194
      %v200 = vmul.f32 %v178, %v194
      %v201 = vmul.f32 %v179, %v194
      %v202 = vmul.f32 %v180, %v194
      %v203 = vmul.f32 %v181, %v194
      %v204 = vmul.f32 %v182, %v194
      %v205 = vmul.f32 %v183, %v194
      %v206 = vmul.f32 %v184, %v194
      %v207 = vmul.f32 %v185, %v194
      %v208 = vmul.f32 %v186, %v194
      %v209 = vmul.f32 %v187, %v194
      %v210 = vmul.f32 %v188, %v194
      %v211 = vmul.f32 %v189, %v194
      %v212 = vld [vmem:[%s2] sm:$0xff]
      %214 = vset.pattern.permute.xlu0 0
      %215 = vperm.xlu0 %214, %v212
      %v216 = vpop.permute.xlu0 %215
      %v218 = vadd.f32 %v196, %v216
      %v219 = vadd.f32 %v197, %v216
      %v220 = vadd.f32 %v198, %v216
      %v221 = vadd.f32 %v199, %v216
      %v222 = vadd.f32 %v200, %v216
      %v223 = vadd.f32 %v201, %v216
      %v224 = vadd.f32 %v202, %v216
      %v225 = vadd.f32 %v203, %v216
      %v226 = vadd.f32 %v204, %v216
      %v227 = vadd.f32 %v205, %v216
      %v228 = vadd.f32 %v206, %v216
      %v229 = vadd.f32 %v207, %v216
      %v230 = vadd.f32 %v208, %v216
      %v231 = vadd.f32 %v209, %v216
      %v232 = vadd.f32 %v210, %v216
      %v233 = vadd.f32 %v211, %v216
      %v234 = vmax.f32 %v218, 0.0
      %v235 = vmax.f32 %v219, 0.0
      %v236 = vmax.f32 %v220, 0.0
      %v237 = vmax.f32 %v221, 0.0
      %v238 = vmax.f32 %v222, 0.0
      %v239 = vmax.f32 %v223, 0.0
      %v240 = vmax.f32 %v224, 0.0
      %v241 = vmax.f32 %v225, 0.0
      %v242 = vmax.f32 %v226, 0.0
      %v243 = vmax.f32 %v227, 0.0
      %v244 = vmax.f32 %v228, 0.0
      %v245 = vmax.f32 %v229, 0.0
      %v246 = vmax.f32 %v230, 0.0
      %v247 = vmax.f32 %v231, 0.0
      %v248 = vmax.f32 %v232, 0.0
      %v249 = vmax.f32 %v233, 0.0
      %250 = vst [vmem:[%s172] sm:$0xff] %v234
      %251 = vst [vmem:[%s172 + $0x8] sm:$0xff] %v235
      %252 = vst [vmem:[%s172 + $0x10] sm:$0xff] %v236
      %253 = vst [vmem:[%s172 + $0x18] sm:$0xff] %v237
      %254 = vst [vmem:[%s172 + $0x20] sm:$0xff] %v238
      %255 = vst [vmem:[%s172 + $0x28] sm:$0xff] %v239
      %256 = vst [vmem:[%s172 + $0x30] sm:$0xff] %v240
      %257 = vst [vmem:[%s172 + $0x38] sm:$0xff] %v241
      %258 = vst [vmem:[%s172 + $0x40] sm:$0xff] %v242
      %259 = vst [vmem:[%s172 + $0x48] sm:$0xff] %v243
      %260 = vst [vmem:[%s172 + $0x50] sm:$0xff] %v244
      %261 = vst [vmem:[%s172 + $0x58] sm:$0xff] %v245
      %262 = vst [vmem:[%s172 + $0x60] sm:$0xff] %v246
      %263 = vst [vmem:[%s172 + $0x68] sm:$0xff] %v247
      %264 = vst [vmem:[%s172 + $0x70] sm:$0xff] %v248
      %265 = vst [vmem:[%s172 + $0x78] sm:$0xff] %v249
      %s266 = smul.u32 16, %s14
      %p267 = scmp.lt.s32.totalorder %s266, 63
      %s268 = scalar_select %p267, %s266, 63
      %s269 = smul.addr %s268, 8
      %s270 = scalar_lea.vmem %s3, %s269
      // Predicated region
      $region33: #{double_conv_forward.5} parent=31 // pred_check
        %p271 = pneg %p100
      $region34: #{double_conv_forward.5} parent=31 // pred_check_branch
        %273 = sbr.rel (%p271) target = $region36
      $region35: #{double_conv_forward.5} parent=31 // pred_region
        %s274 = smul.u32 16, %s14
      $region36: #{double_conv_forward.5} parent=31 // pred_fallthru
        _
    $region32: #{double_conv_forward.5} parent=5 // pred_fallthru
      _
    %p275 = scmp.le.s32.totalorder 2, %s9
    // Predicated region
    $region37: #{double_conv_forward.5} parent=5 // pred_check
      %p276 = pneg %p275
    $region38: #{double_conv_forward.5} parent=5 // pred_check_branch
      %278 = sbr.rel (%p276) target = $region40
    $region39: #{double_conv_forward.5} parent=5 // pred_region
      %s279 = ssub.s32 %s9, 2
      // Predicated region
      $region41: #{double_conv_forward.5} parent=39 // pred_check
        %p280 = pneg %p106
      $region42: #{double_conv_forward.5} parent=39 // pred_check_branch
        %282 = sbr.rel (%p280) target = $region44
      $region43: #{double_conv_forward.5} parent=39 // pred_region
        %s283 = smul.u32 16, %s15
        %p284 = scmp.lt.s32.totalorder %s283, 63
        %s285 = scalar_select %p284, %s283, 63
        %s286 = smul.addr %s285, 8
        %s287 = scalar_lea.vmem %s3, %s286
      $region44: #{double_conv_forward.5} parent=39 // pred_fallthru
        _
    $region40: #{double_conv_forward.5} parent=5 // pred_fallthru
      _
  $region6: #{double_conv_forward.5} parent=0 // loop_footer
    %s13 = sadd.s32 1, %s9
  $region7: #{double_conv_forward.5} parent=0 // loop_footer_branch
    %8 = sbr.rel target = $region3
  $region8: #{double_conv_forward.5} parent=0 // loop_exit
    _

</llo_original>
